<compile_context>
chip_gen: v5e
topology: v5e:2x2
jax: 0.10.0
libtpu: 0.0.40
codegen_flags: <defaults>
</compile_context>

<pallas_src>
import functools

import jax
import jax.numpy as jnp
from jax.experimental import pallas as pl
from jax.experimental.pallas import tpu as pltpu


def _trajectory_lstm_kernel(
    x_ref,
    wih0_ref, whh0_ref, b0_ref,
    wih1_ref, whh1_ref, b1_ref,
    wih2_ref, whh2_ref, b2_ref,
    fc1w_ref, fc1b_ref, fc2w_ref, fc2b_ref,
    out_ref,
    seq_ref,
    *, T, B):
  H = whh0_ref.shape[0]                         # whh is passed as (H, 4H)

  # ---- input LayerNorm (eps=1e-5); affine folded into layer-0 weights in wrapper ----
  x = x_ref[...].astype(jnp.float32)            # (T*B, I), time-major rows
  mean = jnp.mean(x, axis=-1, keepdims=True)
  xc = x - mean
  var = jnp.mean(xc * xc, axis=-1, keepdims=True)
  x_ln = xc * jax.lax.rsqrt(var + 1e-5)

  # ---- layer-0 input projection for ALL timesteps in one MXU dot ----
  proj0 = jnp.dot(x_ln, wih0_ref[...],
                  preferred_element_type=jnp.float32) + b0_ref[...]   # (T*B, 4H)

  whh0 = whh0_ref[...]
  wih1 = wih1_ref[...]
  whh1 = whh1_ref[...]
  wih2 = wih2_ref[...]
  whh2 = whh2_ref[...]
  bb1 = jnp.broadcast_to(b1_ref[...], (B, 4 * H))   # hoisted broadcasts
  bb2 = jnp.broadcast_to(b2_ref[...], (B, 4 * H))

  def cell(gates, c_prev):
    # gate order is (i, f, o, g) after the wrapper's column permutation:
    # one fused sigmoid over 3H lanes + one tanh for g (+ tanh(c)).
    sg = jax.nn.sigmoid(gates[:, :3 * H])
    g = jnp.tanh(gates[:, 3 * H:])
    c_new = sg[:, H:2 * H] * c_prev + sg[:, :H] * g
    h_new = sg[:, 2 * H:3 * H] * jnp.tanh(c_new)
    return h_new, c_new

  zeros = jnp.zeros((B, H), jnp.float32)
  h0 = h1 = h2 = zeros
  c0 = c1 = c2 = zeros

  # Fully unrolled recurrence: single basic block -> scheduler runs the layer/time
  # wavefront and keeps h/c in registers.
  for t in range(T):
    # layer 0 (input projection precomputed; only the recurrent dot per step)
    g0 = proj0[t * B:(t + 1) * B, :] + jnp.dot(
        h0, whh0, preferred_element_type=jnp.float32)
    h0, c0 = cell(g0, c0)

    # layer 1
    g1 = (jnp.dot(h0, wih1, preferred_element_type=jnp.float32)
          + jnp.dot(h1, whh1, preferred_element_type=jnp.float32) + bb1)
    h1, c1 = cell(g1, c1)

    # layer 2
    g2 = (jnp.dot(h1, wih2, preferred_element_type=jnp.float32)
          + jnp.dot(h2, whh2, preferred_element_type=jnp.float32) + bb2)
    h2, c2 = cell(g2, c2)

    # sublane-aligned static-offset store of the top-layer output
    seq_ref[t * B:(t + 1) * B, :] = h2

  # TODO(synk): inter-layer dropout (p=0.3) and head dropout are identity in eval mode.

  # ---- head: fc1 -> ReLU -> fc2 over the whole (T*B, H) slab ----
  seq = seq_ref[...]
  a1 = jnp.maximum(
      jnp.dot(seq, fc1w_ref[...], preferred_element_type=jnp.float32) + fc1b_ref[...],
      0.0)
  out = jnp.dot(a1, fc2w_ref[...], preferred_element_type=jnp.float32) + fc2b_ref[...]
  out_ref[...] = out.astype(out_ref.dtype)


def init_params(key, input_size=7, hidden_size=32, num_layers=3, output_size=2):
  """Deterministic synthetic init mirroring TrajectoryLSTM._init_weights."""
  H = hidden_size
  xavier = jax.nn.initializers.glorot_uniform()
  ortho = jax.nn.initializers.orthogonal()
  keys = jax.random.split(key, 2 * num_layers + 4)
  ki = 0
  params = {
      "ln_gamma": jnp.ones((input_size,), jnp.float32),
      "ln_beta": jnp.zeros((input_size,), jnp.float32),
      "lstm": [],
  }
  for l in range(num_layers):
    din = input_size if l == 0 else H
    w_ih = xavier(keys[ki], (4 * H, din), jnp.float32); ki += 1   # xavier_uniform_
    w_hh = ortho(keys[ki], (4 * H, H), jnp.float32); ki += 1      # orthogonal_
    b = jnp.zeros((4 * H,), jnp.float32)                          # b_ih + b_hh, both 0
    params["lstm"].append((w_ih, w_hh, b))
  params["fc1_w"] = xavier(keys[ki], (H // 2, H), jnp.float32); ki += 1
  b1 = 1.0 / (H ** 0.5)
  params["fc1_b"] = jax.random.uniform(keys[ki], (H // 2,), jnp.float32, -b1, b1); ki += 1
  params["fc2_w"] = xavier(keys[ki], (output_size, H // 2), jnp.float32); ki += 1
  b2 = 1.0 / ((H // 2) ** 0.5)
  params["fc2_b"] = jax.random.uniform(keys[ki], (output_size,), jnp.float32, -b2, b2)
  return params


def trajectory_lstm_forward(params, x):
  """x: (B, T, I) float32  ->  (B, T, O) float32 (eval-mode forward)."""
  B, T, I = x.shape
  H = params["lstm"][0][1].shape[1]        # w_hh is (4H, H)
  O = params["fc2_w"].shape[0]
  B_pad = ((B + 7) // 8) * 8               # sublane-multiple batch

  # time-major, batch-padded, 2-D (T*B_pad, I) layout for the kernel
  xt = jnp.transpose(x, (1, 0, 2)).astype(jnp.float32)       # (T, B, I)
  if B_pad != B:
    xt = jnp.pad(xt, ((0, 0), (0, B_pad - B), (0, 0)))
  x2d = xt.reshape(T * B_pad, I)

  def reorder(w4h):
    # last dim is 4H in PyTorch gate order [i, f, g, o] -> kernel order [i, f, o, g]
    return jnp.concatenate(
        [w4h[..., :2 * H], w4h[..., 3 * H:], w4h[..., 2 * H:3 * H]], axis=-1)

  # layer 0: reorder gates then fold LN affine (gamma/beta) into wih0 / b0
  w_ih0, w_hh0, b0 = params["lstm"][0]
  wih0_t = reorder(w_ih0.T)                       # (I, 4H)
  b0_r = reorder(b0)                              # (4H,)
  gamma = params["ln_gamma"]
  beta = params["ln_beta"]
  wih0_f = gamma[:, None] * wih0_t                # diag(gamma) @ W
  b0_f = b0_r + beta @ wih0_t                     # bias += beta @ W
  whh0_t = reorder(w_hh0.T)                       # (H, 4H)

  args = [x2d, wih0_f, whh0_t, b0_f.reshape(1, -1)]
  for (w_ih, w_hh, b) in params["lstm"][1:]:
    args += [reorder(w_ih.T), reorder(w_hh.T), reorder(b).reshape(1, -1)]
  args += [params["fc1_w"].T, params["fc1_b"].reshape(1, -1),
           params["fc2_w"].T, params["fc2_b"].reshape(1, -1)]

  kernel = functools.partial(_trajectory_lstm_kernel, T=T, B=B_pad)

  out2d = pl.pallas_call(
      kernel,
      out_shape=jax.ShapeDtypeStruct((T * B_pad, O), jnp.float32),
      in_specs=[pl.BlockSpec(memory_space=pltpu.MemorySpace.VMEM)] * len(args),
      out_specs=pl.BlockSpec(memory_space=pltpu.MemorySpace.VMEM),
      scratch_shapes=[
          pltpu.VMEM((T * B_pad, H), jnp.float32),   # top-layer output sequence
      ],
  )(*args)

  out = out2d.reshape(T, B_pad, O)[:, :B, :]
  return jnp.transpose(out, (1, 0, 2))


def reference_forward(params, x):
  """Pure-JAX reference (PyTorch gate order, unfused LN) for correctness checking."""
  mean = jnp.mean(x, -1, keepdims=True)
  var = jnp.mean((x - mean) ** 2, -1, keepdims=True)
  h = (x - mean) / jnp.sqrt(var + 1e-5) * params["ln_gamma"] + params["ln_beta"]
  B, T, _ = x.shape
  inp = h
  for (w_ih, w_hh, b) in params["lstm"]:
    H = w_hh.shape[1]
    hs = jnp.zeros((B, H), jnp.float32)
    cs = jnp.zeros((B, H), jnp.float32)
    outs = []
    for t in range(T):
      gates = inp[:, t, :] @ w_ih.T + hs @ w_hh.T + b
      i = jax.nn.sigmoid(gates[:, :H])
      f = jax.nn.sigmoid(gates[:, H:2 * H])
      g = jnp.tanh(gates[:, 2 * H:3 * H])
      o = jax.nn.sigmoid(gates[:, 3 * H:])
      cs = f * cs + i * g
      hs = o * jnp.tanh(cs)
      outs.append(hs)
    inp = jnp.stack(outs, axis=1)
  y = jnp.maximum(inp @ params["fc1_w"].T + params["fc1_b"], 0.0)
  return y @ params["fc2_w"].T + params["fc2_b"]


if __name__ == "__main__":
  B, T, I, H, O = 4, 8, 7, 32, 2
  key = jax.random.PRNGKey(0)
  pkey, xkey = jax.random.split(key)
  params = init_params(pkey, input_size=I, hidden_size=H, num_layers=3, output_size=O)
  x = jax.random.normal(xkey, (B, T, I), jnp.float32)

  out = jax.block_until_ready(trajectory_lstm_forward(params, x))
  assert out.shape == (B, T, O), out.shape

  ref = reference_forward(params, x)
  if not jnp.allclose(out, ref, atol=1e-4, rtol=1e-4):
    raise RuntimeError("Pallas kernel output mismatch vs JAX reference")

  print("KERNEL_OK")
</pallas_src>

<mosaic_0001>
module attributes {stable_mosaic.version = 11 : i64} {
  func.func @_trajectory_lstm_kernel(%arg0: memref<64x7xf32, #tpu.memory_space<vmem>>, %arg1: memref<7x128xf32, #tpu.memory_space<vmem>>, %arg2: memref<32x128xf32, #tpu.memory_space<vmem>>, %arg3: memref<1x128xf32, #tpu.memory_space<vmem>>, %arg4: memref<32x128xf32, #tpu.memory_space<vmem>>, %arg5: memref<32x128xf32, #tpu.memory_space<vmem>>, %arg6: memref<1x128xf32, #tpu.memory_space<vmem>>, %arg7: memref<32x128xf32, #tpu.memory_space<vmem>>, %arg8: memref<32x128xf32, #tpu.memory_space<vmem>>, %arg9: memref<1x128xf32, #tpu.memory_space<vmem>>, %arg10: memref<32x16xf32, #tpu.memory_space<vmem>>, %arg11: memref<1x16xf32, #tpu.memory_space<vmem>>, %arg12: memref<16x2xf32, #tpu.memory_space<vmem>>, %arg13: memref<1x2xf32, #tpu.memory_space<vmem>>, %arg14: memref<64x2xf32, #tpu.memory_space<vmem>>, %arg15: memref<64x32xf32, #tpu.memory_space<vmem>>) attributes {dimension_semantics = [], scalar_prefetch = 0 : i64, scratch_operands = 1 : i64, tpu.core_type = #tpu.core_type<tc>} {
    %c0 = arith.constant 0 : index
    %c0_0 = arith.constant 0 : index
    %0 = vector.load %arg0[%c0, %c0_0] : memref<64x7xf32, #tpu.memory_space<vmem>>, vector<64x7xf32>
    %cst = arith.constant dense<0.000000e+00> : vector<64xf32>
    %1 = vector.multi_reduction <add>, %0, %cst [1] : vector<64x7xf32> to vector<64xf32>
    %2 = vector.shape_cast %1 : vector<64xf32> to vector<64x1xf32>
    %cst_1 = arith.constant 7.000000e+00 : f32
    %3 = vector.broadcast %cst_1 : f32 to vector<64x1xf32>
    %4 = arith.divf %2, %3 : vector<64x1xf32>
    %5 = vector.broadcast %4 : vector<64x1xf32> to vector<64x7xf32>
    %6 = arith.subf %0, %5 : vector<64x7xf32>
    %7 = arith.mulf %6, %6 : vector<64x7xf32>
    %cst_2 = arith.constant dense<0.000000e+00> : vector<64xf32>
    %8 = vector.multi_reduction <add>, %7, %cst_2 [1] : vector<64x7xf32> to vector<64xf32>
    %9 = vector.shape_cast %8 : vector<64xf32> to vector<64x1xf32>
    %cst_3 = arith.constant 7.000000e+00 : f32
    %10 = vector.broadcast %cst_3 : f32 to vector<64x1xf32>
    %11 = arith.divf %9, %10 : vector<64x1xf32>
    %cst_4 = arith.constant 9.99999974E-6 : f32
    %12 = vector.broadcast %cst_4 : f32 to vector<64x1xf32>
    %13 = arith.addf %11, %12 : vector<64x1xf32>
    %14 = math.rsqrt %13 : vector<64x1xf32>
    %15 = vector.broadcast %14 : vector<64x1xf32> to vector<64x7xf32>
    %16 = arith.mulf %6, %15 : vector<64x7xf32>
    %c0_5 = arith.constant 0 : index
    %c0_6 = arith.constant 0 : index
    %17 = vector.load %arg1[%c0_5, %c0_6] : memref<7x128xf32, #tpu.memory_space<vmem>>, vector<7x128xf32>
    %cst_7 = arith.constant dense<0.000000e+00> : vector<64x128xf32>
    %18 = tpu.matmul %16, %17, %cst_7 {dimension_numbers = #tpu.dot_dimension_numbers<[1], [0], [0], [1], [0, 0, 1, 1], [], []>} : vector<64x7xf32>, vector<7x128xf32>, vector<64x128xf32> -> vector<64x128xf32>
    %c0_8 = arith.constant 0 : index
    %c0_9 = arith.constant 0 : index
    %19 = vector.load %arg3[%c0_8, %c0_9] : memref<1x128xf32, #tpu.memory_space<vmem>>, vector<1x128xf32>
    %20 = vector.broadcast %19 : vector<1x128xf32> to vector<64x128xf32>
    %21 = arith.addf %18, %20 : vector<64x128xf32>
    %c0_10 = arith.constant 0 : index
    %c0_11 = arith.constant 0 : index
    %22 = vector.load %arg2[%c0_10, %c0_11] : memref<32x128xf32, #tpu.memory_space<vmem>>, vector<32x128xf32>
    %c0_12 = arith.constant 0 : index
    %c0_13 = arith.constant 0 : index
    %23 = vector.load %arg4[%c0_12, %c0_13] : memref<32x128xf32, #tpu.memory_space<vmem>>, vector<32x128xf32>
    %c0_14 = arith.constant 0 : index
    %c0_15 = arith.constant 0 : index
    %24 = vector.load %arg5[%c0_14, %c0_15] : memref<32x128xf32, #tpu.memory_space<vmem>>, vector<32x128xf32>
    %c0_16 = arith.constant 0 : index
    %c0_17 = arith.constant 0 : index
    %25 = vector.load %arg7[%c0_16, %c0_17] : memref<32x128xf32, #tpu.memory_space<vmem>>, vector<32x128xf32>
    %c0_18 = arith.constant 0 : index
    %c0_19 = arith.constant 0 : index
    %26 = vector.load %arg8[%c0_18, %c0_19] : memref<32x128xf32, #tpu.memory_space<vmem>>, vector<32x128xf32>
    %c0_20 = arith.constant 0 : index
    %c0_21 = arith.constant 0 : index
    %27 = vector.load %arg6[%c0_20, %c0_21] : memref<1x128xf32, #tpu.memory_space<vmem>>, vector<1x128xf32>
    %28 = vector.shape_cast %27 : vector<1x128xf32> to vector<1x128xf32>
    %29 = vector.broadcast %28 : vector<1x128xf32> to vector<8x128xf32>
    %c0_22 = arith.constant 0 : index
    %c0_23 = arith.constant 0 : index
    %30 = vector.load %arg9[%c0_22, %c0_23] : memref<1x128xf32, #tpu.memory_space<vmem>>, vector<1x128xf32>
    %31 = vector.shape_cast %30 : vector<1x128xf32> to vector<1x128xf32>
    %32 = vector.broadcast %31 : vector<1x128xf32> to vector<8x128xf32>
    %cst_24 = arith.constant 0.000000e+00 : f32
    %33 = vector.broadcast %cst_24 : f32 to vector<8x32xf32>
    %34 = vector.extract_strided_slice %21 {offsets = [0, 0], sizes = [8, 128], strides = [1, 1]} : vector<64x128xf32> to vector<8x128xf32>
    %cst_25 = arith.constant dense<0.000000e+00> : vector<8x128xf32>
    %35 = tpu.matmul %33, %22, %cst_25 {dimension_numbers = #tpu.dot_dimension_numbers<[1], [0], [0], [1], [0, 0, 1, 1], [], []>} : vector<8x32xf32>, vector<32x128xf32>, vector<8x128xf32> -> vector<8x128xf32>
    %36 = arith.addf %34, %35 : vector<8x128xf32>
    %37 = vector.extract_strided_slice %36 {offsets = [0, 0], sizes = [8, 96], strides = [1, 1]} : vector<8x128xf32> to vector<8x96xf32>
    %38 = arith.negf %37 : vector<8x96xf32>
    %39 = math.exp %38 : vector<8x96xf32>
    %cst_26 = arith.constant 1.000000e+00 : f32
    %40 = vector.broadcast %cst_26 : f32 to vector<8x96xf32>
    %41 = arith.addf %40, %39 : vector<8x96xf32>
    %42 = arith.divf %40, %41 : vector<8x96xf32>
    %43 = vector.extract_strided_slice %36 {offsets = [0, 96], sizes = [8, 32], strides = [1, 1]} : vector<8x128xf32> to vector<8x32xf32>
    %44 = math.tanh %43 : vector<8x32xf32>
    %45 = vector.extract_strided_slice %42 {offsets = [0, 32], sizes = [8, 32], strides = [1, 1]} : vector<8x96xf32> to vector<8x32xf32>
    %46 = arith.mulf %45, %33 : vector<8x32xf32>
    %47 = vector.extract_strided_slice %42 {offsets = [0, 0], sizes = [8, 32], strides = [1, 1]} : vector<8x96xf32> to vector<8x32xf32>
    %48 = arith.mulf %47, %44 : vector<8x32xf32>
    %49 = arith.addf %46, %48 : vector<8x32xf32>
    %50 = vector.extract_strided_slice %42 {offsets = [0, 64], sizes = [8, 32], strides = [1, 1]} : vector<8x96xf32> to vector<8x32xf32>
    %51 = math.tanh %49 : vector<8x32xf32>
    %52 = arith.mulf %50, %51 : vector<8x32xf32>
    %cst_27 = arith.constant dense<0.000000e+00> : vector<8x128xf32>
    %53 = tpu.matmul %52, %23, %cst_27 {dimension_numbers = #tpu.dot_dimension_numbers<[1], [0], [0], [1], [0, 0, 1, 1], [], []>} : vector<8x32xf32>, vector<32x128xf32>, vector<8x128xf32> -> vector<8x128xf32>
    %cst_28 = arith.constant dense<0.000000e+00> : vector<8x128xf32>
    %54 = tpu.matmul %33, %24, %cst_28 {dimension_numbers = #tpu.dot_dimension_numbers<[1], [0], [0], [1], [0, 0, 1, 1], [], []>} : vector<8x32xf32>, vector<32x128xf32>, vector<8x128xf32> -> vector<8x128xf32>
    %55 = arith.addf %53, %54 : vector<8x128xf32>
    %56 = arith.addf %55, %29 : vector<8x128xf32>
    %57 = vector.extract_strided_slice %56 {offsets = [0, 0], sizes = [8, 96], strides = [1, 1]} : vector<8x128xf32> to vector<8x96xf32>
    %58 = arith.negf %57 : vector<8x96xf32>
    %59 = math.exp %58 : vector<8x96xf32>
    %cst_29 = arith.constant 1.000000e+00 : f32
    %60 = vector.broadcast %cst_29 : f32 to vector<8x96xf32>
    %61 = arith.addf %60, %59 : vector<8x96xf32>
    %62 = arith.divf %60, %61 : vector<8x96xf32>
    %63 = vector.extract_strided_slice %56 {offsets = [0, 96], sizes = [8, 32], strides = [1, 1]} : vector<8x128xf32> to vector<8x32xf32>
    %64 = math.tanh %63 : vector<8x32xf32>
    %65 = vector.extract_strided_slice %62 {offsets = [0, 32], sizes = [8, 32], strides = [1, 1]} : vector<8x96xf32> to vector<8x32xf32>
    %66 = arith.mulf %65, %33 : vector<8x32xf32>
    %67 = vector.extract_strided_slice %62 {offsets = [0, 0], sizes = [8, 32], strides = [1, 1]} : vector<8x96xf32> to vector<8x32xf32>
    %68 = arith.mulf %67, %64 : vector<8x32xf32>
    %69 = arith.addf %66, %68 : vector<8x32xf32>
    %70 = vector.extract_strided_slice %62 {offsets = [0, 64], sizes = [8, 32], strides = [1, 1]} : vector<8x96xf32> to vector<8x32xf32>
    %71 = math.tanh %69 : vector<8x32xf32>
    %72 = arith.mulf %70, %71 : vector<8x32xf32>
    %cst_30 = arith.constant dense<0.000000e+00> : vector<8x128xf32>
    %73 = tpu.matmul %72, %25, %cst_30 {dimension_numbers = #tpu.dot_dimension_numbers<[1], [0], [0], [1], [0, 0, 1, 1], [], []>} : vector<8x32xf32>, vector<32x128xf32>, vector<8x128xf32> -> vector<8x128xf32>
    %cst_31 = arith.constant dense<0.000000e+00> : vector<8x128xf32>
    %74 = tpu.matmul %33, %26, %cst_31 {dimension_numbers = #tpu.dot_dimension_numbers<[1], [0], [0], [1], [0, 0, 1, 1], [], []>} : vector<8x32xf32>, vector<32x128xf32>, vector<8x128xf32> -> vector<8x128xf32>
    %75 = arith.addf %73, %74 : vector<8x128xf32>
    %76 = arith.addf %75, %32 : vector<8x128xf32>
    %77 = vector.extract_strided_slice %76 {offsets = [0, 0], sizes = [8, 96], strides = [1, 1]} : vector<8x128xf32> to vector<8x96xf32>
    %78 = arith.negf %77 : vector<8x96xf32>
    %79 = math.exp %78 : vector<8x96xf32>
    %cst_32 = arith.constant 1.000000e+00 : f32
    %80 = vector.broadcast %cst_32 : f32 to vector<8x96xf32>
    %81 = arith.addf %80, %79 : vector<8x96xf32>
    %82 = arith.divf %80, %81 : vector<8x96xf32>
    %83 = vector.extract_strided_slice %76 {offsets = [0, 96], sizes = [8, 32], strides = [1, 1]} : vector<8x128xf32> to vector<8x32xf32>
    %84 = math.tanh %83 : vector<8x32xf32>
    %85 = vector.extract_strided_slice %82 {offsets = [0, 32], sizes = [8, 32], strides = [1, 1]} : vector<8x96xf32> to vector<8x32xf32>
    %86 = arith.mulf %85, %33 : vector<8x32xf32>
    %87 = vector.extract_strided_slice %82 {offsets = [0, 0], sizes = [8, 32], strides = [1, 1]} : vector<8x96xf32> to vector<8x32xf32>
    %88 = arith.mulf %87, %84 : vector<8x32xf32>
    %89 = arith.addf %86, %88 : vector<8x32xf32>
    %90 = vector.extract_strided_slice %82 {offsets = [0, 64], sizes = [8, 32], strides = [1, 1]} : vector<8x96xf32> to vector<8x32xf32>
    %91 = math.tanh %89 : vector<8x32xf32>
    %92 = arith.mulf %90, %91 : vector<8x32xf32>
    %c0_33 = arith.constant 0 : index
    %c0_34 = arith.constant 0 : index
    %93 = vector.load %arg15[%c0_33, %c0_34] : memref<64x32xf32, #tpu.memory_space<vmem>>, vector<8x32xf32>
    tpu.vector_store %arg15[%c0_33, %c0_34], %92 {strides = array<i32>} : memref<64x32xf32, #tpu.memory_space<vmem>>, vector<8x32xf32>,
    %94 = vector.extract_strided_slice %21 {offsets = [8, 0], sizes = [8, 128], strides = [1, 1]} : vector<64x128xf32> to vector<8x128xf32>
    %cst_35 = arith.constant dense<0.000000e+00> : vector<8x128xf32>
    %95 = tpu.matmul %52, %22, %cst_35 {dimension_numbers = #tpu.dot_dimension_numbers<[1], [0], [0], [1], [0, 0, 1, 1], [], []>} : vector<8x32xf32>, vector<32x128xf32>, vector<8x128xf32> -> vector<8x128xf32>
    %96 = arith.addf %94, %95 : vector<8x128xf32>
    %97 = vector.extract_strided_slice %96 {offsets = [0, 0], sizes = [8, 96], strides = [1, 1]} : vector<8x128xf32> to vector<8x96xf32>
    %98 = arith.negf %97 : vector<8x96xf32>
    %99 = math.exp %98 : vector<8x96xf32>
    %cst_36 = arith.constant 1.000000e+00 : f32
    %100 = vector.broadcast %cst_36 : f32 to vector<8x96xf32>
    %101 = arith.addf %100, %99 : vector<8x96xf32>
    %102 = arith.divf %100, %101 : vector<8x96xf32>
    %103 = vector.extract_strided_slice %96 {offsets = [0, 96], sizes = [8, 32], strides = [1, 1]} : vector<8x128xf32> to vector<8x32xf32>
    %104 = math.tanh %103 : vector<8x32xf32>
    %105 = vector.extract_strided_slice %102 {offsets = [0, 32], sizes = [8, 32], strides = [1, 1]} : vector<8x96xf32> to vector<8x32xf32>
    %106 = arith.mulf %105, %49 : vector<8x32xf32>
    %107 = vector.extract_strided_slice %102 {offsets = [0, 0], sizes = [8, 32], strides = [1, 1]} : vector<8x96xf32> to vector<8x32xf32>
    %108 = arith.mulf %107, %104 : vector<8x32xf32>
    %109 = arith.addf %106, %108 : vector<8x32xf32>
    %110 = vector.extract_strided_slice %102 {offsets = [0, 64], sizes = [8, 32], strides = [1, 1]} : vector<8x96xf32> to vector<8x32xf32>
    %111 = math.tanh %109 : vector<8x32xf32>
    %112 = arith.mulf %110, %111 : vector<8x32xf32>
    %cst_37 = arith.constant dense<0.000000e+00> : vector<8x128xf32>
    %113 = tpu.matmul %112, %23, %cst_37 {dimension_numbers = #tpu.dot_dimension_numbers<[1], [0], [0], [1], [0, 0, 1, 1], [], []>} : vector<8x32xf32>, vector<32x128xf32>, vector<8x128xf32> -> vector<8x128xf32>
    %cst_38 = arith.constant dense<0.000000e+00> : vector<8x128xf32>
    %114 = tpu.matmul %72, %24, %cst_38 {dimension_numbers = #tpu.dot_dimension_numbers<[1], [0], [0], [1], [0, 0, 1, 1], [], []>} : vector<8x32xf32>, vector<32x128xf32>, vector<8x128xf32> -> vector<8x128xf32>
    %115 = arith.addf %113, %114 : vector<8x128xf32>
    %116 = arith.addf %115, %29 : vector<8x128xf32>
    %117 = vector.extract_strided_slice %116 {offsets = [0, 0], sizes = [8, 96], strides = [1, 1]} : vector<8x128xf32> to vector<8x96xf32>
    %118 = arith.negf %117 : vector<8x96xf32>
    %119 = math.exp %118 : vector<8x96xf32>
    %cst_39 = arith.constant 1.000000e+00 : f32
    %120 = vector.broadcast %cst_39 : f32 to vector<8x96xf32>
    %121 = arith.addf %120, %119 : vector<8x96xf32>
    %122 = arith.divf %120, %121 : vector<8x96xf32>
    %123 = vector.extract_strided_slice %116 {offsets = [0, 96], sizes = [8, 32], strides = [1, 1]} : vector<8x128xf32> to vector<8x32xf32>
    %124 = math.tanh %123 : vector<8x32xf32>
    %125 = vector.extract_strided_slice %122 {offsets = [0, 32], sizes = [8, 32], strides = [1, 1]} : vector<8x96xf32> to vector<8x32xf32>
    %126 = arith.mulf %125, %69 : vector<8x32xf32>
    %127 = vector.extract_strided_slice %122 {offsets = [0, 0], sizes = [8, 32], strides = [1, 1]} : vector<8x96xf32> to vector<8x32xf32>
    %128 = arith.mulf %127, %124 : vector<8x32xf32>
    %129 = arith.addf %126, %128 : vector<8x32xf32>
    %130 = vector.extract_strided_slice %122 {offsets = [0, 64], sizes = [8, 32], strides = [1, 1]} : vector<8x96xf32> to vector<8x32xf32>
    %131 = math.tanh %129 : vector<8x32xf32>
    %132 = arith.mulf %130, %131 : vector<8x32xf32>
    %cst_40 = arith.constant dense<0.000000e+00> : vector<8x128xf32>
    %133 = tpu.matmul %132, %25, %cst_40 {dimension_numbers = #tpu.dot_dimension_numbers<[1], [0], [0], [1], [0, 0, 1, 1], [], []>} : vector<8x32xf32>, vector<32x128xf32>, vector<8x128xf32> -> vector<8x128xf32>
    %cst_41 = arith.constant dense<0.000000e+00> : vector<8x128xf32>
    %134 = tpu.matmul %92, %26, %cst_41 {dimension_numbers = #tpu.dot_dimension_numbers<[1], [0], [0], [1], [0, 0, 1, 1], [], []>} : vector<8x32xf32>, vector<32x128xf32>, vector<8x128xf32> -> vector<8x128xf32>
    %135 = arith.addf %133, %134 : vector<8x128xf32>
    %136 = arith.addf %135, %32 : vector<8x128xf32>
    %137 = vector.extract_strided_slice %136 {offsets = [0, 0], sizes = [8, 96], strides = [1, 1]} : vector<8x128xf32> to vector<8x96xf32>
    %138 = arith.negf %137 : vector<8x96xf32>
    %139 = math.exp %138 : vector<8x96xf32>
    %cst_42 = arith.constant 1.000000e+00 : f32
    %140 = vector.broadcast %cst_42 : f32 to vector<8x96xf32>
    %141 = arith.addf %140, %139 : vector<8x96xf32>
    %142 = arith.divf %140, %141 : vector<8x96xf32>
    %143 = vector.extract_strided_slice %136 {offsets = [0, 96], sizes = [8, 32], strides = [1, 1]} : vector<8x128xf32> to vector<8x32xf32>
    %144 = math.tanh %143 : vector<8x32xf32>
    %145 = vector.extract_strided_slice %142 {offsets = [0, 32], sizes = [8, 32], strides = [1, 1]} : vector<8x96xf32> to vector<8x32xf32>
    %146 = arith.mulf %145, %89 : vector<8x32xf32>
    %147 = vector.extract_strided_slice %142 {offsets = [0, 0], sizes = [8, 32], strides = [1, 1]} : vector<8x96xf32> to vector<8x32xf32>
    %148 = arith.mulf %147, %144 : vector<8x32xf32>
    %149 = arith.addf %146, %148 : vector<8x32xf32>
    %150 = vector.extract_strided_slice %142 {offsets = [0, 64], sizes = [8, 32], strides = [1, 1]} : vector<8x96xf32> to vector<8x32xf32>
    %151 = math.tanh %149 : vector<8x32xf32>
    %152 = arith.mulf %150, %151 : vector<8x32xf32>
    %c8 = arith.constant 8 : index
    %c0_43 = arith.constant 0 : index
    %153 = vector.load %arg15[%c8, %c0_43] : memref<64x32xf32, #tpu.memory_space<vmem>>, vector<8x32xf32>
    tpu.vector_store %arg15[%c8, %c0_43], %152 {strides = array<i32>} : memref<64x32xf32, #tpu.memory_space<vmem>>, vector<8x32xf32>,
    %154 = vector.extract_strided_slice %21 {offsets = [16, 0], sizes = [8, 128], strides = [1, 1]} : vector<64x128xf32> to vector<8x128xf32>
    %cst_44 = arith.constant dense<0.000000e+00> : vector<8x128xf32>
    %155 = tpu.matmul %112, %22, %cst_44 {dimension_numbers = #tpu.dot_dimension_numbers<[1], [0], [0], [1], [0, 0, 1, 1], [], []>} : vector<8x32xf32>, vector<32x128xf32>, vector<8x128xf32> -> vector<8x128xf32>
    %156 = arith.addf %154, %155 : vector<8x128xf32>
    %157 = vector.extract_strided_slice %156 {offsets = [0, 0], sizes = [8, 96], strides = [1, 1]} : vector<8x128xf32> to vector<8x96xf32>
    %158 = arith.negf %157 : vector<8x96xf32>
    %159 = math.exp %158 : vector<8x96xf32>
    %cst_45 = arith.constant 1.000000e+00 : f32
    %160 = vector.broadcast %cst_45 : f32 to vector<8x96xf32>
    %161 = arith.addf %160, %159 : vector<8x96xf32>
    %162 = arith.divf %160, %161 : vector<8x96xf32>
    %163 = vector.extract_strided_slice %156 {offsets = [0, 96], sizes = [8, 32], strides = [1, 1]} : vector<8x128xf32> to vector<8x32xf32>
    %164 = math.tanh %163 : vector<8x32xf32>
    %165 = vector.extract_strided_slice %162 {offsets = [0, 32], sizes = [8, 32], strides = [1, 1]} : vector<8x96xf32> to vector<8x32xf32>
    %166 = arith.mulf %165, %109 : vector<8x32xf32>
    %167 = vector.extract_strided_slice %162 {offsets = [0, 0], sizes = [8, 32], strides = [1, 1]} : vector<8x96xf32> to vector<8x32xf32>
    %168 = arith.mulf %167, %164 : vector<8x32xf32>
    %169 = arith.addf %166, %168 : vector<8x32xf32>
    %170 = vector.extract_strided_slice %162 {offsets = [0, 64], sizes = [8, 32], strides = [1, 1]} : vector<8x96xf32> to vector<8x32xf32>
    %171 = math.tanh %169 : vector<8x32xf32>
    %172 = arith.mulf %170, %171 : vector<8x32xf32>
    %cst_46 = arith.constant dense<0.000000e+00> : vector<8x128xf32>
    %173 = tpu.matmul %172, %23, %cst_46 {dimension_numbers = #tpu.dot_dimension_numbers<[1], [0], [0], [1], [0, 0, 1, 1], [], []>} : vector<8x32xf32>, vector<32x128xf32>, vector<8x128xf32> -> vector<8x128xf32>
    %cst_47 = arith.constant dense<0.000000e+00> : vector<8x128xf32>
    %174 = tpu.matmul %132, %24, %cst_47 {dimension_numbers = #tpu.dot_dimension_numbers<[1], [0], [0], [1], [0, 0, 1, 1], [], []>} : vector<8x32xf32>, vector<32x128xf32>, vector<8x128xf32> -> vector<8x128xf32>
    %175 = arith.addf %173, %174 : vector<8x128xf32>
    %176 = arith.addf %175, %29 : vector<8x128xf32>
    %177 = vector.extract_strided_slice %176 {offsets = [0, 0], sizes = [8, 96], strides = [1, 1]} : vector<8x128xf32> to vector<8x96xf32>
    %178 = arith.negf %177 : vector<8x96xf32>
    %179 = math.exp %178 : vector<8x96xf32>
    %cst_48 = arith.constant 1.000000e+00 : f32
    %180 = vector.broadcast %cst_48 : f32 to vector<8x96xf32>
    %181 = arith.addf %180, %179 : vector<8x96xf32>
    %182 = arith.divf %180, %181 : vector<8x96xf32>
    %183 = vector.extract_strided_slice %176 {offsets = [0, 96], sizes = [8, 32], strides = [1, 1]} : vector<8x128xf32> to vector<8x32xf32>
    %184 = math.tanh %183 : vector<8x32xf32>
    %185 = vector.extract_strided_slice %182 {offsets = [0, 32], sizes = [8, 32], strides = [1, 1]} : vector<8x96xf32> to vector<8x32xf32>
    %186 = arith.mulf %185, %129 : vector<8x32xf32>
    %187 = vector.extract_strided_slice %182 {offsets = [0, 0], sizes = [8, 32], strides = [1, 1]} : vector<8x96xf32> to vector<8x32xf32>
    %188 = arith.mulf %187, %184 : vector<8x32xf32>
    %189 = arith.addf %186, %188 : vector<8x32xf32>
    %190 = vector.extract_strided_slice %182 {offsets = [0, 64], sizes = [8, 32], strides = [1, 1]} : vector<8x96xf32> to vector<8x32xf32>
    %191 = math.tanh %189 : vector<8x32xf32>
    %192 = arith.mulf %190, %191 : vector<8x32xf32>
    %cst_49 = arith.constant dense<0.000000e+00> : vector<8x128xf32>
    %193 = tpu.matmul %192, %25, %cst_49 {dimension_numbers = #tpu.dot_dimension_numbers<[1], [0], [0], [1], [0, 0, 1, 1], [], []>} : vector<8x32xf32>, vector<32x128xf32>, vector<8x128xf32> -> vector<8x128xf32>
    %cst_50 = arith.constant dense<0.000000e+00> : vector<8x128xf32>
    %194 = tpu.matmul %152, %26, %cst_50 {dimension_numbers = #tpu.dot_dimension_numbers<[1], [0], [0], [1], [0, 0, 1, 1], [], []>} : vector<8x32xf32>, vector<32x128xf32>, vector<8x128xf32> -> vector<8x128xf32>
    %195 = arith.addf %193, %194 : vector<8x128xf32>
    %196 = arith.addf %195, %32 : vector<8x128xf32>
    %197 = vector.extract_strided_slice %196 {offsets = [0, 0], sizes = [8, 96], strides = [1, 1]} : vector<8x128xf32> to vector<8x96xf32>
    %198 = arith.negf %197 : vector<8x96xf32>
    %199 = math.exp %198 : vector<8x96xf32>
    %cst_51 = arith.constant 1.000000e+00 : f32
    %200 = vector.broadcast %cst_51 : f32 to vector<8x96xf32>
    %201 = arith.addf %200, %199 : vector<8x96xf32>
    %202 = arith.divf %200, %201 : vector<8x96xf32>
    %203 = vector.extract_strided_slice %196 {offsets = [0, 96], sizes = [8, 32], strides = [1, 1]} : vector<8x128xf32> to vector<8x32xf32>
    %204 = math.tanh %203 : vector<8x32xf32>
    %205 = vector.extract_strided_slice %202 {offsets = [0, 32], sizes = [8, 32], strides = [1, 1]} : vector<8x96xf32> to vector<8x32xf32>
    %206 = arith.mulf %205, %149 : vector<8x32xf32>
    %207 = vector.extract_strided_slice %202 {offsets = [0, 0], sizes = [8, 32], strides = [1, 1]} : vector<8x96xf32> to vector<8x32xf32>
    %208 = arith.mulf %207, %204 : vector<8x32xf32>
    %209 = arith.addf %206, %208 : vector<8x32xf32>
    %210 = vector.extract_strided_slice %202 {offsets = [0, 64], sizes = [8, 32], strides = [1, 1]} : vector<8x96xf32> to vector<8x32xf32>
    %211 = math.tanh %209 : vector<8x32xf32>
    %212 = arith.mulf %210, %211 : vector<8x32xf32>
    %c16 = arith.constant 16 : index
    %c0_52 = arith.constant 0 : index
    %213 = vector.load %arg15[%c16, %c0_52] : memref<64x32xf32, #tpu.memory_space<vmem>>, vector<8x32xf32>
    tpu.vector_store %arg15[%c16, %c0_52], %212 {strides = array<i32>} : memref<64x32xf32, #tpu.memory_space<vmem>>, vector<8x32xf32>,
    %214 = vector.extract_strided_slice %21 {offsets = [24, 0], sizes = [8, 128], strides = [1, 1]} : vector<64x128xf32> to vector<8x128xf32>
    %cst_53 = arith.constant dense<0.000000e+00> : vector<8x128xf32>
    %215 = tpu.matmul %172, %22, %cst_53 {dimension_numbers = #tpu.dot_dimension_numbers<[1], [0], [0], [1], [0, 0, 1, 1], [], []>} : vector<8x32xf32>, vector<32x128xf32>, vector<8x128xf32> -> vector<8x128xf32>
    %216 = arith.addf %214, %215 : vector<8x128xf32>
    %217 = vector.extract_strided_slice %216 {offsets = [0, 0], sizes = [8, 96], strides = [1, 1]} : vector<8x128xf32> to vector<8x96xf32>
    %218 = arith.negf %217 : vector<8x96xf32>
    %219 = math.exp %218 : vector<8x96xf32>
    %cst_54 = arith.constant 1.000000e+00 : f32
    %220 = vector.broadcast %cst_54 : f32 to vector<8x96xf32>
    %221 = arith.addf %220, %219 : vector<8x96xf32>
    %222 = arith.divf %220, %221 : vector<8x96xf32>
    %223 = vector.extract_strided_slice %216 {offsets = [0, 96], sizes = [8, 32], strides = [1, 1]} : vector<8x128xf32> to vector<8x32xf32>
    %224 = math.tanh %223 : vector<8x32xf32>
    %225 = vector.extract_strided_slice %222 {offsets = [0, 32], sizes = [8, 32], strides = [1, 1]} : vector<8x96xf32> to vector<8x32xf32>
    %226 = arith.mulf %225, %169 : vector<8x32xf32>
    %227 = vector.extract_strided_slice %222 {offsets = [0, 0], sizes = [8, 32], strides = [1, 1]} : vector<8x96xf32> to vector<8x32xf32>
    %228 = arith.mulf %227, %224 : vector<8x32xf32>
    %229 = arith.addf %226, %228 : vector<8x32xf32>
    %230 = vector.extract_strided_slice %222 {offsets = [0, 64], sizes = [8, 32], strides = [1, 1]} : vector<8x96xf32> to vector<8x32xf32>
    %231 = math.tanh %229 : vector<8x32xf32>
    %232 = arith.mulf %230, %231 : vector<8x32xf32>
    %cst_55 = arith.constant dense<0.000000e+00> : vector<8x128xf32>
    %233 = tpu.matmul %232, %23, %cst_55 {dimension_numbers = #tpu.dot_dimension_numbers<[1], [0], [0], [1], [0, 0, 1, 1], [], []>} : vector<8x32xf32>, vector<32x128xf32>, vector<8x128xf32> -> vector<8x128xf32>
    %cst_56 = arith.constant dense<0.000000e+00> : vector<8x128xf32>
    %234 = tpu.matmul %192, %24, %cst_56 {dimension_numbers = #tpu.dot_dimension_numbers<[1], [0], [0], [1], [0, 0, 1, 1], [], []>} : vector<8x32xf32>, vector<32x128xf32>, vector<8x128xf32> -> vector<8x128xf32>
    %235 = arith.addf %233, %234 : vector<8x128xf32>
    %236 = arith.addf %235, %29 : vector<8x128xf32>
    %237 = vector.extract_strided_slice %236 {offsets = [0, 0], sizes = [8, 96], strides = [1, 1]} : vector<8x128xf32> to vector<8x96xf32>
    %238 = arith.negf %237 : vector<8x96xf32>
    %239 = math.exp %238 : vector<8x96xf32>
    %cst_57 = arith.constant 1.000000e+00 : f32
    %240 = vector.broadcast %cst_57 : f32 to vector<8x96xf32>
    %241 = arith.addf %240, %239 : vector<8x96xf32>
    %242 = arith.divf %240, %241 : vector<8x96xf32>
    %243 = vector.extract_strided_slice %236 {offsets = [0, 96], sizes = [8, 32], strides = [1, 1]} : vector<8x128xf32> to vector<8x32xf32>
    %244 = math.tanh %243 : vector<8x32xf32>
    %245 = vector.extract_strided_slice %242 {offsets = [0, 32], sizes = [8, 32], strides = [1, 1]} : vector<8x96xf32> to vector<8x32xf32>
    %246 = arith.mulf %245, %189 : vector<8x32xf32>
    %247 = vector.extract_strided_slice %242 {offsets = [0, 0], sizes = [8, 32], strides = [1, 1]} : vector<8x96xf32> to vector<8x32xf32>
    %248 = arith.mulf %247, %244 : vector<8x32xf32>
    %249 = arith.addf %246, %248 : vector<8x32xf32>
    %250 = vector.extract_strided_slice %242 {offsets = [0, 64], sizes = [8, 32], strides = [1, 1]} : vector<8x96xf32> to vector<8x32xf32>
    %251 = math.tanh %249 : vector<8x32xf32>
    %252 = arith.mulf %250, %251 : vector<8x32xf32>
    %cst_58 = arith.constant dense<0.000000e+00> : vector<8x128xf32>
    %253 = tpu.matmul %252, %25, %cst_58 {dimension_numbers = #tpu.dot_dimension_numbers<[1], [0], [0], [1], [0, 0, 1, 1], [], []>} : vector<8x32xf32>, vector<32x128xf32>, vector<8x128xf32> -> vector<8x128xf32>
    %cst_59 = arith.constant dense<0.000000e+00> : vector<8x128xf32>
    %254 = tpu.matmul %212, %26, %cst_59 {dimension_numbers = #tpu.dot_dimension_numbers<[1], [0], [0], [1], [0, 0, 1, 1], [], []>} : vector<8x32xf32>, vector<32x128xf32>, vector<8x128xf32> -> vector<8x128xf32>
    %255 = arith.addf %253, %254 : vector<8x128xf32>
    %256 = arith.addf %255, %32 : vector<8x128xf32>
    %257 = vector.extract_strided_slice %256 {offsets = [0, 0], sizes = [8, 96], strides = [1, 1]} : vector<8x128xf32> to vector<8x96xf32>
    %258 = arith.negf %257 : vector<8x96xf32>
    %259 = math.exp %258 : vector<8x96xf32>
    %cst_60 = arith.constant 1.000000e+00 : f32
    %260 = vector.broadcast %cst_60 : f32 to vector<8x96xf32>
    %261 = arith.addf %260, %259 : vector<8x96xf32>
    %262 = arith.divf %260, %261 : vector<8x96xf32>
    %263 = vector.extract_strided_slice %256 {offsets = [0, 96], sizes = [8, 32], strides = [1, 1]} : vector<8x128xf32> to vector<8x32xf32>
    %264 = math.tanh %263 : vector<8x32xf32>
    %265 = vector.extract_strided_slice %262 {offsets = [0, 32], sizes = [8, 32], strides = [1, 1]} : vector<8x96xf32> to vector<8x32xf32>
    %266 = arith.mulf %265, %209 : vector<8x32xf32>
    %267 = vector.extract_strided_slice %262 {offsets = [0, 0], sizes = [8, 32], strides = [1, 1]} : vector<8x96xf32> to vector<8x32xf32>
    %268 = arith.mulf %267, %264 : vector<8x32xf32>
    %269 = arith.addf %266, %268 : vector<8x32xf32>
    %270 = vector.extract_strided_slice %262 {offsets = [0, 64], sizes = [8, 32], strides = [1, 1]} : vector<8x96xf32> to vector<8x32xf32>
    %271 = math.tanh %269 : vector<8x32xf32>
    %272 = arith.mulf %270, %271 : vector<8x32xf32>
    %c24 = arith.constant 24 : index
    %c0_61 = arith.constant 0 : index
    %273 = vector.load %arg15[%c24, %c0_61] : memref<64x32xf32, #tpu.memory_space<vmem>>, vector<8x32xf32>
    tpu.vector_store %arg15[%c24, %c0_61], %272 {strides = array<i32>} : memref<64x32xf32, #tpu.memory_space<vmem>>, vector<8x32xf32>,
    %274 = vector.extract_strided_slice %21 {offsets = [32, 0], sizes = [8, 128], strides = [1, 1]} : vector<64x128xf32> to vector<8x128xf32>
    %cst_62 = arith.constant dense<0.000000e+00> : vector<8x128xf32>
    %275 = tpu.matmul %232, %22, %cst_62 {dimension_numbers = #tpu.dot_dimension_numbers<[1], [0], [0], [1], [0, 0, 1, 1], [], []>} : vector<8x32xf32>, vector<32x128xf32>, vector<8x128xf32> -> vector<8x128xf32>
    %276 = arith.addf %274, %275 : vector<8x128xf32>
    %277 = vector.extract_strided_slice %276 {offsets = [0, 0], sizes = [8, 96], strides = [1, 1]} : vector<8x128xf32> to vector<8x96xf32>
    %278 = arith.negf %277 : vector<8x96xf32>
    %279 = math.exp %278 : vector<8x96xf32>
    %cst_63 = arith.constant 1.000000e+00 : f32
    %280 = vector.broadcast %cst_63 : f32 to vector<8x96xf32>
    %281 = arith.addf %280, %279 : vector<8x96xf32>
    %282 = arith.divf %280, %281 : vector<8x96xf32>
    %283 = vector.extract_strided_slice %276 {offsets = [0, 96], sizes = [8, 32], strides = [1, 1]} : vector<8x128xf32> to vector<8x32xf32>
    %284 = math.tanh %283 : vector<8x32xf32>
    %285 = vector.extract_strided_slice %282 {offsets = [0, 32], sizes = [8, 32], strides = [1, 1]} : vector<8x96xf32> to vector<8x32xf32>
    %286 = arith.mulf %285, %229 : vector<8x32xf32>
    %287 = vector.extract_strided_slice %282 {offsets = [0, 0], sizes = [8, 32], strides = [1, 1]} : vector<8x96xf32> to vector<8x32xf32>
    %288 = arith.mulf %287, %284 : vector<8x32xf32>
    %289 = arith.addf %286, %288 : vector<8x32xf32>
    %290 = vector.extract_strided_slice %282 {offsets = [0, 64], sizes = [8, 32], strides = [1, 1]} : vector<8x96xf32> to vector<8x32xf32>
    %291 = math.tanh %289 : vector<8x32xf32>
    %292 = arith.mulf %290, %291 : vector<8x32xf32>
    %cst_64 = arith.constant dense<0.000000e+00> : vector<8x128xf32>
    %293 = tpu.matmul %292, %23, %cst_64 {dimension_numbers = #tpu.dot_dimension_numbers<[1], [0], [0], [1], [0, 0, 1, 1], [], []>} : vector<8x32xf32>, vector<32x128xf32>, vector<8x128xf32> -> vector<8x128xf32>
    %cst_65 = arith.constant dense<0.000000e+00> : vector<8x128xf32>
    %294 = tpu.matmul %252, %24, %cst_65 {dimension_numbers = #tpu.dot_dimension_numbers<[1], [0], [0], [1], [0, 0, 1, 1], [], []>} : vector<8x32xf32>, vector<32x128xf32>, vector<8x128xf32> -> vector<8x128xf32>
    %295 = arith.addf %293, %294 : vector<8x128xf32>
    %296 = arith.addf %295, %29 : vector<8x128xf32>
    %297 = vector.extract_strided_slice %296 {offsets = [0, 0], sizes = [8, 96], strides = [1, 1]} : vector<8x128xf32> to vector<8x96xf32>
    %298 = arith.negf %297 : vector<8x96xf32>
    %299 = math.exp %298 : vector<8x96xf32>
    %cst_66 = arith.constant 1.000000e+00 : f32
    %300 = vector.broadcast %cst_66 : f32 to vector<8x96xf32>
    %301 = arith.addf %300, %299 : vector<8x96xf32>
    %302 = arith.divf %300, %301 : vector<8x96xf32>
    %303 = vector.extract_strided_slice %296 {offsets = [0, 96], sizes = [8, 32], strides = [1, 1]} : vector<8x128xf32> to vector<8x32xf32>
    %304 = math.tanh %303 : vector<8x32xf32>
    %305 = vector.extract_strided_slice %302 {offsets = [0, 32], sizes = [8, 32], strides = [1, 1]} : vector<8x96xf32> to vector<8x32xf32>
    %306 = arith.mulf %305, %249 : vector<8x32xf32>
    %307 = vector.extract_strided_slice %302 {offsets = [0, 0], sizes = [8, 32], strides = [1, 1]} : vector<8x96xf32> to vector<8x32xf32>
    %308 = arith.mulf %307, %304 : vector<8x32xf32>
    %309 = arith.addf %306, %308 : vector<8x32xf32>
    %310 = vector.extract_strided_slice %302 {offsets = [0, 64], sizes = [8, 32], strides = [1, 1]} : vector<8x96xf32> to vector<8x32xf32>
    %311 = math.tanh %309 : vector<8x32xf32>
    %312 = arith.mulf %310, %311 : vector<8x32xf32>
    %cst_67 = arith.constant dense<0.000000e+00> : vector<8x128xf32>
    %313 = tpu.matmul %312, %25, %cst_67 {dimension_numbers = #tpu.dot_dimension_numbers<[1], [0], [0], [1], [0, 0, 1, 1], [], []>} : vector<8x32xf32>, vector<32x128xf32>, vector<8x128xf32> -> vector<8x128xf32>
    %cst_68 = arith.constant dense<0.000000e+00> : vector<8x128xf32>
    %314 = tpu.matmul %272, %26, %cst_68 {dimension_numbers = #tpu.dot_dimension_numbers<[1], [0], [0], [1], [0, 0, 1, 1], [], []>} : vector<8x32xf32>, vector<32x128xf32>, vector<8x128xf32> -> vector<8x128xf32>
    %315 = arith.addf %313, %314 : vector<8x128xf32>
    %316 = arith.addf %315, %32 : vector<8x128xf32>
    %317 = vector.extract_strided_slice %316 {offsets = [0, 0], sizes = [8, 96], strides = [1, 1]} : vector<8x128xf32> to vector<8x96xf32>
    %318 = arith.negf %317 : vector<8x96xf32>
    %319 = math.exp %318 : vector<8x96xf32>
    %cst_69 = arith.constant 1.000000e+00 : f32
    %320 = vector.broadcast %cst_69 : f32 to vector<8x96xf32>
    %321 = arith.addf %320, %319 : vector<8x96xf32>
    %322 = arith.divf %320, %321 : vector<8x96xf32>
    %323 = vector.extract_strided_slice %316 {offsets = [0, 96], sizes = [8, 32], strides = [1, 1]} : vector<8x128xf32> to vector<8x32xf32>
    %324 = math.tanh %323 : vector<8x32xf32>
    %325 = vector.extract_strided_slice %322 {offsets = [0, 32], sizes = [8, 32], strides = [1, 1]} : vector<8x96xf32> to vector<8x32xf32>
    %326 = arith.mulf %325, %269 : vector<8x32xf32>
    %327 = vector.extract_strided_slice %322 {offsets = [0, 0], sizes = [8, 32], strides = [1, 1]} : vector<8x96xf32> to vector<8x32xf32>
    %328 = arith.mulf %327, %324 : vector<8x32xf32>
    %329 = arith.addf %326, %328 : vector<8x32xf32>
    %330 = vector.extract_strided_slice %322 {offsets = [0, 64], sizes = [8, 32], strides = [1, 1]} : vector<8x96xf32> to vector<8x32xf32>
    %331 = math.tanh %329 : vector<8x32xf32>
    %332 = arith.mulf %330, %331 : vector<8x32xf32>
    %c32 = arith.constant 32 : index
    %c0_70 = arith.constant 0 : index
    %333 = vector.load %arg15[%c32, %c0_70] : memref<64x32xf32, #tpu.memory_space<vmem>>, vector<8x32xf32>
    tpu.vector_store %arg15[%c32, %c0_70], %332 {strides = array<i32>} : memref<64x32xf32, #tpu.memory_space<vmem>>, vector<8x32xf32>,
    %334 = vector.extract_strided_slice %21 {offsets = [40, 0], sizes = [8, 128], strides = [1, 1]} : vector<64x128xf32> to vector<8x128xf32>
    %cst_71 = arith.constant dense<0.000000e+00> : vector<8x128xf32>
    %335 = tpu.matmul %292, %22, %cst_71 {dimension_numbers = #tpu.dot_dimension_numbers<[1], [0], [0], [1], [0, 0, 1, 1], [], []>} : vector<8x32xf32>, vector<32x128xf32>, vector<8x128xf32> -> vector<8x128xf32>
    %336 = arith.addf %334, %335 : vector<8x128xf32>
    %337 = vector.extract_strided_slice %336 {offsets = [0, 0], sizes = [8, 96], strides = [1, 1]} : vector<8x128xf32> to vector<8x96xf32>
    %338 = arith.negf %337 : vector<8x96xf32>
    %339 = math.exp %338 : vector<8x96xf32>
    %cst_72 = arith.constant 1.000000e+00 : f32
    %340 = vector.broadcast %cst_72 : f32 to vector<8x96xf32>
    %341 = arith.addf %340, %339 : vector<8x96xf32>
    %342 = arith.divf %340, %341 : vector<8x96xf32>
    %343 = vector.extract_strided_slice %336 {offsets = [0, 96], sizes = [8, 32], strides = [1, 1]} : vector<8x128xf32> to vector<8x32xf32>
    %344 = math.tanh %343 : vector<8x32xf32>
    %345 = vector.extract_strided_slice %342 {offsets = [0, 32], sizes = [8, 32], strides = [1, 1]} : vector<8x96xf32> to vector<8x32xf32>
    %346 = arith.mulf %345, %289 : vector<8x32xf32>
    %347 = vector.extract_strided_slice %342 {offsets = [0, 0], sizes = [8, 32], strides = [1, 1]} : vector<8x96xf32> to vector<8x32xf32>
    %348 = arith.mulf %347, %344 : vector<8x32xf32>
    %349 = arith.addf %346, %348 : vector<8x32xf32>
    %350 = vector.extract_strided_slice %342 {offsets = [0, 64], sizes = [8, 32], strides = [1, 1]} : vector<8x96xf32> to vector<8x32xf32>
    %351 = math.tanh %349 : vector<8x32xf32>
    %352 = arith.mulf %350, %351 : vector<8x32xf32>
    %cst_73 = arith.constant dense<0.000000e+00> : vector<8x128xf32>
    %353 = tpu.matmul %352, %23, %cst_73 {dimension_numbers = #tpu.dot_dimension_numbers<[1], [0], [0], [1], [0, 0, 1, 1], [], []>} : vector<8x32xf32>, vector<32x128xf32>, vector<8x128xf32> -> vector<8x128xf32>
    %cst_74 = arith.constant dense<0.000000e+00> : vector<8x128xf32>
    %354 = tpu.matmul %312, %24, %cst_74 {dimension_numbers = #tpu.dot_dimension_numbers<[1], [0], [0], [1], [0, 0, 1, 1], [], []>} : vector<8x32xf32>, vector<32x128xf32>, vector<8x128xf32> -> vector<8x128xf32>
    %355 = arith.addf %353, %354 : vector<8x128xf32>
    %356 = arith.addf %355, %29 : vector<8x128xf32>
    %357 = vector.extract_strided_slice %356 {offsets = [0, 0], sizes = [8, 96], strides = [1, 1]} : vector<8x128xf32> to vector<8x96xf32>
    %358 = arith.negf %357 : vector<8x96xf32>
    %359 = math.exp %358 : vector<8x96xf32>
    %cst_75 = arith.constant 1.000000e+00 : f32
    %360 = vector.broadcast %cst_75 : f32 to vector<8x96xf32>
    %361 = arith.addf %360, %359 : vector<8x96xf32>
    %362 = arith.divf %360, %361 : vector<8x96xf32>
    %363 = vector.extract_strided_slice %356 {offsets = [0, 96], sizes = [8, 32], strides = [1, 1]} : vector<8x128xf32> to vector<8x32xf32>
    %364 = math.tanh %363 : vector<8x32xf32>
    %365 = vector.extract_strided_slice %362 {offsets = [0, 32], sizes = [8, 32], strides = [1, 1]} : vector<8x96xf32> to vector<8x32xf32>
    %366 = arith.mulf %365, %309 : vector<8x32xf32>
    %367 = vector.extract_strided_slice %362 {offsets = [0, 0], sizes = [8, 32], strides = [1, 1]} : vector<8x96xf32> to vector<8x32xf32>
    %368 = arith.mulf %367, %364 : vector<8x32xf32>
    %369 = arith.addf %366, %368 : vector<8x32xf32>
    %370 = vector.extract_strided_slice %362 {offsets = [0, 64], sizes = [8, 32], strides = [1, 1]} : vector<8x96xf32> to vector<8x32xf32>
    %371 = math.tanh %369 : vector<8x32xf32>
    %372 = arith.mulf %370, %371 : vector<8x32xf32>
    %cst_76 = arith.constant dense<0.000000e+00> : vector<8x128xf32>
    %373 = tpu.matmul %372, %25, %cst_76 {dimension_numbers = #tpu.dot_dimension_numbers<[1], [0], [0], [1], [0, 0, 1, 1], [], []>} : vector<8x32xf32>, vector<32x128xf32>, vector<8x128xf32> -> vector<8x128xf32>
    %cst_77 = arith.constant dense<0.000000e+00> : vector<8x128xf32>
    %374 = tpu.matmul %332, %26, %cst_77 {dimension_numbers = #tpu.dot_dimension_numbers<[1], [0], [0], [1], [0, 0, 1, 1], [], []>} : vector<8x32xf32>, vector<32x128xf32>, vector<8x128xf32> -> vector<8x128xf32>
    %375 = arith.addf %373, %374 : vector<8x128xf32>
    %376 = arith.addf %375, %32 : vector<8x128xf32>
    %377 = vector.extract_strided_slice %376 {offsets = [0, 0], sizes = [8, 96], strides = [1, 1]} : vector<8x128xf32> to vector<8x96xf32>
    %378 = arith.negf %377 : vector<8x96xf32>
    %379 = math.exp %378 : vector<8x96xf32>
    %cst_78 = arith.constant 1.000000e+00 : f32
    %380 = vector.broadcast %cst_78 : f32 to vector<8x96xf32>
    %381 = arith.addf %380, %379 : vector<8x96xf32>
    %382 = arith.divf %380, %381 : vector<8x96xf32>
    %383 = vector.extract_strided_slice %376 {offsets = [0, 96], sizes = [8, 32], strides = [1, 1]} : vector<8x128xf32> to vector<8x32xf32>
    %384 = math.tanh %383 : vector<8x32xf32>
    %385 = vector.extract_strided_slice %382 {offsets = [0, 32], sizes = [8, 32], strides = [1, 1]} : vector<8x96xf32> to vector<8x32xf32>
    %386 = arith.mulf %385, %329 : vector<8x32xf32>
    %387 = vector.extract_strided_slice %382 {offsets = [0, 0], sizes = [8, 32], strides = [1, 1]} : vector<8x96xf32> to vector<8x32xf32>
    %388 = arith.mulf %387, %384 : vector<8x32xf32>
    %389 = arith.addf %386, %388 : vector<8x32xf32>
    %390 = vector.extract_strided_slice %382 {offsets = [0, 64], sizes = [8, 32], strides = [1, 1]} : vector<8x96xf32> to vector<8x32xf32>
    %391 = math.tanh %389 : vector<8x32xf32>
    %392 = arith.mulf %390, %391 : vector<8x32xf32>
    %c40 = arith.constant 40 : index
    %c0_79 = arith.constant 0 : index
    %393 = vector.load %arg15[%c40, %c0_79] : memref<64x32xf32, #tpu.memory_space<vmem>>, vector<8x32xf32>
    tpu.vector_store %arg15[%c40, %c0_79], %392 {strides = array<i32>} : memref<64x32xf32, #tpu.memory_space<vmem>>, vector<8x32xf32>,
    %394 = vector.extract_strided_slice %21 {offsets = [48, 0], sizes = [8, 128], strides = [1, 1]} : vector<64x128xf32> to vector<8x128xf32>
    %cst_80 = arith.constant dense<0.000000e+00> : vector<8x128xf32>
    %395 = tpu.matmul %352, %22, %cst_80 {dimension_numbers = #tpu.dot_dimension_numbers<[1], [0], [0], [1], [0, 0, 1, 1], [], []>} : vector<8x32xf32>, vector<32x128xf32>, vector<8x128xf32> -> vector<8x128xf32>
    %396 = arith.addf %394, %395 : vector<8x128xf32>
    %397 = vector.extract_strided_slice %396 {offsets = [0, 0], sizes = [8, 96], strides = [1, 1]} : vector<8x128xf32> to vector<8x96xf32>
    %398 = arith.negf %397 : vector<8x96xf32>
    %399 = math.exp %398 : vector<8x96xf32>
    %cst_81 = arith.constant 1.000000e+00 : f32
    %400 = vector.broadcast %cst_81 : f32 to vector<8x96xf32>
    %401 = arith.addf %400, %399 : vector<8x96xf32>
    %402 = arith.divf %400, %401 : vector<8x96xf32>
    %403 = vector.extract_strided_slice %396 {offsets = [0, 96], sizes = [8, 32], strides = [1, 1]} : vector<8x128xf32> to vector<8x32xf32>
    %404 = math.tanh %403 : vector<8x32xf32>
    %405 = vector.extract_strided_slice %402 {offsets = [0, 32], sizes = [8, 32], strides = [1, 1]} : vector<8x96xf32> to vector<8x32xf32>
    %406 = arith.mulf %405, %349 : vector<8x32xf32>
    %407 = vector.extract_strided_slice %402 {offsets = [0, 0], sizes = [8, 32], strides = [1, 1]} : vector<8x96xf32> to vector<8x32xf32>
    %408 = arith.mulf %407, %404 : vector<8x32xf32>
    %409 = arith.addf %406, %408 : vector<8x32xf32>
    %410 = vector.extract_strided_slice %402 {offsets = [0, 64], sizes = [8, 32], strides = [1, 1]} : vector<8x96xf32> to vector<8x32xf32>
    %411 = math.tanh %409 : vector<8x32xf32>
    %412 = arith.mulf %410, %411 : vector<8x32xf32>
    %cst_82 = arith.constant dense<0.000000e+00> : vector<8x128xf32>
    %413 = tpu.matmul %412, %23, %cst_82 {dimension_numbers = #tpu.dot_dimension_numbers<[1], [0], [0], [1], [0, 0, 1, 1], [], []>} : vector<8x32xf32>, vector<32x128xf32>, vector<8x128xf32> -> vector<8x128xf32>
    %cst_83 = arith.constant dense<0.000000e+00> : vector<8x128xf32>
    %414 = tpu.matmul %372, %24, %cst_83 {dimension_numbers = #tpu.dot_dimension_numbers<[1], [0], [0], [1], [0, 0, 1, 1], [], []>} : vector<8x32xf32>, vector<32x128xf32>, vector<8x128xf32> -> vector<8x128xf32>
    %415 = arith.addf %413, %414 : vector<8x128xf32>
    %416 = arith.addf %415, %29 : vector<8x128xf32>
    %417 = vector.extract_strided_slice %416 {offsets = [0, 0], sizes = [8, 96], strides = [1, 1]} : vector<8x128xf32> to vector<8x96xf32>
    %418 = arith.negf %417 : vector<8x96xf32>
    %419 = math.exp %418 : vector<8x96xf32>
    %cst_84 = arith.constant 1.000000e+00 : f32
    %420 = vector.broadcast %cst_84 : f32 to vector<8x96xf32>
    %421 = arith.addf %420, %419 : vector<8x96xf32>
    %422 = arith.divf %420, %421 : vector<8x96xf32>
    %423 = vector.extract_strided_slice %416 {offsets = [0, 96], sizes = [8, 32], strides = [1, 1]} : vector<8x128xf32> to vector<8x32xf32>
    %424 = math.tanh %423 : vector<8x32xf32>
    %425 = vector.extract_strided_slice %422 {offsets = [0, 32], sizes = [8, 32], strides = [1, 1]} : vector<8x96xf32> to vector<8x32xf32>
    %426 = arith.mulf %425, %369 : vector<8x32xf32>
    %427 = vector.extract_strided_slice %422 {offsets = [0, 0], sizes = [8, 32], strides = [1, 1]} : vector<8x96xf32> to vector<8x32xf32>
    %428 = arith.mulf %427, %424 : vector<8x32xf32>
    %429 = arith.addf %426, %428 : vector<8x32xf32>
    %430 = vector.extract_strided_slice %422 {offsets = [0, 64], sizes = [8, 32], strides = [1, 1]} : vector<8x96xf32> to vector<8x32xf32>
    %431 = math.tanh %429 : vector<8x32xf32>
    %432 = arith.mulf %430, %431 : vector<8x32xf32>
    %cst_85 = arith.constant dense<0.000000e+00> : vector<8x128xf32>
    %433 = tpu.matmul %432, %25, %cst_85 {dimension_numbers = #tpu.dot_dimension_numbers<[1], [0], [0], [1], [0, 0, 1, 1], [], []>} : vector<8x32xf32>, vector<32x128xf32>, vector<8x128xf32> -> vector<8x128xf32>
    %cst_86 = arith.constant dense<0.000000e+00> : vector<8x128xf32>
    %434 = tpu.matmul %392, %26, %cst_86 {dimension_numbers = #tpu.dot_dimension_numbers<[1], [0], [0], [1], [0, 0, 1, 1], [], []>} : vector<8x32xf32>, vector<32x128xf32>, vector<8x128xf32> -> vector<8x128xf32>
    %435 = arith.addf %433, %434 : vector<8x128xf32>
    %436 = arith.addf %435, %32 : vector<8x128xf32>
    %437 = vector.extract_strided_slice %436 {offsets = [0, 0], sizes = [8, 96], strides = [1, 1]} : vector<8x128xf32> to vector<8x96xf32>
    %438 = arith.negf %437 : vector<8x96xf32>
    %439 = math.exp %438 : vector<8x96xf32>
    %cst_87 = arith.constant 1.000000e+00 : f32
    %440 = vector.broadcast %cst_87 : f32 to vector<8x96xf32>
    %441 = arith.addf %440, %439 : vector<8x96xf32>
    %442 = arith.divf %440, %441 : vector<8x96xf32>
    %443 = vector.extract_strided_slice %436 {offsets = [0, 96], sizes = [8, 32], strides = [1, 1]} : vector<8x128xf32> to vector<8x32xf32>
    %444 = math.tanh %443 : vector<8x32xf32>
    %445 = vector.extract_strided_slice %442 {offsets = [0, 32], sizes = [8, 32], strides = [1, 1]} : vector<8x96xf32> to vector<8x32xf32>
    %446 = arith.mulf %445, %389 : vector<8x32xf32>
    %447 = vector.extract_strided_slice %442 {offsets = [0, 0], sizes = [8, 32], strides = [1, 1]} : vector<8x96xf32> to vector<8x32xf32>
    %448 = arith.mulf %447, %444 : vector<8x32xf32>
    %449 = arith.addf %446, %448 : vector<8x32xf32>
    %450 = vector.extract_strided_slice %442 {offsets = [0, 64], sizes = [8, 32], strides = [1, 1]} : vector<8x96xf32> to vector<8x32xf32>
    %451 = math.tanh %449 : vector<8x32xf32>
    %452 = arith.mulf %450, %451 : vector<8x32xf32>
    %c48 = arith.constant 48 : index
    %c0_88 = arith.constant 0 : index
    %453 = vector.load %arg15[%c48, %c0_88] : memref<64x32xf32, #tpu.memory_space<vmem>>, vector<8x32xf32>
    tpu.vector_store %arg15[%c48, %c0_88], %452 {strides = array<i32>} : memref<64x32xf32, #tpu.memory_space<vmem>>, vector<8x32xf32>,
    %454 = vector.extract_strided_slice %21 {offsets = [56, 0], sizes = [8, 128], strides = [1, 1]} : vector<64x128xf32> to vector<8x128xf32>
    %cst_89 = arith.constant dense<0.000000e+00> : vector<8x128xf32>
    %455 = tpu.matmul %412, %22, %cst_89 {dimension_numbers = #tpu.dot_dimension_numbers<[1], [0], [0], [1], [0, 0, 1, 1], [], []>} : vector<8x32xf32>, vector<32x128xf32>, vector<8x128xf32> -> vector<8x128xf32>
    %456 = arith.addf %454, %455 : vector<8x128xf32>
    %457 = vector.extract_strided_slice %456 {offsets = [0, 0], sizes = [8, 96], strides = [1, 1]} : vector<8x128xf32> to vector<8x96xf32>
    %458 = arith.negf %457 : vector<8x96xf32>
    %459 = math.exp %458 : vector<8x96xf32>
    %cst_90 = arith.constant 1.000000e+00 : f32
    %460 = vector.broadcast %cst_90 : f32 to vector<8x96xf32>
    %461 = arith.addf %460, %459 : vector<8x96xf32>
    %462 = arith.divf %460, %461 : vector<8x96xf32>
    %463 = vector.extract_strided_slice %456 {offsets = [0, 96], sizes = [8, 32], strides = [1, 1]} : vector<8x128xf32> to vector<8x32xf32>
    %464 = math.tanh %463 : vector<8x32xf32>
    %465 = vector.extract_strided_slice %462 {offsets = [0, 32], sizes = [8, 32], strides = [1, 1]} : vector<8x96xf32> to vector<8x32xf32>
    %466 = arith.mulf %465, %409 : vector<8x32xf32>
    %467 = vector.extract_strided_slice %462 {offsets = [0, 0], sizes = [8, 32], strides = [1, 1]} : vector<8x96xf32> to vector<8x32xf32>
    %468 = arith.mulf %467, %464 : vector<8x32xf32>
    %469 = arith.addf %466, %468 : vector<8x32xf32>
    %470 = vector.extract_strided_slice %462 {offsets = [0, 64], sizes = [8, 32], strides = [1, 1]} : vector<8x96xf32> to vector<8x32xf32>
    %471 = math.tanh %469 : vector<8x32xf32>
    %472 = arith.mulf %470, %471 : vector<8x32xf32>
    %cst_91 = arith.constant dense<0.000000e+00> : vector<8x128xf32>
    %473 = tpu.matmul %472, %23, %cst_91 {dimension_numbers = #tpu.dot_dimension_numbers<[1], [0], [0], [1], [0, 0, 1, 1], [], []>} : vector<8x32xf32>, vector<32x128xf32>, vector<8x128xf32> -> vector<8x128xf32>
    %cst_92 = arith.constant dense<0.000000e+00> : vector<8x128xf32>
    %474 = tpu.matmul %432, %24, %cst_92 {dimension_numbers = #tpu.dot_dimension_numbers<[1], [0], [0], [1], [0, 0, 1, 1], [], []>} : vector<8x32xf32>, vector<32x128xf32>, vector<8x128xf32> -> vector<8x128xf32>
    %475 = arith.addf %473, %474 : vector<8x128xf32>
    %476 = arith.addf %475, %29 : vector<8x128xf32>
    %477 = vector.extract_strided_slice %476 {offsets = [0, 0], sizes = [8, 96], strides = [1, 1]} : vector<8x128xf32> to vector<8x96xf32>
    %478 = arith.negf %477 : vector<8x96xf32>
    %479 = math.exp %478 : vector<8x96xf32>
    %cst_93 = arith.constant 1.000000e+00 : f32
    %480 = vector.broadcast %cst_93 : f32 to vector<8x96xf32>
    %481 = arith.addf %480, %479 : vector<8x96xf32>
    %482 = arith.divf %480, %481 : vector<8x96xf32>
    %483 = vector.extract_strided_slice %476 {offsets = [0, 96], sizes = [8, 32], strides = [1, 1]} : vector<8x128xf32> to vector<8x32xf32>
    %484 = math.tanh %483 : vector<8x32xf32>
    %485 = vector.extract_strided_slice %482 {offsets = [0, 32], sizes = [8, 32], strides = [1, 1]} : vector<8x96xf32> to vector<8x32xf32>
    %486 = arith.mulf %485, %429 : vector<8x32xf32>
    %487 = vector.extract_strided_slice %482 {offsets = [0, 0], sizes = [8, 32], strides = [1, 1]} : vector<8x96xf32> to vector<8x32xf32>
    %488 = arith.mulf %487, %484 : vector<8x32xf32>
    %489 = arith.addf %486, %488 : vector<8x32xf32>
    %490 = vector.extract_strided_slice %482 {offsets = [0, 64], sizes = [8, 32], strides = [1, 1]} : vector<8x96xf32> to vector<8x32xf32>
    %491 = math.tanh %489 : vector<8x32xf32>
    %492 = arith.mulf %490, %491 : vector<8x32xf32>
    %cst_94 = arith.constant dense<0.000000e+00> : vector<8x128xf32>
    %493 = tpu.matmul %492, %25, %cst_94 {dimension_numbers = #tpu.dot_dimension_numbers<[1], [0], [0], [1], [0, 0, 1, 1], [], []>} : vector<8x32xf32>, vector<32x128xf32>, vector<8x128xf32> -> vector<8x128xf32>
    %cst_95 = arith.constant dense<0.000000e+00> : vector<8x128xf32>
    %494 = tpu.matmul %452, %26, %cst_95 {dimension_numbers = #tpu.dot_dimension_numbers<[1], [0], [0], [1], [0, 0, 1, 1], [], []>} : vector<8x32xf32>, vector<32x128xf32>, vector<8x128xf32> -> vector<8x128xf32>
    %495 = arith.addf %493, %494 : vector<8x128xf32>
    %496 = arith.addf %495, %32 : vector<8x128xf32>
    %497 = vector.extract_strided_slice %496 {offsets = [0, 0], sizes = [8, 96], strides = [1, 1]} : vector<8x128xf32> to vector<8x96xf32>
    %498 = arith.negf %497 : vector<8x96xf32>
    %499 = math.exp %498 : vector<8x96xf32>
    %cst_96 = arith.constant 1.000000e+00 : f32
    %500 = vector.broadcast %cst_96 : f32 to vector<8x96xf32>
    %501 = arith.addf %500, %499 : vector<8x96xf32>
    %502 = arith.divf %500, %501 : vector<8x96xf32>
    %503 = vector.extract_strided_slice %496 {offsets = [0, 96], sizes = [8, 32], strides = [1, 1]} : vector<8x128xf32> to vector<8x32xf32>
    %504 = math.tanh %503 : vector<8x32xf32>
    %505 = vector.extract_strided_slice %502 {offsets = [0, 32], sizes = [8, 32], strides = [1, 1]} : vector<8x96xf32> to vector<8x32xf32>
    %506 = arith.mulf %505, %449 : vector<8x32xf32>
    %507 = vector.extract_strided_slice %502 {offsets = [0, 0], sizes = [8, 32], strides = [1, 1]} : vector<8x96xf32> to vector<8x32xf32>
    %508 = arith.mulf %507, %504 : vector<8x32xf32>
    %509 = arith.addf %506, %508 : vector<8x32xf32>
    %510 = vector.extract_strided_slice %502 {offsets = [0, 64], sizes = [8, 32], strides = [1, 1]} : vector<8x96xf32> to vector<8x32xf32>
    %511 = math.tanh %509 : vector<8x32xf32>
    %512 = arith.mulf %510, %511 : vector<8x32xf32>
    %c56 = arith.constant 56 : index
    %c0_97 = arith.constant 0 : index
    %513 = vector.load %arg15[%c56, %c0_97] : memref<64x32xf32, #tpu.memory_space<vmem>>, vector<8x32xf32>
    tpu.vector_store %arg15[%c56, %c0_97], %512 {strides = array<i32>} : memref<64x32xf32, #tpu.memory_space<vmem>>, vector<8x32xf32>,
    %c0_98 = arith.constant 0 : index
    %c0_99 = arith.constant 0 : index
    %514 = vector.load %arg15[%c0_98, %c0_99] : memref<64x32xf32, #tpu.memory_space<vmem>>, vector<64x32xf32>
    %c0_100 = arith.constant 0 : index
    %c0_101 = arith.constant 0 : index
    %515 = vector.load %arg10[%c0_100, %c0_101] : memref<32x16xf32, #tpu.memory_space<vmem>>, vector<32x16xf32>
    %cst_102 = arith.constant dense<0.000000e+00> : vector<64x16xf32>
    %516 = tpu.matmul %514, %515, %cst_102 {dimension_numbers = #tpu.dot_dimension_numbers<[1], [0], [0], [1], [0, 0, 1, 1], [], []>} : vector<64x32xf32>, vector<32x16xf32>, vector<64x16xf32> -> vector<64x16xf32>
    %c0_103 = arith.constant 0 : index
    %c0_104 = arith.constant 0 : index
    %517 = vector.load %arg11[%c0_103, %c0_104] : memref<1x16xf32, #tpu.memory_space<vmem>>, vector<1x16xf32>
    %518 = vector.broadcast %517 : vector<1x16xf32> to vector<64x16xf32>
    %519 = arith.addf %516, %518 : vector<64x16xf32>
    %cst_105 = arith.constant 0.000000e+00 : f32
    %520 = vector.broadcast %cst_105 : f32 to vector<64x16xf32>
    %521 = arith.maximumf %519, %520 : vector<64x16xf32>
    %c0_106 = arith.constant 0 : index
    %c0_107 = arith.constant 0 : index
    %522 = vector.load %arg12[%c0_106, %c0_107] : memref<16x2xf32, #tpu.memory_space<vmem>>, vector<16x2xf32>
    %cst_108 = arith.constant dense<0.000000e+00> : vector<64x2xf32>
    %523 = tpu.matmul %521, %522, %cst_108 {dimension_numbers = #tpu.dot_dimension_numbers<[1], [0], [0], [1], [0, 0, 1, 1], [], []>} : vector<64x16xf32>, vector<16x2xf32>, vector<64x2xf32> -> vector<64x2xf32>
    %c0_109 = arith.constant 0 : index
    %c0_110 = arith.constant 0 : index
    %524 = vector.load %arg13[%c0_109, %c0_110] : memref<1x2xf32, #tpu.memory_space<vmem>>, vector<1x2xf32>
    %525 = vector.broadcast %524 : vector<1x2xf32> to vector<64x2xf32>
    %526 = arith.addf %523, %525 : vector<64x2xf32>
    %c0_111 = arith.constant 0 : index
    %c0_112 = arith.constant 0 : index
    %527 = vector.load %arg14[%c0_111, %c0_112] : memref<64x2xf32, #tpu.memory_space<vmem>>, vector<64x2xf32>
    tpu.vector_store %arg14[%c0_111, %c0_112], %526 {strides = array<i32>} : memref<64x2xf32, #tpu.memory_space<vmem>>, vector<64x2xf32>,
    return
  }
}

</mosaic_0001>

<llo_original>
// kernel: tpu_custom_call.1
$region0: #{tpu_custom_call.1}
  #allocation0 [shape = 'u32[]', space=smem, size = 0x4, offset = 0x4, fixed_abs, tag = 'smem constant byte address 0x4 - core index']
  #allocation1 [shape = 'u32[72,128]{1,0:T(1,128)}', space=vmem, size = 0x9000, scoped, tag = 'internal scratch']
  #allocation2 [shape = 'f32[64,32]{1,0:T(8,128)}', space=vmem, size = 0x8000, scoped, tag = 'scratch operand']
  %s0 = inlined_call_operand.vmem [shape: f32[64,7], index: 0, kind: input, shape index: {}]
  %s1 = inlined_call_operand.vmem [shape: f32[7,128], index: 1, kind: input, shape index: {}]
  %s2 = inlined_call_operand.vmem [shape: f32[32,128], index: 2, kind: input, shape index: {}]
  %s3 = inlined_call_operand.vmem [shape: f32[1,128], index: 3, kind: input, shape index: {}]
  %s4 = inlined_call_operand.vmem [shape: f32[32,128], index: 4, kind: input, shape index: {}]
  %s5 = inlined_call_operand.vmem [shape: f32[32,128], index: 5, kind: input, shape index: {}]
  %s6 = inlined_call_operand.vmem [shape: f32[1,128], index: 6, kind: input, shape index: {}]
  %s7 = inlined_call_operand.hbm [shape: f32[32,128], index: 7, kind: input, shape index: {}]
  %s8 = inlined_call_operand.hbm [shape: f32[32,128], index: 8, kind: input, shape index: {}]
  %s9 = inlined_call_operand.vmem [shape: f32[1,128], index: 9, kind: input, shape index: {}]
  %s10 = inlined_call_operand.vmem [shape: f32[32,16], index: 10, kind: input, shape index: {}]
  %s11 = inlined_call_operand.vmem [shape: f32[1,16], index: 11, kind: input, shape index: {}]
  %s12 = inlined_call_operand.vmem [shape: f32[16,2], index: 12, kind: input, shape index: {}]
  %s13 = inlined_call_operand.vmem [shape: f32[1,2], index: 13, kind: input, shape index: {}]
  %s14 = inlined_call_operand.vmem [shape: f32[64,2], index: 14, kind: output, shape index: {}]
  %s15 = sld [smem:[#allocation0]]
  $region74: #{tpu_custom_call.1} parent=0
    _
  %s17 = ssub.s32 1, %s15
  %s18 = scalar_select 0, %s17, %s15
  $region1: #{tpu_custom_call.1} parent=0
    #allocation3 [shape = 'u8[16384]{0}', space=vmem, size = 0x4000, scoped, tag = 'input window, operand 7, single buffered']
    #allocation4 [shape = 's32[1]{0}', space=sflag, size = 0x4, scoped, tag = 'scoped memory for tpu_custom_call.1']
    #allocation5 [shape = 'u8[16384]{0}', space=vmem, size = 0x4000, scoped, tag = 'input window, operand 8, single buffered']
    #allocation6 [shape = 's32[1]{0}', space=sflag, size = 0x4, scoped, tag = 'scoped memory for tpu_custom_call.1']
    %19 = vsyncpa [#allocation4], 0
    %20 = vsyncpa [#allocation6], 0
    // Predicated region
    $region2: #{tpu_custom_call.1} parent=1 // pred_check
      _
    $region3: #{tpu_custom_call.1} parent=1 // pred_check_branch
      %22 = sbr.rel (0) target = $region5
    $region4: #{tpu_custom_call.1} parent=1 // pred_region
      _
    $region5: #{tpu_custom_call.1} parent=1 // pred_fallthru
      _
    // Predicated region
    $region6: #{tpu_custom_call.1} parent=1 // pred_check
      _
    $region7: #{tpu_custom_call.1} parent=1 // pred_check_branch
      %24 = sbr.rel (0) target = $region9
    $region8: #{tpu_custom_call.1} parent=1 // pred_region
      _
    $region9: #{tpu_custom_call.1} parent=1 // pred_fallthru
      _
    // Predicated region
    $region10: #{tpu_custom_call.1} parent=1 // pred_check
      _
    $region11: #{tpu_custom_call.1} parent=1 // pred_check_branch
      %26 = sbr.rel (0) target = $region13
    $region12: #{tpu_custom_call.1} parent=1 // pred_region
      _
    $region13: #{tpu_custom_call.1} parent=1 // pred_fallthru
      _
    // Predicated region
    $region14: #{tpu_custom_call.1} parent=1 // pred_check
      _
    $region15: #{tpu_custom_call.1} parent=1 // pred_check_branch
      %28 = sbr.rel (0) target = $region17
    $region16: #{tpu_custom_call.1} parent=1 // pred_region
      _
    $region17: #{tpu_custom_call.1} parent=1 // pred_fallthru
      _
    // Predicated region
    $region18: #{tpu_custom_call.1} parent=1 // pred_check
      _
    $region19: #{tpu_custom_call.1} parent=1 // pred_check_branch
      %30 = sbr.rel (0) target = $region21
    $region20: #{tpu_custom_call.1} parent=1 // pred_region
      _
    $region21: #{tpu_custom_call.1} parent=1 // pred_fallthru
      _
    // Predicated region
    $region22: #{tpu_custom_call.1} parent=1 // pred_check
      _
    $region23: #{tpu_custom_call.1} parent=1 // pred_check_branch
      %32 = sbr.rel (0) target = $region25
    $region24: #{tpu_custom_call.1} parent=1 // pred_region
      _
    $region25: #{tpu_custom_call.1} parent=1 // pred_fallthru
      _
    // Predicated region
    $region26: #{tpu_custom_call.1} parent=1 // pred_check
      _
    $region27: #{tpu_custom_call.1} parent=1 // pred_check_branch
      %34 = sbr.rel (0) target = $region29
    $region28: #{tpu_custom_call.1} parent=1 // pred_region
      _
    $region29: #{tpu_custom_call.1} parent=1 // pred_fallthru
      _
    // Predicated region
    $region30: #{tpu_custom_call.1} parent=1 // pred_check
      _
    $region31: #{tpu_custom_call.1} parent=1 // pred_check_branch
      %36 = sbr.rel (0) target = $region33
    $region32: #{tpu_custom_call.1} parent=1 // pred_region
      %38 = vsyncadd [#allocation4], 0
      %s39 = sshll.u32 %s7, 4
      %s40 = int_to_ptr.hbm [resolvable:$true] %s39
      %s41 = sshll.u32 [#allocation3], 4
      %s42 = int_to_ptr.vmem [resolvable:$true] %s41
      %47 = dma.hbm_to_vmem [thread:$0]  %s40, 512, %s42, [#allocation4], 128, 128, 8
    $region33: #{tpu_custom_call.1} parent=1 // pred_fallthru
      _
    // Predicated region
    $region34: #{tpu_custom_call.1} parent=1 // pred_check
      _
    $region35: #{tpu_custom_call.1} parent=1 // pred_check_branch
      %49 = sbr.rel (0) target = $region37
    $region36: #{tpu_custom_call.1} parent=1 // pred_region
      %51 = vsyncadd [#allocation6], 0
      %s52 = sshll.u32 %s8, 4
      %s53 = int_to_ptr.hbm [resolvable:$true] %s52
      %s54 = sshll.u32 [#allocation5], 4
      %s55 = int_to_ptr.vmem [resolvable:$true] %s54
      %60 = dma.hbm_to_vmem [thread:$0]  %s53, 512, %s55, [#allocation6], 128, 128, 8
    $region37: #{tpu_custom_call.1} parent=1 // pred_fallthru
      _
    // Predicated region
    $region38: #{tpu_custom_call.1} parent=1 // pred_check
      _
    $region39: #{tpu_custom_call.1} parent=1 // pred_check_branch
      %62 = sbr.rel (0) target = $region41
    $region40: #{tpu_custom_call.1} parent=1 // pred_region
      _
    $region41: #{tpu_custom_call.1} parent=1 // pred_fallthru
      _
    // Predicated region
    $region42: #{tpu_custom_call.1} parent=1 // pred_check
      _
    $region43: #{tpu_custom_call.1} parent=1 // pred_check_branch
      %64 = sbr.rel (0) target = $region45
    $region44: #{tpu_custom_call.1} parent=1 // pred_region
      _
    $region45: #{tpu_custom_call.1} parent=1 // pred_fallthru
      _
    // Predicated region
    $region46: #{tpu_custom_call.1} parent=1 // pred_check
      _
    $region47: #{tpu_custom_call.1} parent=1 // pred_check_branch
      %66 = sbr.rel (0) target = $region49
    $region48: #{tpu_custom_call.1} parent=1 // pred_region
      _
    $region49: #{tpu_custom_call.1} parent=1 // pred_fallthru
      _
    // Predicated region
    $region50: #{tpu_custom_call.1} parent=1 // pred_check
      _
    $region51: #{tpu_custom_call.1} parent=1 // pred_check_branch
      %68 = sbr.rel (0) target = $region53
    $region52: #{tpu_custom_call.1} parent=1 // pred_region
      _
    $region53: #{tpu_custom_call.1} parent=1 // pred_fallthru
      _
    // Predicated region
    $region54: #{tpu_custom_call.1} parent=1 // pred_check
      _
    $region55: #{tpu_custom_call.1} parent=1 // pred_check_branch
      %70 = sbr.rel (0) target = $region57
    $region56: #{tpu_custom_call.1} parent=1 // pred_region
      _
    $region57: #{tpu_custom_call.1} parent=1 // pred_fallthru
      _
    // Predicated region
    $region58: #{tpu_custom_call.1} parent=1 // pred_check
      _
    $region59: #{tpu_custom_call.1} parent=1 // pred_check_branch
      %72 = sbr.rel (0) target = $region61
    $region60: #{tpu_custom_call.1} parent=1 // pred_region
      %74 = dma.done [#allocation4], 512
    $region61: #{tpu_custom_call.1} parent=1 // pred_fallthru
      _
    // Predicated region
    $region62: #{tpu_custom_call.1} parent=1 // pred_check
      _
    $region63: #{tpu_custom_call.1} parent=1 // pred_check_branch
      %76 = sbr.rel (0) target = $region65
    $region64: #{tpu_custom_call.1} parent=1 // pred_region
      %78 = dma.done [#allocation6], 512
    $region65: #{tpu_custom_call.1} parent=1 // pred_fallthru
      _
    %v79 = vld [vmem:[%s0] sm:$0xff]
    %v80 = vld [vmem:[%s0 + $0x8] sm:$0xff]
    %v81 = vld [vmem:[%s0 + $0x10] sm:$0xff]
    %v82 = vld [vmem:[%s0 + $0x18] sm:$0xff]
    %v83 = vld [vmem:[%s0 + $0x20] sm:$0xff]
    %v84 = vld [vmem:[%s0 + $0x28] sm:$0xff]
    %v85 = vld [vmem:[%s0 + $0x30] sm:$0xff]
    %v86 = vld [vmem:[%s0 + $0x38] sm:$0xff]
    %vm87 = vcmask 56320
    %v88 = vsel %vm87, %v79, 0.0
    %89 = vadd.xlane.f32.xlu0 %v88
    %v90 = vpop.xlane.xlu0 %89
    %v91 = vsel %vm87, %v80, 0.0
    %92 = vadd.xlane.f32.xlu0 %v91
    %v93 = vpop.xlane.xlu0 %92
    %v94 = vsel %vm87, %v81, 0.0
    %95 = vadd.xlane.f32.xlu0 %v94
    %v96 = vpop.xlane.xlu0 %95
    %v97 = vsel %vm87, %v82, 0.0
    %98 = vadd.xlane.f32.xlu0 %v97
    %v99 = vpop.xlane.xlu0 %98
    %v100 = vsel %vm87, %v83, 0.0
    %101 = vadd.xlane.f32.xlu0 %v100
    %v102 = vpop.xlane.xlu0 %101
    %v103 = vsel %vm87, %v84, 0.0
    %104 = vadd.xlane.f32.xlu0 %v103
    %v105 = vpop.xlane.xlu0 %104
    %v106 = vsel %vm87, %v85, 0.0
    %107 = vadd.xlane.f32.xlu0 %v106
    %v108 = vpop.xlane.xlu0 %107
    %v109 = vsel %vm87, %v86, 0.0
    %110 = vadd.xlane.f32.xlu0 %v109
    %v111 = vpop.xlane.xlu0 %110
    %v112 = vrcp.pop 7.0
    %v113 = vmul.f32 7.0, %v112
    %v114 = vsub.f32 1.0, %v113
    %v115 = vmul.f32 %v112, %v114
    %v116 = vadd.f32 %v112, %v115
    %vm117 = vweird.f32 %v112
    %v118 = vsel %vm117, %v112, %v116
    %v119 = vmul.f32 %v90, %v118
    %v120 = vmul.f32 %v93, %v118
    %v121 = vmul.f32 %v96, %v118
    %v122 = vmul.f32 %v99, %v118
    %v123 = vmul.f32 %v102, %v118
    %v124 = vmul.f32 %v105, %v118
    %v125 = vmul.f32 %v108, %v118
    %v126 = vmul.f32 %v111, %v118
    %v127 = vsub.f32 %v79, %v119
    %v128 = vsub.f32 %v80, %v120
    %v129 = vsub.f32 %v81, %v121
    %v130 = vsub.f32 %v82, %v122
    %v131 = vsub.f32 %v83, %v123
    %v132 = vsub.f32 %v84, %v124
    %v133 = vsub.f32 %v85, %v125
    %v134 = vsub.f32 %v86, %v126
    %v135 = vmul.f32 %v127, %v127
    %v136 = vmul.f32 %v128, %v128
    %v137 = vmul.f32 %v129, %v129
    %v138 = vmul.f32 %v130, %v130
    %v139 = vmul.f32 %v131, %v131
    %v140 = vmul.f32 %v132, %v132
    %v141 = vmul.f32 %v133, %v133
    %v142 = vmul.f32 %v134, %v134
    %v143 = vsel %vm87, %v135, 0.0
    %144 = vadd.xlane.f32.xlu0 %v143
    %v145 = vpop.xlane.xlu0 %144
    %v146 = vsel %vm87, %v136, 0.0
    %147 = vadd.xlane.f32.xlu0 %v146
    %v148 = vpop.xlane.xlu0 %147
    %v149 = vsel %vm87, %v137, 0.0
    %150 = vadd.xlane.f32.xlu0 %v149
    %v151 = vpop.xlane.xlu0 %150
    %v152 = vsel %vm87, %v138, 0.0
    %153 = vadd.xlane.f32.xlu0 %v152
    %v154 = vpop.xlane.xlu0 %153
    %v155 = vsel %vm87, %v139, 0.0
    %156 = vadd.xlane.f32.xlu0 %v155
    %v157 = vpop.xlane.xlu0 %156
    %v158 = vsel %vm87, %v140, 0.0
    %159 = vadd.xlane.f32.xlu0 %v158
    %v160 = vpop.xlane.xlu0 %159
    %v161 = vsel %vm87, %v141, 0.0
    %162 = vadd.xlane.f32.xlu0 %v161
    %v163 = vpop.xlane.xlu0 %162
    %v164 = vsel %vm87, %v142, 0.0
    %165 = vadd.xlane.f32.xlu0 %v164
    %v166 = vpop.xlane.xlu0 %165
    %v167 = vmul.f32 %v145, %v118
    %v168 = vmul.f32 %v148, %v118
    %v169 = vmul.f32 %v151, %v118
    %v170 = vmul.f32 %v154, %v118
    %v171 = vmul.f32 %v157, %v118
    %v172 = vmul.f32 %v160, %v118
    %v173 = vmul.f32 %v163, %v118
    %v174 = vmul.f32 %v166, %v118
    %v175 = vadd.f32 %v167, 1e-05
    %v176 = vadd.f32 %v168, 1e-05
    %v177 = vadd.f32 %v169, 1e-05
    %v178 = vadd.f32 %v170, 1e-05
    %v179 = vadd.f32 %v171, 1e-05
    %v180 = vadd.f32 %v172, 1e-05
    %v181 = vadd.f32 %v173, 1e-05
    %v182 = vadd.f32 %v174, 1e-05
    %v183 = vrsqrt.pop %v175
    %v184 = vmul.f32 %v183, %v175
    %v185 = vmul.f32 %v184, %v183
    %v186 = vmul.f32 0.5, %v185
    %v187 = vsub.f32 1.5, %v186
    %v188 = vmul.f32 %v183, %v187
    %vm189 = vweird.f32 %v175
    %vm190 = vweird.f32 %v183
    %vm191 = vmor %vm189, %vm190
    %v192 = vsel %vm191, %v183, %v188
    %v193 = vrsqrt.pop %v176
    %v194 = vmul.f32 %v193, %v176
    %v195 = vmul.f32 %v194, %v193
    %v196 = vmul.f32 0.5, %v195
    %v197 = vsub.f32 1.5, %v196
    %v198 = vmul.f32 %v193, %v197
    %vm199 = vweird.f32 %v176
    %vm200 = vweird.f32 %v193
    %vm201 = vmor %vm199, %vm200
    %v202 = vsel %vm201, %v193, %v198
    %v203 = vrsqrt.pop %v177
    %v204 = vmul.f32 %v203, %v177
    %v205 = vmul.f32 %v204, %v203
    %v206 = vmul.f32 0.5, %v205
    %v207 = vsub.f32 1.5, %v206
    %v208 = vmul.f32 %v203, %v207
    %vm209 = vweird.f32 %v177
    %vm210 = vweird.f32 %v203
    %vm211 = vmor %vm209, %vm210
    %v212 = vsel %vm211, %v203, %v208
    %v213 = vrsqrt.pop %v178
    %v214 = vmul.f32 %v213, %v178
    %v215 = vmul.f32 %v214, %v213
    %v216 = vmul.f32 0.5, %v215
    %v217 = vsub.f32 1.5, %v216
    %v218 = vmul.f32 %v213, %v217
    %vm219 = vweird.f32 %v178
    %vm220 = vweird.f32 %v213
    %vm221 = vmor %vm219, %vm220
    %v222 = vsel %vm221, %v213, %v218
    %v223 = vrsqrt.pop %v179
    %v224 = vmul.f32 %v223, %v179
    %v225 = vmul.f32 %v224, %v223
    %v226 = vmul.f32 0.5, %v225
    %v227 = vsub.f32 1.5, %v226
    %v228 = vmul.f32 %v223, %v227
    %vm229 = vweird.f32 %v179
    %vm230 = vweird.f32 %v223
    %vm231 = vmor %vm229, %vm230
    %v232 = vsel %vm231, %v223, %v228
    %v233 = vrsqrt.pop %v180
    %v234 = vmul.f32 %v233, %v180
    %v235 = vmul.f32 %v234, %v233
    %v236 = vmul.f32 0.5, %v235
    %v237 = vsub.f32 1.5, %v236
    %v238 = vmul.f32 %v233, %v237
    %vm239 = vweird.f32 %v180
    %vm240 = vweird.f32 %v233
    %vm241 = vmor %vm239, %vm240
    %v242 = vsel %vm241, %v233, %v238
    %v243 = vrsqrt.pop %v181
    %v244 = vmul.f32 %v243, %v181
    %v245 = vmul.f32 %v244, %v243
    %v246 = vmul.f32 0.5, %v245
    %v247 = vsub.f32 1.5, %v246
    %v248 = vmul.f32 %v243, %v247
    %vm249 = vweird.f32 %v181
    %vm250 = vweird.f32 %v243
    %vm251 = vmor %vm249, %vm250
    %v252 = vsel %vm251, %v243, %v248
    %v253 = vrsqrt.pop %v182
    %v254 = vmul.f32 %v253, %v182
    %v255 = vmul.f32 %v254, %v253
    %v256 = vmul.f32 0.5, %v255
    %v257 = vsub.f32 1.5, %v256
    %v258 = vmul.f32 %v253, %v257
    %vm259 = vweird.f32 %v182
    %vm260 = vweird.f32 %v253
    %vm261 = vmor %vm259, %vm260
    %v262 = vsel %vm261, %v253, %v258
    %v263 = vmul.f32 %v127, %v192
    %v264 = vmul.f32 %v128, %v202
    %v265 = vmul.f32 %v129, %v212
    %v266 = vmul.f32 %v130, %v222
    %v267 = vmul.f32 %v131, %v232
    %v268 = vmul.f32 %v132, %v242
    %v269 = vmul.f32 %v133, %v252
    %v270 = vmul.f32 %v134, %v262
    %v271 = vld [vmem:[%s1] sm:$0x7f]
    %v272 = vld [vmem:[%s3] sm:$0x1]
    %v274 = vperm.slane %v272, 0
    %v277 = vsel %vm87, %v263, 0
    %v280 = vsel %vm87, %v264, 0
    %v283 = vsel %vm87, %v265, 0
    %v286 = vsel %vm87, %v266, 0
    %v289 = vsel %vm87, %v267, 0
    %v292 = vsel %vm87, %v268, 0
    %v295 = vsel %vm87, %v269, 0
    %v298 = vsel %vm87, %v270, 0
    %vm300 = vcmask 1046528
    %v302 = vsel %vm300, %v271, 0
    %304 = vmatpush.msra.mxu0 0.0
    %305 = vmatpush.msra.mxu0 0.0
    %306 = vmatpush.msra.mxu0 0.0
    %307 = vmatpush.msra.mxu0 0.0
    %308 = vmatpush.msra.mxu0 0.0
    %309 = vmatpush.msra.mxu0 0.0
    %310 = vmatpush.msra.mxu0 0.0
    %311 = vmatpush.msra.mxu0 0.0
    %312 = vmatpush.msra.mxu0 0.0
    %313 = vmatpush.msra.mxu0 0.0
    %314 = vmatpush.msra.mxu0 0.0
    %315 = vmatpush.msra.mxu0 0.0
    %316 = vmatpush.msra.mxu0 0.0
    %317 = vmatpush.msra.mxu0 0.0
    %318 = vmatpush.msra.mxu0 0.0
    %319 = vmatpush.msra.mxu0 %v302
    %320 = vmatmul.f32.gmra.mxu0 %v277
    %v321 = vpop.f32.mrf.mxu0
    %v322 = vadd.f32 %v274, %v321
    %323 = vmatmul.f32.gmra.mxu0 %v280
    %v324 = vpop.f32.mrf.mxu0
    %v325 = vadd.f32 %v274, %v324
    %326 = vmatmul.f32.gmra.mxu0 %v283
    %v327 = vpop.f32.mrf.mxu0
    %v328 = vadd.f32 %v274, %v327
    %329 = vmatmul.f32.gmra.mxu0 %v286
    %v330 = vpop.f32.mrf.mxu0
    %v331 = vadd.f32 %v274, %v330
    %332 = vmatmul.f32.gmra.mxu0 %v289
    %v333 = vpop.f32.mrf.mxu0
    %v334 = vadd.f32 %v274, %v333
    %335 = vmatmul.f32.gmra.mxu0 %v292
    %v336 = vpop.f32.mrf.mxu0
    %v337 = vadd.f32 %v274, %v336
    %338 = vmatmul.f32.gmra.mxu0 %v295
    %v339 = vpop.f32.mrf.mxu0
    %v340 = vadd.f32 %v274, %v339
    %341 = vmatmul.f32.gmra.mxu0 %v298
    %v342 = vpop.f32.mrf.mxu0
    %v343 = vadd.f32 %v274, %v342
    %344 = vdwg.mxu0
    %v345 = vld [vmem:[%s2] sm:$0xff]
    %v346 = vld [vmem:[%s2 + $0x8] sm:$0xff]
    %v347 = vld [vmem:[%s2 + $0x10] sm:$0xff]
    %v348 = vld [vmem:[%s2 + $0x18] sm:$0xff]
    %v349 = vld [vmem:[%s4] sm:$0xff]
    %v350 = vld [vmem:[%s4 + $0x8] sm:$0xff]
    %v351 = vld [vmem:[%s4 + $0x10] sm:$0xff]
    %v352 = vld [vmem:[%s4 + $0x18] sm:$0xff]
    %v353 = vld [vmem:[%s5] sm:$0xff]
    %v354 = vld [vmem:[%s5 + $0x8] sm:$0xff]
    %v355 = vld [vmem:[%s5 + $0x10] sm:$0xff]
    %v356 = vld [vmem:[%s5 + $0x18] sm:$0xff]
    %v357 = vld [vmem:[#allocation3] sm:$0xff]
    %v358 = vld [vmem:[#allocation3 + $0x8] sm:$0xff]
    %v359 = vld [vmem:[#allocation3 + $0x10] sm:$0xff]
    %v360 = vld [vmem:[#allocation3 + $0x18] sm:$0xff]
    %v361 = vld [vmem:[#allocation5] sm:$0xff]
    %v362 = vld [vmem:[#allocation5 + $0x8] sm:$0xff]
    %v363 = vld [vmem:[#allocation5 + $0x10] sm:$0xff]
    %v364 = vld [vmem:[#allocation5 + $0x18] sm:$0xff]
    %v365 = vld [vmem:[%s6] sm:$0x1]
    %v367 = vperm.slane %v365, 0
    %v369 = vld [vmem:[%s9] sm:$0x1]
    %v371 = vperm.slane %v369, 0
    %vm373 = vcmask 261120
    %v375 = vsel %vm373, 0.0, 0
    %377 = vmatpush.msra.mxu0 0.0
    %378 = vmatpush.msra.mxu0 0.0
    %379 = vmatpush.msra.mxu0 0.0
    %380 = vmatpush.msra.mxu0 0.0
    %381 = vmatpush.msra.mxu0 0.0
    %382 = vmatpush.msra.mxu0 0.0
    %383 = vmatpush.msra.mxu0 0.0
    %384 = vmatpush.msra.mxu0 0.0
    %385 = vmatpush.msra.mxu0 0.0
    %386 = vmatpush.msra.mxu0 0.0
    %387 = vmatpush.msra.mxu0 0.0
    %388 = vmatpush.msra.mxu0 0.0
    %389 = vmatpush.msra.mxu0 %v348
    %390 = vmatpush.msra.mxu0 %v347
    %391 = vmatpush.msra.mxu0 %v346
    %392 = vmatpush.msra.mxu0 %v345
    %393 = vmatmul.f32.gmra.mxu0 %v375
    %v394 = vpop.f32.mrf.mxu0
    %v395 = vadd.f32 0.0, %v394
    %396 = vdwg.mxu0
    %v397 = vadd.f32 %v322, %v395
    %v398 = vxor.u32 %v397, 2147483648
    %v399 = vmul.f32 %v398, 1.442695
    %v400 = vpow.pop %v399
    %v401 = vadd.f32 %v400, 1.0
    %v402 = vrcp.pop %v401
    %v403 = vmul.f32 %v401, %v402
    %v404 = vsub.f32 1.0, %v403
    %v405 = vmul.f32 %v402, %v404
    %v406 = vadd.f32 %v402, %v405
    %vm407 = vweird.f32 %v401
    %vm408 = vweird.f32 %v402
    %vm409 = vmor %vm407, %vm408
    %v410 = vsel %vm409, %v402, %v406
    %v411 = vand.u32 2147483647, %v401
    %vm412 = vcmp.eq.f32.partialorder %v411, 8.507059e+37
    %v413 = vand.u32 %v401, 2147483648
    %v414 = vor.u32 1.1754944e-38, %v413
    %v415 = vsel %vm412, %v414, %v410
    %v416 = vmul.f32 1.0, %v415
    %v417 = vtanh.pop %v397
    %v418 = vmul.f32 %v416, 0.0
    %420 = vrot.lane.b32.xlu0 %v417, 32
    %v421 = vpop.permute.xlu0 %420
    %v423 = vmul.f32 %v416, %v421
    %425 = vrot.lane.b32.xlu0 %v423, 32
    %v426 = vpop.permute.xlu0 %425
    %v428 = vadd.f32 %v418, %v426
    %v429 = vtanh.pop %v428
    %431 = vrot.lane.b32.xlu0 %v429, 32
    %v432 = vpop.permute.xlu0 %431
    %v434 = vmul.f32 %v416, %v432
    %435 = vmatpush.msra.mxu0 0.0
    %436 = vmatpush.msra.mxu0 0.0
    %437 = vmatpush.msra.mxu0 0.0
    %438 = vmatpush.msra.mxu0 0.0
    %439 = vmatpush.msra.mxu0 0.0
    %440 = vmatpush.msra.mxu0 0.0
    %441 = vmatpush.msra.mxu0 0.0
    %442 = vmatpush.msra.mxu0 0.0
    %443 = vmatpush.msra.mxu0 0.0
    %444 = vmatpush.msra.mxu0 0.0
    %445 = vmatpush.msra.mxu0 0.0
    %446 = vmatpush.msra.mxu0 0.0
    %447 = vmatpush.msra.mxu0 %v356
    %448 = vmatpush.msra.mxu0 %v355
    %449 = vmatpush.msra.mxu0 %v354
    %450 = vmatpush.msra.mxu0 %v353
    %451 = vmatmul.f32.gmra.mxu0 %v375
    %v452 = vpop.f32.mrf.mxu0
    %v453 = vadd.f32 0.0, %v452
    %454 = vdwg.mxu0
    %456 = vrot.lane.b32.xlu0 %v434, 64
    %v457 = vpop.permute.xlu0 %456
    %v458 = vsel %vm373, %v457, 0
    %460 = vmatpush.msra.mxu0 0.0
    %461 = vmatpush.msra.mxu0 0.0
    %462 = vmatpush.msra.mxu0 0.0
    %463 = vmatpush.msra.mxu0 0.0
    %464 = vmatpush.msra.mxu0 0.0
    %465 = vmatpush.msra.mxu0 0.0
    %466 = vmatpush.msra.mxu0 0.0
    %467 = vmatpush.msra.mxu0 0.0
    %468 = vmatpush.msra.mxu0 0.0
    %469 = vmatpush.msra.mxu0 0.0
    %470 = vmatpush.msra.mxu0 0.0
    %471 = vmatpush.msra.mxu0 0.0
    %472 = vmatpush.msra.mxu0 %v352
    %473 = vmatpush.msra.mxu0 %v351
    %474 = vmatpush.msra.mxu0 %v350
    %475 = vmatpush.msra.mxu0 %v349
    %476 = vmatmul.f32.gmra.mxu0 %v458
    %v477 = vpop.f32.mrf.mxu0
    %v478 = vadd.f32 %v453, %v477
    %479 = vdwg.mxu0
    %v480 = vadd.f32 %v478, %v367
    %v481 = vxor.u32 %v480, 2147483648
    %v482 = vmul.f32 %v481, 1.442695
    %v483 = vpow.pop %v482
    %v484 = vadd.f32 %v483, 1.0
    %v485 = vrcp.pop %v484
    %v486 = vmul.f32 %v484, %v485
    %v487 = vsub.f32 1.0, %v486
    %v488 = vmul.f32 %v485, %v487
    %v489 = vadd.f32 %v485, %v488
    %vm490 = vweird.f32 %v484
    %vm491 = vweird.f32 %v485
    %vm492 = vmor %vm490, %vm491
    %v493 = vsel %vm492, %v485, %v489
    %v494 = vand.u32 2147483647, %v484
    %vm495 = vcmp.eq.f32.partialorder %v494, 8.507059e+37
    %v496 = vand.u32 %v484, 2147483648
    %v497 = vor.u32 1.1754944e-38, %v496
    %v498 = vsel %vm495, %v497, %v493
    %v499 = vmul.f32 1.0, %v498
    %v500 = vtanh.pop %v480
    %v501 = vmul.f32 %v499, 0.0
    %503 = vrot.lane.b32.xlu0 %v500, 32
    %v504 = vpop.permute.xlu0 %503
    %v506 = vmul.f32 %v499, %v504
    %508 = vrot.lane.b32.xlu0 %v506, 32
    %v509 = vpop.permute.xlu0 %508
    %v511 = vadd.f32 %v501, %v509
    %v512 = vtanh.pop %v511
    %514 = vrot.lane.b32.xlu0 %v512, 32
    %v515 = vpop.permute.xlu0 %514
    %v517 = vmul.f32 %v499, %v515
    %518 = vmatpush.msra.mxu0 0.0
    %519 = vmatpush.msra.mxu0 0.0
    %520 = vmatpush.msra.mxu0 0.0
    %521 = vmatpush.msra.mxu0 0.0
    %522 = vmatpush.msra.mxu0 0.0
    %523 = vmatpush.msra.mxu0 0.0
    %524 = vmatpush.msra.mxu0 0.0
    %525 = vmatpush.msra.mxu0 0.0
    %526 = vmatpush.msra.mxu0 0.0
    %527 = vmatpush.msra.mxu0 0.0
    %528 = vmatpush.msra.mxu0 0.0
    %529 = vmatpush.msra.mxu0 0.0
    %530 = vmatpush.msra.mxu0 %v364
    %531 = vmatpush.msra.mxu0 %v363
    %532 = vmatpush.msra.mxu0 %v362
    %533 = vmatpush.msra.mxu0 %v361
    %534 = vmatmul.f32.gmra.mxu0 %v375
    %v535 = vpop.f32.mrf.mxu0
    %v536 = vadd.f32 0.0, %v535
    %537 = vdwg.mxu0
    %539 = vrot.lane.b32.xlu0 %v517, 64
    %v540 = vpop.permute.xlu0 %539
    %v541 = vsel %vm373, %v540, 0
    %543 = vmatpush.msra.mxu0 0.0
    %544 = vmatpush.msra.mxu0 0.0
    %545 = vmatpush.msra.mxu0 0.0
    %546 = vmatpush.msra.mxu0 0.0
    %547 = vmatpush.msra.mxu0 0.0
    %548 = vmatpush.msra.mxu0 0.0
    %549 = vmatpush.msra.mxu0 0.0
    %550 = vmatpush.msra.mxu0 0.0
    %551 = vmatpush.msra.mxu0 0.0
    %552 = vmatpush.msra.mxu0 0.0
    %553 = vmatpush.msra.mxu0 0.0
    %554 = vmatpush.msra.mxu0 0.0
    %555 = vmatpush.msra.mxu0 %v360
    %556 = vmatpush.msra.mxu0 %v359
    %557 = vmatpush.msra.mxu0 %v358
    %558 = vmatpush.msra.mxu0 %v357
    %559 = vmatmul.f32.gmra.mxu0 %v541
    %v560 = vpop.f32.mrf.mxu0
    %v561 = vadd.f32 %v536, %v560
    %562 = vdwg.mxu0
    %v563 = vadd.f32 %v561, %v371
    %v564 = vxor.u32 %v563, 2147483648
    %v565 = vmul.f32 %v564, 1.442695
    %v566 = vpow.pop %v565
    %v567 = vadd.f32 %v566, 1.0
    %v568 = vrcp.pop %v567
    %v569 = vmul.f32 %v567, %v568
    %v570 = vsub.f32 1.0, %v569
    %v571 = vmul.f32 %v568, %v570
    %v572 = vadd.f32 %v568, %v571
    %vm573 = vweird.f32 %v567
    %vm574 = vweird.f32 %v568
    %vm575 = vmor %vm573, %vm574
    %v576 = vsel %vm575, %v568, %v572
    %v577 = vand.u32 2147483647, %v567
    %vm578 = vcmp.eq.f32.partialorder %v577, 8.507059e+37
    %v579 = vand.u32 %v567, 2147483648
    %v580 = vor.u32 1.1754944e-38, %v579
    %v581 = vsel %vm578, %v580, %v576
    %v582 = vmul.f32 1.0, %v581
    %v583 = vtanh.pop %v563
    %v584 = vmul.f32 %v582, 0.0
    %586 = vrot.lane.b32.xlu0 %v583, 32
    %v587 = vpop.permute.xlu0 %586
    %v589 = vmul.f32 %v582, %v587
    %591 = vrot.lane.b32.xlu0 %v589, 32
    %v592 = vpop.permute.xlu0 %591
    %v594 = vadd.f32 %v584, %v592
    %v595 = vtanh.pop %v594
    %597 = vrot.lane.b32.xlu0 %v595, 32
    %v598 = vpop.permute.xlu0 %597
    %v600 = vmul.f32 %v582, %v598
    %602 = vrot.lane.b32.xlu0 %v600, 64
    %v603 = vpop.permute.xlu0 %602
    %605 = vst.msk [vmem:[#allocation2] sm:$0xff] %vm373, %v603
    %606 = vmatpush.msra.mxu0 0.0
    %607 = vmatpush.msra.mxu0 0.0
    %608 = vmatpush.msra.mxu0 0.0
    %609 = vmatpush.msra.mxu0 0.0
    %610 = vmatpush.msra.mxu0 0.0
    %611 = vmatpush.msra.mxu0 0.0
    %612 = vmatpush.msra.mxu0 0.0
    %613 = vmatpush.msra.mxu0 0.0
    %614 = vmatpush.msra.mxu0 0.0
    %615 = vmatpush.msra.mxu0 0.0
    %616 = vmatpush.msra.mxu0 0.0
    %617 = vmatpush.msra.mxu0 0.0
    %618 = vmatpush.msra.mxu0 %v348
    %619 = vmatpush.msra.mxu0 %v347
    %620 = vmatpush.msra.mxu0 %v346
    %621 = vmatpush.msra.mxu0 %v345
    %622 = vmatmul.f32.gmra.mxu0 %v458
    %v623 = vpop.f32.mrf.mxu0
    %v624 = vadd.f32 0.0, %v623
    %625 = vdwg.mxu0
    %v626 = vadd.f32 %v325, %v624
    %v627 = vxor.u32 %v626, 2147483648
    %v628 = vmul.f32 %v627, 1.442695
    %v629 = vpow.pop %v628
    %v630 = vadd.f32 %v629, 1.0
    %v631 = vrcp.pop %v630
    %v632 = vmul.f32 %v630, %v631
    %v633 = vsub.f32 1.0, %v632
    %v634 = vmul.f32 %v631, %v633
    %v635 = vadd.f32 %v631, %v634
    %vm636 = vweird.f32 %v630
    %vm637 = vweird.f32 %v631
    %vm638 = vmor %vm636, %vm637
    %v639 = vsel %vm638, %v631, %v635
    %v640 = vand.u32 2147483647, %v630
    %vm641 = vcmp.eq.f32.partialorder %v640, 8.507059e+37
    %v642 = vand.u32 %v630, 2147483648
    %v643 = vor.u32 1.1754944e-38, %v642
    %v644 = vsel %vm641, %v643, %v639
    %v645 = vmul.f32 1.0, %v644
    %v646 = vtanh.pop %v626
    %v647 = vmul.f32 %v645, %v428
    %649 = vrot.lane.b32.xlu0 %v646, 32
    %v650 = vpop.permute.xlu0 %649
    %v652 = vmul.f32 %v645, %v650
    %654 = vrot.lane.b32.xlu0 %v652, 32
    %v655 = vpop.permute.xlu0 %654
    %v657 = vadd.f32 %v647, %v655
    %v658 = vtanh.pop %v657
    %660 = vrot.lane.b32.xlu0 %v658, 32
    %v661 = vpop.permute.xlu0 %660
    %v663 = vmul.f32 %v645, %v661
    %664 = vmatpush.msra.mxu0 0.0
    %665 = vmatpush.msra.mxu0 0.0
    %666 = vmatpush.msra.mxu0 0.0
    %667 = vmatpush.msra.mxu0 0.0
    %668 = vmatpush.msra.mxu0 0.0
    %669 = vmatpush.msra.mxu0 0.0
    %670 = vmatpush.msra.mxu0 0.0
    %671 = vmatpush.msra.mxu0 0.0
    %672 = vmatpush.msra.mxu0 0.0
    %673 = vmatpush.msra.mxu0 0.0
    %674 = vmatpush.msra.mxu0 0.0
    %675 = vmatpush.msra.mxu0 0.0
    %676 = vmatpush.msra.mxu0 %v356
    %677 = vmatpush.msra.mxu0 %v355
    %678 = vmatpush.msra.mxu0 %v354
    %679 = vmatpush.msra.mxu0 %v353
    %680 = vmatmul.f32.gmra.mxu0 %v541
    %v681 = vpop.f32.mrf.mxu0
    %v682 = vadd.f32 0.0, %v681
    %683 = vdwg.mxu0
    %685 = vrot.lane.b32.xlu0 %v663, 64
    %v686 = vpop.permute.xlu0 %685
    %v687 = vsel %vm373, %v686, 0
    %689 = vmatpush.msra.mxu0 0.0
    %690 = vmatpush.msra.mxu0 0.0
    %691 = vmatpush.msra.mxu0 0.0
    %692 = vmatpush.msra.mxu0 0.0
    %693 = vmatpush.msra.mxu0 0.0
    %694 = vmatpush.msra.mxu0 0.0
    %695 = vmatpush.msra.mxu0 0.0
    %696 = vmatpush.msra.mxu0 0.0
    %697 = vmatpush.msra.mxu0 0.0
    %698 = vmatpush.msra.mxu0 0.0
    %699 = vmatpush.msra.mxu0 0.0
    %700 = vmatpush.msra.mxu0 0.0
    %701 = vmatpush.msra.mxu0 %v352
    %702 = vmatpush.msra.mxu0 %v351
    %703 = vmatpush.msra.mxu0 %v350
    %704 = vmatpush.msra.mxu0 %v349
    %705 = vmatmul.f32.gmra.mxu0 %v687
    %v706 = vpop.f32.mrf.mxu0
    %v707 = vadd.f32 %v682, %v706
    %708 = vdwg.mxu0
    %v709 = vadd.f32 %v707, %v367
    %v710 = vxor.u32 %v709, 2147483648
    %v711 = vmul.f32 %v710, 1.442695
    %v712 = vpow.pop %v711
    %v713 = vadd.f32 %v712, 1.0
    %v714 = vrcp.pop %v713
    %v715 = vmul.f32 %v713, %v714
    %v716 = vsub.f32 1.0, %v715
    %v717 = vmul.f32 %v714, %v716
    %v718 = vadd.f32 %v714, %v717
    %vm719 = vweird.f32 %v713
    %vm720 = vweird.f32 %v714
    %vm721 = vmor %vm719, %vm720
    %v722 = vsel %vm721, %v714, %v718
    %v723 = vand.u32 2147483647, %v713
    %vm724 = vcmp.eq.f32.partialorder %v723, 8.507059e+37
    %v725 = vand.u32 %v713, 2147483648
    %v726 = vor.u32 1.1754944e-38, %v725
    %v727 = vsel %vm724, %v726, %v722
    %v728 = vmul.f32 1.0, %v727
    %v729 = vtanh.pop %v709
    %v730 = vmul.f32 %v728, %v511
    %732 = vrot.lane.b32.xlu0 %v729, 32
    %v733 = vpop.permute.xlu0 %732
    %v735 = vmul.f32 %v728, %v733
    %737 = vrot.lane.b32.xlu0 %v735, 32
    %v738 = vpop.permute.xlu0 %737
    %v740 = vadd.f32 %v730, %v738
    %v741 = vtanh.pop %v740
    %743 = vrot.lane.b32.xlu0 %v741, 32
    %v744 = vpop.permute.xlu0 %743
    %v746 = vmul.f32 %v728, %v744
    %v747 = vsel %vm373, %v603, 0
    %749 = vmatpush.msra.mxu0 0.0
    %750 = vmatpush.msra.mxu0 0.0
    %751 = vmatpush.msra.mxu0 0.0
    %752 = vmatpush.msra.mxu0 0.0
    %753 = vmatpush.msra.mxu0 0.0
    %754 = vmatpush.msra.mxu0 0.0
    %755 = vmatpush.msra.mxu0 0.0
    %756 = vmatpush.msra.mxu0 0.0
    %757 = vmatpush.msra.mxu0 0.0
    %758 = vmatpush.msra.mxu0 0.0
    %759 = vmatpush.msra.mxu0 0.0
    %760 = vmatpush.msra.mxu0 0.0
    %761 = vmatpush.msra.mxu0 %v364
    %762 = vmatpush.msra.mxu0 %v363
    %763 = vmatpush.msra.mxu0 %v362
    %764 = vmatpush.msra.mxu0 %v361
    %765 = vmatmul.f32.gmra.mxu0 %v747
    %v766 = vpop.f32.mrf.mxu0
    %v767 = vadd.f32 0.0, %v766
    %768 = vdwg.mxu0
    %770 = vrot.lane.b32.xlu0 %v746, 64
    %v771 = vpop.permute.xlu0 %770
    %v772 = vsel %vm373, %v771, 0
    %774 = vmatpush.msra.mxu0 0.0
    %775 = vmatpush.msra.mxu0 0.0
    %776 = vmatpush.msra.mxu0 0.0
    %777 = vmatpush.msra.mxu0 0.0
    %778 = vmatpush.msra.mxu0 0.0
    %779 = vmatpush.msra.mxu0 0.0
    %780 = vmatpush.msra.mxu0 0.0
    %781 = vmatpush.msra.mxu0 0.0
    %782 = vmatpush.msra.mxu0 0.0
    %783 = vmatpush.msra.mxu0 0.0
    %784 = vmatpush.msra.mxu0 0.0
    %785 = vmatpush.msra.mxu0 0.0
    %786 = vmatpush.msra.mxu0 %v360
    %787 = vmatpush.msra.mxu0 %v359
    %788 = vmatpush.msra.mxu0 %v358
    %789 = vmatpush.msra.mxu0 %v357
    %790 = vmatmul.f32.gmra.mxu0 %v772
    %v791 = vpop.f32.mrf.mxu0
    %v792 = vadd.f32 %v767, %v791
    %793 = vdwg.mxu0
    %v794 = vadd.f32 %v792, %v371
    %v795 = vxor.u32 %v794, 2147483648
    %v796 = vmul.f32 %v795, 1.442695
    %v797 = vpow.pop %v796
    %v798 = vadd.f32 %v797, 1.0
    %v799 = vrcp.pop %v798
    %v800 = vmul.f32 %v798, %v799
    %v801 = vsub.f32 1.0, %v800
    %v802 = vmul.f32 %v799, %v801
    %v803 = vadd.f32 %v799, %v802
    %vm804 = vweird.f32 %v798
    %vm805 = vweird.f32 %v799
    %vm806 = vmor %vm804, %vm805
    %v807 = vsel %vm806, %v799, %v803
    %v808 = vand.u32 2147483647, %v798
    %vm809 = vcmp.eq.f32.partialorder %v808, 8.507059e+37
    %v810 = vand.u32 %v798, 2147483648
    %v811 = vor.u32 1.1754944e-38, %v810
    %v812 = vsel %vm809, %v811, %v807
    %v813 = vmul.f32 1.0, %v812
    %v814 = vtanh.pop %v794
    %v815 = vmul.f32 %v813, %v594
    %817 = vrot.lane.b32.xlu0 %v814, 32
    %v818 = vpop.permute.xlu0 %817
    %v820 = vmul.f32 %v813, %v818
    %822 = vrot.lane.b32.xlu0 %v820, 32
    %v823 = vpop.permute.xlu0 %822
    %v825 = vadd.f32 %v815, %v823
    %v826 = vtanh.pop %v825
    %828 = vrot.lane.b32.xlu0 %v826, 32
    %v829 = vpop.permute.xlu0 %828
    %v831 = vmul.f32 %v813, %v829
    %833 = vrot.lane.b32.xlu0 %v831, 64
    %v834 = vpop.permute.xlu0 %833
    %836 = vst.msk [vmem:[#allocation2 + $0x8] sm:$0xff] %vm373, %v834
    %837 = vmatpush.msra.mxu0 0.0
    %838 = vmatpush.msra.mxu0 0.0
    %839 = vmatpush.msra.mxu0 0.0
    %840 = vmatpush.msra.mxu0 0.0
    %841 = vmatpush.msra.mxu0 0.0
    %842 = vmatpush.msra.mxu0 0.0
    %843 = vmatpush.msra.mxu0 0.0
    %844 = vmatpush.msra.mxu0 0.0
    %845 = vmatpush.msra.mxu0 0.0
    %846 = vmatpush.msra.mxu0 0.0
    %847 = vmatpush.msra.mxu0 0.0
    %848 = vmatpush.msra.mxu0 0.0
    %849 = vmatpush.msra.mxu0 %v348
    %850 = vmatpush.msra.mxu0 %v347
    %851 = vmatpush.msra.mxu0 %v346
    %852 = vmatpush.msra.mxu0 %v345
    %853 = vmatmul.f32.gmra.mxu0 %v687
    %v854 = vpop.f32.mrf.mxu0
    %v855 = vadd.f32 0.0, %v854
    %856 = vdwg.mxu0
    %v857 = vadd.f32 %v328, %v855
    %v858 = vxor.u32 %v857, 2147483648
    %v859 = vmul.f32 %v858, 1.442695
    %v860 = vpow.pop %v859
    %v861 = vadd.f32 %v860, 1.0
    %v862 = vrcp.pop %v861
    %v863 = vmul.f32 %v861, %v862
    %v864 = vsub.f32 1.0, %v863
    %v865 = vmul.f32 %v862, %v864
    %v866 = vadd.f32 %v862, %v865
    %vm867 = vweird.f32 %v861
    %vm868 = vweird.f32 %v862
    %vm869 = vmor %vm867, %vm868
    %v870 = vsel %vm869, %v862, %v866
    %v871 = vand.u32 2147483647, %v861
    %vm872 = vcmp.eq.f32.partialorder %v871, 8.507059e+37
    %v873 = vand.u32 %v861, 2147483648
    %v874 = vor.u32 1.1754944e-38, %v873
    %v875 = vsel %vm872, %v874, %v870
    %v876 = vmul.f32 1.0, %v875
    %v877 = vtanh.pop %v857
    %v878 = vmul.f32 %v876, %v657
    %880 = vrot.lane.b32.xlu0 %v877, 32
    %v881 = vpop.permute.xlu0 %880
    %v883 = vmul.f32 %v876, %v881
    %885 = vrot.lane.b32.xlu0 %v883, 32
    %v886 = vpop.permute.xlu0 %885
    %v888 = vadd.f32 %v878, %v886
    %v889 = vtanh.pop %v888
    %891 = vrot.lane.b32.xlu0 %v889, 32
    %v892 = vpop.permute.xlu0 %891
    %v894 = vmul.f32 %v876, %v892
    %895 = vmatpush.msra.mxu0 0.0
    %896 = vmatpush.msra.mxu0 0.0
    %897 = vmatpush.msra.mxu0 0.0
    %898 = vmatpush.msra.mxu0 0.0
    %899 = vmatpush.msra.mxu0 0.0
    %900 = vmatpush.msra.mxu0 0.0
    %901 = vmatpush.msra.mxu0 0.0
    %902 = vmatpush.msra.mxu0 0.0
    %903 = vmatpush.msra.mxu0 0.0
    %904 = vmatpush.msra.mxu0 0.0
    %905 = vmatpush.msra.mxu0 0.0
    %906 = vmatpush.msra.mxu0 0.0
    %907 = vmatpush.msra.mxu0 %v356
    %908 = vmatpush.msra.mxu0 %v355
    %909 = vmatpush.msra.mxu0 %v354
    %910 = vmatpush.msra.mxu0 %v353
    %911 = vmatmul.f32.gmra.mxu0 %v772
    %v912 = vpop.f32.mrf.mxu0
    %v913 = vadd.f32 0.0, %v912
    %914 = vdwg.mxu0
    %916 = vrot.lane.b32.xlu0 %v894, 64
    %v917 = vpop.permute.xlu0 %916
    %v918 = vsel %vm373, %v917, 0
    %920 = vmatpush.msra.mxu0 0.0
    %921 = vmatpush.msra.mxu0 0.0
    %922 = vmatpush.msra.mxu0 0.0
    %923 = vmatpush.msra.mxu0 0.0
    %924 = vmatpush.msra.mxu0 0.0
    %925 = vmatpush.msra.mxu0 0.0
    %926 = vmatpush.msra.mxu0 0.0
    %927 = vmatpush.msra.mxu0 0.0
    %928 = vmatpush.msra.mxu0 0.0
    %929 = vmatpush.msra.mxu0 0.0
    %930 = vmatpush.msra.mxu0 0.0
    %931 = vmatpush.msra.mxu0 0.0
    %932 = vmatpush.msra.mxu0 %v352
    %933 = vmatpush.msra.mxu0 %v351
    %934 = vmatpush.msra.mxu0 %v350
    %935 = vmatpush.msra.mxu0 %v349
    %936 = vmatmul.f32.gmra.mxu0 %v918
    %v937 = vpop.f32.mrf.mxu0
    %v938 = vadd.f32 %v913, %v937
    %939 = vdwg.mxu0
    %v940 = vadd.f32 %v938, %v367
    %v941 = vxor.u32 %v940, 2147483648
    %v942 = vmul.f32 %v941, 1.442695
    %v943 = vpow.pop %v942
    %v944 = vadd.f32 %v943, 1.0
    %v945 = vrcp.pop %v944
    %v946 = vmul.f32 %v944, %v945
    %v947 = vsub.f32 1.0, %v946
    %v948 = vmul.f32 %v945, %v947
    %v949 = vadd.f32 %v945, %v948
    %vm950 = vweird.f32 %v944
    %vm951 = vweird.f32 %v945
    %vm952 = vmor %vm950, %vm951
    %v953 = vsel %vm952, %v945, %v949
    %v954 = vand.u32 2147483647, %v944
    %vm955 = vcmp.eq.f32.partialorder %v954, 8.507059e+37
    %v956 = vand.u32 %v944, 2147483648
    %v957 = vor.u32 1.1754944e-38, %v956
    %v958 = vsel %vm955, %v957, %v953
    %v959 = vmul.f32 1.0, %v958
    %v960 = vtanh.pop %v940
    %v961 = vmul.f32 %v959, %v740
    %963 = vrot.lane.b32.xlu0 %v960, 32
    %v964 = vpop.permute.xlu0 %963
    %v966 = vmul.f32 %v959, %v964
    %968 = vrot.lane.b32.xlu0 %v966, 32
    %v969 = vpop.permute.xlu0 %968
    %v971 = vadd.f32 %v961, %v969
    %v972 = vtanh.pop %v971
    %974 = vrot.lane.b32.xlu0 %v972, 32
    %v975 = vpop.permute.xlu0 %974
    %v977 = vmul.f32 %v959, %v975
    %v978 = vsel %vm373, %v834, 0
    %980 = vmatpush.msra.mxu0 0.0
    %981 = vmatpush.msra.mxu0 0.0
    %982 = vmatpush.msra.mxu0 0.0
    %983 = vmatpush.msra.mxu0 0.0
    %984 = vmatpush.msra.mxu0 0.0
    %985 = vmatpush.msra.mxu0 0.0
    %986 = vmatpush.msra.mxu0 0.0
    %987 = vmatpush.msra.mxu0 0.0
    %988 = vmatpush.msra.mxu0 0.0
    %989 = vmatpush.msra.mxu0 0.0
    %990 = vmatpush.msra.mxu0 0.0
    %991 = vmatpush.msra.mxu0 0.0
    %992 = vmatpush.msra.mxu0 %v364
    %993 = vmatpush.msra.mxu0 %v363
    %994 = vmatpush.msra.mxu0 %v362
    %995 = vmatpush.msra.mxu0 %v361
    %996 = vmatmul.f32.gmra.mxu0 %v978
    %v997 = vpop.f32.mrf.mxu0
    %v998 = vadd.f32 0.0, %v997
    %999 = vdwg.mxu0
    %1001 = vrot.lane.b32.xlu0 %v977, 64
    %v1002 = vpop.permute.xlu0 %1001
    %v1003 = vsel %vm373, %v1002, 0
    %1005 = vmatpush.msra.mxu0 0.0
    %1006 = vmatpush.msra.mxu0 0.0
    %1007 = vmatpush.msra.mxu0 0.0
    %1008 = vmatpush.msra.mxu0 0.0
    %1009 = vmatpush.msra.mxu0 0.0
    %1010 = vmatpush.msra.mxu0 0.0
    %1011 = vmatpush.msra.mxu0 0.0
    %1012 = vmatpush.msra.mxu0 0.0
    %1013 = vmatpush.msra.mxu0 0.0
    %1014 = vmatpush.msra.mxu0 0.0
    %1015 = vmatpush.msra.mxu0 0.0
    %1016 = vmatpush.msra.mxu0 0.0
    %1017 = vmatpush.msra.mxu0 %v360
    %1018 = vmatpush.msra.mxu0 %v359
    %1019 = vmatpush.msra.mxu0 %v358
    %1020 = vmatpush.msra.mxu0 %v357
    %1021 = vmatmul.f32.gmra.mxu0 %v1003
    %v1022 = vpop.f32.mrf.mxu0
    %v1023 = vadd.f32 %v998, %v1022
    %1024 = vdwg.mxu0
    %v1025 = vadd.f32 %v1023, %v371
    %v1026 = vxor.u32 %v1025, 2147483648
    %v1027 = vmul.f32 %v1026, 1.442695
    %v1028 = vpow.pop %v1027
    %v1029 = vadd.f32 %v1028, 1.0
    %v1030 = vrcp.pop %v1029
    %v1031 = vmul.f32 %v1029, %v1030
    %v1032 = vsub.f32 1.0, %v1031
    %v1033 = vmul.f32 %v1030, %v1032
    %v1034 = vadd.f32 %v1030, %v1033
    %vm1035 = vweird.f32 %v1029
    %vm1036 = vweird.f32 %v1030
    %vm1037 = vmor %vm1035, %vm1036
    %v1038 = vsel %vm1037, %v1030, %v1034
    %v1039 = vand.u32 2147483647, %v1029
    %vm1040 = vcmp.eq.f32.partialorder %v1039, 8.507059e+37
    %v1041 = vand.u32 %v1029, 2147483648
    %v1042 = vor.u32 1.1754944e-38, %v1041
    %v1043 = vsel %vm1040, %v1042, %v1038
    %v1044 = vmul.f32 1.0, %v1043
    %v1045 = vtanh.pop %v1025
    %v1046 = vmul.f32 %v1044, %v825
    %1048 = vrot.lane.b32.xlu0 %v1045, 32
    %v1049 = vpop.permute.xlu0 %1048
    %v1051 = vmul.f32 %v1044, %v1049
    %1053 = vrot.lane.b32.xlu0 %v1051, 32
    %v1054 = vpop.permute.xlu0 %1053
    %v1056 = vadd.f32 %v1046, %v1054
    %v1057 = vtanh.pop %v1056
    %1059 = vrot.lane.b32.xlu0 %v1057, 32
    %v1060 = vpop.permute.xlu0 %1059
    %v1062 = vmul.f32 %v1044, %v1060
    %1064 = vrot.lane.b32.xlu0 %v1062, 64
    %v1065 = vpop.permute.xlu0 %1064
    %1067 = vst.msk [vmem:[#allocation2 + $0x10] sm:$0xff] %vm373, %v1065
    %1068 = vmatpush.msra.mxu0 0.0
    %1069 = vmatpush.msra.mxu0 0.0
    %1070 = vmatpush.msra.mxu0 0.0
    %1071 = vmatpush.msra.mxu0 0.0
    %1072 = vmatpush.msra.mxu0 0.0
    %1073 = vmatpush.msra.mxu0 0.0
    %1074 = vmatpush.msra.mxu0 0.0
    %1075 = vmatpush.msra.mxu0 0.0
    %1076 = vmatpush.msra.mxu0 0.0
    %1077 = vmatpush.msra.mxu0 0.0
    %1078 = vmatpush.msra.mxu0 0.0
    %1079 = vmatpush.msra.mxu0 0.0
    %1080 = vmatpush.msra.mxu0 %v348
    %1081 = vmatpush.msra.mxu0 %v347
    %1082 = vmatpush.msra.mxu0 %v346
    %1083 = vmatpush.msra.mxu0 %v345
    %1084 = vmatmul.f32.gmra.mxu0 %v918
    %v1085 = vpop.f32.mrf.mxu0
    %v1086 = vadd.f32 0.0, %v1085
    %1087 = vdwg.mxu0
    %v1088 = vadd.f32 %v331, %v1086
    %v1089 = vxor.u32 %v1088, 2147483648
    %v1090 = vmul.f32 %v1089, 1.442695
    %v1091 = vpow.pop %v1090
    %v1092 = vadd.f32 %v1091, 1.0
    %v1093 = vrcp.pop %v1092
    %v1094 = vmul.f32 %v1092, %v1093
    %v1095 = vsub.f32 1.0, %v1094
    %v1096 = vmul.f32 %v1093, %v1095
    %v1097 = vadd.f32 %v1093, %v1096
    %vm1098 = vweird.f32 %v1092
    %vm1099 = vweird.f32 %v1093
    %vm1100 = vmor %vm1098, %vm1099
    %v1101 = vsel %vm1100, %v1093, %v1097
    %v1102 = vand.u32 2147483647, %v1092
    %vm1103 = vcmp.eq.f32.partialorder %v1102, 8.507059e+37
    %v1104 = vand.u32 %v1092, 2147483648
    %v1105 = vor.u32 1.1754944e-38, %v1104
    %v1106 = vsel %vm1103, %v1105, %v1101
    %v1107 = vmul.f32 1.0, %v1106
    %v1108 = vtanh.pop %v1088
    %v1109 = vmul.f32 %v1107, %v888
    %1111 = vrot.lane.b32.xlu0 %v1108, 32
    %v1112 = vpop.permute.xlu0 %1111
    %v1114 = vmul.f32 %v1107, %v1112
    %1116 = vrot.lane.b32.xlu0 %v1114, 32
    %v1117 = vpop.permute.xlu0 %1116
    %v1119 = vadd.f32 %v1109, %v1117
    %v1120 = vtanh.pop %v1119
    %1122 = vrot.lane.b32.xlu0 %v1120, 32
    %v1123 = vpop.permute.xlu0 %1122
    %v1125 = vmul.f32 %v1107, %v1123
    %1126 = vmatpush.msra.mxu0 0.0
    %1127 = vmatpush.msra.mxu0 0.0
    %1128 = vmatpush.msra.mxu0 0.0
    %1129 = vmatpush.msra.mxu0 0.0
    %1130 = vmatpush.msra.mxu0 0.0
    %1131 = vmatpush.msra.mxu0 0.0
    %1132 = vmatpush.msra.mxu0 0.0
    %1133 = vmatpush.msra.mxu0 0.0
    %1134 = vmatpush.msra.mxu0 0.0
    %1135 = vmatpush.msra.mxu0 0.0
    %1136 = vmatpush.msra.mxu0 0.0
    %1137 = vmatpush.msra.mxu0 0.0
    %1138 = vmatpush.msra.mxu0 %v356
    %1139 = vmatpush.msra.mxu0 %v355
    %1140 = vmatpush.msra.mxu0 %v354
    %1141 = vmatpush.msra.mxu0 %v353
    %1142 = vmatmul.f32.gmra.mxu0 %v1003
    %v1143 = vpop.f32.mrf.mxu0
    %v1144 = vadd.f32 0.0, %v1143
    %1145 = vdwg.mxu0
    %1147 = vrot.lane.b32.xlu0 %v1125, 64
    %v1148 = vpop.permute.xlu0 %1147
    %v1149 = vsel %vm373, %v1148, 0
    %1151 = vmatpush.msra.mxu0 0.0
    %1152 = vmatpush.msra.mxu0 0.0
    %1153 = vmatpush.msra.mxu0 0.0
    %1154 = vmatpush.msra.mxu0 0.0
    %1155 = vmatpush.msra.mxu0 0.0
    %1156 = vmatpush.msra.mxu0 0.0
    %1157 = vmatpush.msra.mxu0 0.0
    %1158 = vmatpush.msra.mxu0 0.0
    %1159 = vmatpush.msra.mxu0 0.0
    %1160 = vmatpush.msra.mxu0 0.0
    %1161 = vmatpush.msra.mxu0 0.0
    %1162 = vmatpush.msra.mxu0 0.0
    %1163 = vmatpush.msra.mxu0 %v352
    %1164 = vmatpush.msra.mxu0 %v351
    %1165 = vmatpush.msra.mxu0 %v350
    %1166 = vmatpush.msra.mxu0 %v349
    %1167 = vmatmul.f32.gmra.mxu0 %v1149
    %v1168 = vpop.f32.mrf.mxu0
    %v1169 = vadd.f32 %v1144, %v1168
    %1170 = vdwg.mxu0
    %v1171 = vadd.f32 %v1169, %v367
    %v1172 = vxor.u32 %v1171, 2147483648
    %v1173 = vmul.f32 %v1172, 1.442695
    %v1174 = vpow.pop %v1173
    %v1175 = vadd.f32 %v1174, 1.0
    %v1176 = vrcp.pop %v1175
    %v1177 = vmul.f32 %v1175, %v1176
    %v1178 = vsub.f32 1.0, %v1177
    %v1179 = vmul.f32 %v1176, %v1178
    %v1180 = vadd.f32 %v1176, %v1179
    %vm1181 = vweird.f32 %v1175
    %vm1182 = vweird.f32 %v1176
    %vm1183 = vmor %vm1181, %vm1182
    %v1184 = vsel %vm1183, %v1176, %v1180
    %v1185 = vand.u32 2147483647, %v1175
    %vm1186 = vcmp.eq.f32.partialorder %v1185, 8.507059e+37
    %v1187 = vand.u32 %v1175, 2147483648
    %v1188 = vor.u32 1.1754944e-38, %v1187
    %v1189 = vsel %vm1186, %v1188, %v1184
    %v1190 = vmul.f32 1.0, %v1189
    %v1191 = vtanh.pop %v1171
    %v1192 = vmul.f32 %v1190, %v971
    %1194 = vrot.lane.b32.xlu0 %v1191, 32
    %v1195 = vpop.permute.xlu0 %1194
    %v1197 = vmul.f32 %v1190, %v1195
    %1199 = vrot.lane.b32.xlu0 %v1197, 32
    %v1200 = vpop.permute.xlu0 %1199
    %v1202 = vadd.f32 %v1192, %v1200
    %v1203 = vtanh.pop %v1202
    %1205 = vrot.lane.b32.xlu0 %v1203, 32
    %v1206 = vpop.permute.xlu0 %1205
    %v1208 = vmul.f32 %v1190, %v1206
    %v1209 = vsel %vm373, %v1065, 0
    %1211 = vmatpush.msra.mxu0 0.0
    %1212 = vmatpush.msra.mxu0 0.0
    %1213 = vmatpush.msra.mxu0 0.0
    %1214 = vmatpush.msra.mxu0 0.0
    %1215 = vmatpush.msra.mxu0 0.0
    %1216 = vmatpush.msra.mxu0 0.0
    %1217 = vmatpush.msra.mxu0 0.0
    %1218 = vmatpush.msra.mxu0 0.0
    %1219 = vmatpush.msra.mxu0 0.0
    %1220 = vmatpush.msra.mxu0 0.0
    %1221 = vmatpush.msra.mxu0 0.0
    %1222 = vmatpush.msra.mxu0 0.0
    %1223 = vmatpush.msra.mxu0 %v364
    %1224 = vmatpush.msra.mxu0 %v363
    %1225 = vmatpush.msra.mxu0 %v362
    %1226 = vmatpush.msra.mxu0 %v361
    %1227 = vmatmul.f32.gmra.mxu0 %v1209
    %v1228 = vpop.f32.mrf.mxu0
    %v1229 = vadd.f32 0.0, %v1228
    %1230 = vdwg.mxu0
    %1232 = vrot.lane.b32.xlu0 %v1208, 64
    %v1233 = vpop.permute.xlu0 %1232
    %v1234 = vsel %vm373, %v1233, 0
    %1236 = vmatpush.msra.mxu0 0.0
    %1237 = vmatpush.msra.mxu0 0.0
    %1238 = vmatpush.msra.mxu0 0.0
    %1239 = vmatpush.msra.mxu0 0.0
    %1240 = vmatpush.msra.mxu0 0.0
    %1241 = vmatpush.msra.mxu0 0.0
    %1242 = vmatpush.msra.mxu0 0.0
    %1243 = vmatpush.msra.mxu0 0.0
    %1244 = vmatpush.msra.mxu0 0.0
    %1245 = vmatpush.msra.mxu0 0.0
    %1246 = vmatpush.msra.mxu0 0.0
    %1247 = vmatpush.msra.mxu0 0.0
    %1248 = vmatpush.msra.mxu0 %v360
    %1249 = vmatpush.msra.mxu0 %v359
    %1250 = vmatpush.msra.mxu0 %v358
    %1251 = vmatpush.msra.mxu0 %v357
    %1252 = vmatmul.f32.gmra.mxu0 %v1234
    %v1253 = vpop.f32.mrf.mxu0
    %v1254 = vadd.f32 %v1229, %v1253
    %1255 = vdwg.mxu0
    %v1256 = vadd.f32 %v1254, %v371
    %v1257 = vxor.u32 %v1256, 2147483648
    %v1258 = vmul.f32 %v1257, 1.442695
    %v1259 = vpow.pop %v1258
    %v1260 = vadd.f32 %v1259, 1.0
    %v1261 = vrcp.pop %v1260
    %v1262 = vmul.f32 %v1260, %v1261
    %v1263 = vsub.f32 1.0, %v1262
    %v1264 = vmul.f32 %v1261, %v1263
    %v1265 = vadd.f32 %v1261, %v1264
    %vm1266 = vweird.f32 %v1260
    %vm1267 = vweird.f32 %v1261
    %vm1268 = vmor %vm1266, %vm1267
    %v1269 = vsel %vm1268, %v1261, %v1265
    %v1270 = vand.u32 2147483647, %v1260
    %vm1271 = vcmp.eq.f32.partialorder %v1270, 8.507059e+37
    %v1272 = vand.u32 %v1260, 2147483648
    %v1273 = vor.u32 1.1754944e-38, %v1272
    %v1274 = vsel %vm1271, %v1273, %v1269
    %v1275 = vmul.f32 1.0, %v1274
    %v1276 = vtanh.pop %v1256
    %v1277 = vmul.f32 %v1275, %v1056
    %1279 = vrot.lane.b32.xlu0 %v1276, 32
    %v1280 = vpop.permute.xlu0 %1279
    %v1282 = vmul.f32 %v1275, %v1280
    %1284 = vrot.lane.b32.xlu0 %v1282, 32
    %v1285 = vpop.permute.xlu0 %1284
    %v1287 = vadd.f32 %v1277, %v1285
    %v1288 = vtanh.pop %v1287
    %1290 = vrot.lane.b32.xlu0 %v1288, 32
    %v1291 = vpop.permute.xlu0 %1290
    %v1293 = vmul.f32 %v1275, %v1291
    %1295 = vrot.lane.b32.xlu0 %v1293, 64
    %v1296 = vpop.permute.xlu0 %1295
    %1298 = vst.msk [vmem:[#allocation2 + $0x18] sm:$0xff] %vm373, %v1296
    %1299 = vmatpush.msra.mxu0 0.0
    %1300 = vmatpush.msra.mxu0 0.0
    %1301 = vmatpush.msra.mxu0 0.0
    %1302 = vmatpush.msra.mxu0 0.0
    %1303 = vmatpush.msra.mxu0 0.0
    %1304 = vmatpush.msra.mxu0 0.0
    %1305 = vmatpush.msra.mxu0 0.0
    %1306 = vmatpush.msra.mxu0 0.0
    %1307 = vmatpush.msra.mxu0 0.0
    %1308 = vmatpush.msra.mxu0 0.0
    %1309 = vmatpush.msra.mxu0 0.0
    %1310 = vmatpush.msra.mxu0 0.0
    %1311 = vmatpush.msra.mxu0 %v348
    %1312 = vmatpush.msra.mxu0 %v347
    %1313 = vmatpush.msra.mxu0 %v346
    %1314 = vmatpush.msra.mxu0 %v345
    %1315 = vmatmul.f32.gmra.mxu0 %v1149
    %v1316 = vpop.f32.mrf.mxu0
    %v1317 = vadd.f32 0.0, %v1316
    %1318 = vdwg.mxu0
    %v1319 = vadd.f32 %v334, %v1317
    %v1320 = vxor.u32 %v1319, 2147483648
    %v1321 = vmul.f32 %v1320, 1.442695
    %v1322 = vpow.pop %v1321
    %v1323 = vadd.f32 %v1322, 1.0
    %v1324 = vrcp.pop %v1323
    %v1325 = vmul.f32 %v1323, %v1324
    %v1326 = vsub.f32 1.0, %v1325
    %v1327 = vmul.f32 %v1324, %v1326
    %v1328 = vadd.f32 %v1324, %v1327
    %vm1329 = vweird.f32 %v1323
    %vm1330 = vweird.f32 %v1324
    %vm1331 = vmor %vm1329, %vm1330
    %v1332 = vsel %vm1331, %v1324, %v1328
    %v1333 = vand.u32 2147483647, %v1323
    %vm1334 = vcmp.eq.f32.partialorder %v1333, 8.507059e+37
    %v1335 = vand.u32 %v1323, 2147483648
    %v1336 = vor.u32 1.1754944e-38, %v1335
    %v1337 = vsel %vm1334, %v1336, %v1332
    %v1338 = vmul.f32 1.0, %v1337
    %v1339 = vtanh.pop %v1319
    %v1340 = vmul.f32 %v1338, %v1119
    %1342 = vrot.lane.b32.xlu0 %v1339, 32
    %v1343 = vpop.permute.xlu0 %1342
    %v1345 = vmul.f32 %v1338, %v1343
    %1347 = vrot.lane.b32.xlu0 %v1345, 32
    %v1348 = vpop.permute.xlu0 %1347
    %v1350 = vadd.f32 %v1340, %v1348
    %v1351 = vtanh.pop %v1350
    %1353 = vrot.lane.b32.xlu0 %v1351, 32
    %v1354 = vpop.permute.xlu0 %1353
    %v1356 = vmul.f32 %v1338, %v1354
    %1357 = vmatpush.msra.mxu0 0.0
    %1358 = vmatpush.msra.mxu0 0.0
    %1359 = vmatpush.msra.mxu0 0.0
    %1360 = vmatpush.msra.mxu0 0.0
    %1361 = vmatpush.msra.mxu0 0.0
    %1362 = vmatpush.msra.mxu0 0.0
    %1363 = vmatpush.msra.mxu0 0.0
    %1364 = vmatpush.msra.mxu0 0.0
    %1365 = vmatpush.msra.mxu0 0.0
    %1366 = vmatpush.msra.mxu0 0.0
    %1367 = vmatpush.msra.mxu0 0.0
    %1368 = vmatpush.msra.mxu0 0.0
    %1369 = vmatpush.msra.mxu0 %v356
    %1370 = vmatpush.msra.mxu0 %v355
    %1371 = vmatpush.msra.mxu0 %v354
    %1372 = vmatpush.msra.mxu0 %v353
    %1373 = vmatmul.f32.gmra.mxu0 %v1234
    %v1374 = vpop.f32.mrf.mxu0
    %v1375 = vadd.f32 0.0, %v1374
    %1376 = vdwg.mxu0
    %1378 = vrot.lane.b32.xlu0 %v1356, 64
    %v1379 = vpop.permute.xlu0 %1378
    %v1380 = vsel %vm373, %v1379, 0
    %1382 = vmatpush.msra.mxu0 0.0
    %1383 = vmatpush.msra.mxu0 0.0
    %1384 = vmatpush.msra.mxu0 0.0
    %1385 = vmatpush.msra.mxu0 0.0
    %1386 = vmatpush.msra.mxu0 0.0
    %1387 = vmatpush.msra.mxu0 0.0
    %1388 = vmatpush.msra.mxu0 0.0
    %1389 = vmatpush.msra.mxu0 0.0
    %1390 = vmatpush.msra.mxu0 0.0
    %1391 = vmatpush.msra.mxu0 0.0
    %1392 = vmatpush.msra.mxu0 0.0
    %1393 = vmatpush.msra.mxu0 0.0
    %1394 = vmatpush.msra.mxu0 %v352
    %1395 = vmatpush.msra.mxu0 %v351
    %1396 = vmatpush.msra.mxu0 %v350
    %1397 = vmatpush.msra.mxu0 %v349
    %1398 = vmatmul.f32.gmra.mxu0 %v1380
    %v1399 = vpop.f32.mrf.mxu0
    %v1400 = vadd.f32 %v1375, %v1399
    %1401 = vdwg.mxu0
    %v1402 = vadd.f32 %v1400, %v367
    %v1403 = vxor.u32 %v1402, 2147483648
    %v1404 = vmul.f32 %v1403, 1.442695
    %v1405 = vpow.pop %v1404
    %v1406 = vadd.f32 %v1405, 1.0
    %v1407 = vrcp.pop %v1406
    %v1408 = vmul.f32 %v1406, %v1407
    %v1409 = vsub.f32 1.0, %v1408
    %v1410 = vmul.f32 %v1407, %v1409
    %v1411 = vadd.f32 %v1407, %v1410
    %vm1412 = vweird.f32 %v1406
    %vm1413 = vweird.f32 %v1407
    %vm1414 = vmor %vm1412, %vm1413
    %v1415 = vsel %vm1414, %v1407, %v1411
    %v1416 = vand.u32 2147483647, %v1406
    %vm1417 = vcmp.eq.f32.partialorder %v1416, 8.507059e+37
    %v1418 = vand.u32 %v1406, 2147483648
    %v1419 = vor.u32 1.1754944e-38, %v1418
    %v1420 = vsel %vm1417, %v1419, %v1415
    %v1421 = vmul.f32 1.0, %v1420
    %v1422 = vtanh.pop %v1402
    %v1423 = vmul.f32 %v1421, %v1202
    %1425 = vrot.lane.b32.xlu0 %v1422, 32
    %v1426 = vpop.permute.xlu0 %1425
    %v1428 = vmul.f32 %v1421, %v1426
    %1430 = vrot.lane.b32.xlu0 %v1428, 32
    %v1431 = vpop.permute.xlu0 %1430
    %v1433 = vadd.f32 %v1423, %v1431
    %v1434 = vtanh.pop %v1433
    %1436 = vrot.lane.b32.xlu0 %v1434, 32
    %v1437 = vpop.permute.xlu0 %1436
    %v1439 = vmul.f32 %v1421, %v1437
    %v1440 = vsel %vm373, %v1296, 0
    %1442 = vmatpush.msra.mxu0 0.0
    %1443 = vmatpush.msra.mxu0 0.0
    %1444 = vmatpush.msra.mxu0 0.0
    %1445 = vmatpush.msra.mxu0 0.0
    %1446 = vmatpush.msra.mxu0 0.0
    %1447 = vmatpush.msra.mxu0 0.0
    %1448 = vmatpush.msra.mxu0 0.0
    %1449 = vmatpush.msra.mxu0 0.0
    %1450 = vmatpush.msra.mxu0 0.0
    %1451 = vmatpush.msra.mxu0 0.0
    %1452 = vmatpush.msra.mxu0 0.0
    %1453 = vmatpush.msra.mxu0 0.0
    %1454 = vmatpush.msra.mxu0 %v364
    %1455 = vmatpush.msra.mxu0 %v363
    %1456 = vmatpush.msra.mxu0 %v362
    %1457 = vmatpush.msra.mxu0 %v361
    %1458 = vmatmul.f32.gmra.mxu0 %v1440
    %v1459 = vpop.f32.mrf.mxu0
    %v1460 = vadd.f32 0.0, %v1459
    %1461 = vdwg.mxu0
    %1463 = vrot.lane.b32.xlu0 %v1439, 64
    %v1464 = vpop.permute.xlu0 %1463
    %v1465 = vsel %vm373, %v1464, 0
    %1467 = vmatpush.msra.mxu0 0.0
    %1468 = vmatpush.msra.mxu0 0.0
    %1469 = vmatpush.msra.mxu0 0.0
    %1470 = vmatpush.msra.mxu0 0.0
    %1471 = vmatpush.msra.mxu0 0.0
    %1472 = vmatpush.msra.mxu0 0.0
    %1473 = vmatpush.msra.mxu0 0.0
    %1474 = vmatpush.msra.mxu0 0.0
    %1475 = vmatpush.msra.mxu0 0.0
    %1476 = vmatpush.msra.mxu0 0.0
    %1477 = vmatpush.msra.mxu0 0.0
    %1478 = vmatpush.msra.mxu0 0.0
    %1479 = vmatpush.msra.mxu0 %v360
    %1480 = vmatpush.msra.mxu0 %v359
    %1481 = vmatpush.msra.mxu0 %v358
    %1482 = vmatpush.msra.mxu0 %v357
    %1483 = vmatmul.f32.gmra.mxu0 %v1465
    %v1484 = vpop.f32.mrf.mxu0
    %v1485 = vadd.f32 %v1460, %v1484
    %1486 = vdwg.mxu0
    %v1487 = vadd.f32 %v1485, %v371
    %v1488 = vxor.u32 %v1487, 2147483648
    %v1489 = vmul.f32 %v1488, 1.442695
    %v1490 = vpow.pop %v1489
    %v1491 = vadd.f32 %v1490, 1.0
    %v1492 = vrcp.pop %v1491
    %v1493 = vmul.f32 %v1491, %v1492
    %v1494 = vsub.f32 1.0, %v1493
    %v1495 = vmul.f32 %v1492, %v1494
    %v1496 = vadd.f32 %v1492, %v1495
    %vm1497 = vweird.f32 %v1491
    %vm1498 = vweird.f32 %v1492
    %vm1499 = vmor %vm1497, %vm1498
    %v1500 = vsel %vm1499, %v1492, %v1496
    %v1501 = vand.u32 2147483647, %v1491
    %vm1502 = vcmp.eq.f32.partialorder %v1501, 8.507059e+37
    %v1503 = vand.u32 %v1491, 2147483648
    %v1504 = vor.u32 1.1754944e-38, %v1503
    %v1505 = vsel %vm1502, %v1504, %v1500
    %v1506 = vmul.f32 1.0, %v1505
    %v1507 = vtanh.pop %v1487
    %v1508 = vmul.f32 %v1506, %v1287
    %1510 = vrot.lane.b32.xlu0 %v1507, 32
    %v1511 = vpop.permute.xlu0 %1510
    %v1513 = vmul.f32 %v1506, %v1511
    %1515 = vrot.lane.b32.xlu0 %v1513, 32
    %v1516 = vpop.permute.xlu0 %1515
    %v1518 = vadd.f32 %v1508, %v1516
    %v1519 = vtanh.pop %v1518
    %1521 = vrot.lane.b32.xlu0 %v1519, 32
    %v1522 = vpop.permute.xlu0 %1521
    %v1524 = vmul.f32 %v1506, %v1522
    %1526 = vrot.lane.b32.xlu0 %v1524, 64
    %v1527 = vpop.permute.xlu0 %1526
    %1529 = vst.msk [vmem:[#allocation2 + $0x20] sm:$0xff] %vm373, %v1527
    %1530 = vmatpush.msra.mxu0 0.0
    %1531 = vmatpush.msra.mxu0 0.0
    %1532 = vmatpush.msra.mxu0 0.0
    %1533 = vmatpush.msra.mxu0 0.0
    %1534 = vmatpush.msra.mxu0 0.0
    %1535 = vmatpush.msra.mxu0 0.0
    %1536 = vmatpush.msra.mxu0 0.0
    %1537 = vmatpush.msra.mxu0 0.0
    %1538 = vmatpush.msra.mxu0 0.0
    %1539 = vmatpush.msra.mxu0 0.0
    %1540 = vmatpush.msra.mxu0 0.0
    %1541 = vmatpush.msra.mxu0 0.0
    %1542 = vmatpush.msra.mxu0 %v348
    %1543 = vmatpush.msra.mxu0 %v347
    %1544 = vmatpush.msra.mxu0 %v346
    %1545 = vmatpush.msra.mxu0 %v345
    %1546 = vmatmul.f32.gmra.mxu0 %v1380
    %v1547 = vpop.f32.mrf.mxu0
    %v1548 = vadd.f32 0.0, %v1547
    %1549 = vdwg.mxu0
    %v1550 = vadd.f32 %v337, %v1548
    %v1551 = vxor.u32 %v1550, 2147483648
    %v1552 = vmul.f32 %v1551, 1.442695
    %v1553 = vpow.pop %v1552
    %v1554 = vadd.f32 %v1553, 1.0
    %v1555 = vrcp.pop %v1554
    %v1556 = vmul.f32 %v1554, %v1555
    %v1557 = vsub.f32 1.0, %v1556
    %v1558 = vmul.f32 %v1555, %v1557
    %v1559 = vadd.f32 %v1555, %v1558
    %vm1560 = vweird.f32 %v1554
    %vm1561 = vweird.f32 %v1555
    %vm1562 = vmor %vm1560, %vm1561
    %v1563 = vsel %vm1562, %v1555, %v1559
    %v1564 = vand.u32 2147483647, %v1554
    %vm1565 = vcmp.eq.f32.partialorder %v1564, 8.507059e+37
    %v1566 = vand.u32 %v1554, 2147483648
    %v1567 = vor.u32 1.1754944e-38, %v1566
    %v1568 = vsel %vm1565, %v1567, %v1563
    %v1569 = vmul.f32 1.0, %v1568
    %v1570 = vtanh.pop %v1550
    %v1571 = vmul.f32 %v1569, %v1350
    %1573 = vrot.lane.b32.xlu0 %v1570, 32
    %v1574 = vpop.permute.xlu0 %1573
    %v1576 = vmul.f32 %v1569, %v1574
    %1578 = vrot.lane.b32.xlu0 %v1576, 32
    %v1579 = vpop.permute.xlu0 %1578
    %v1581 = vadd.f32 %v1571, %v1579
    %v1582 = vtanh.pop %v1581
    %1584 = vrot.lane.b32.xlu0 %v1582, 32
    %v1585 = vpop.permute.xlu0 %1584
    %v1587 = vmul.f32 %v1569, %v1585
    %1588 = vmatpush.msra.mxu0 0.0
    %1589 = vmatpush.msra.mxu0 0.0
    %1590 = vmatpush.msra.mxu0 0.0
    %1591 = vmatpush.msra.mxu0 0.0
    %1592 = vmatpush.msra.mxu0 0.0
    %1593 = vmatpush.msra.mxu0 0.0
    %1594 = vmatpush.msra.mxu0 0.0
    %1595 = vmatpush.msra.mxu0 0.0
    %1596 = vmatpush.msra.mxu0 0.0
    %1597 = vmatpush.msra.mxu0 0.0
    %1598 = vmatpush.msra.mxu0 0.0
    %1599 = vmatpush.msra.mxu0 0.0
    %1600 = vmatpush.msra.mxu0 %v356
    %1601 = vmatpush.msra.mxu0 %v355
    %1602 = vmatpush.msra.mxu0 %v354
    %1603 = vmatpush.msra.mxu0 %v353
    %1604 = vmatmul.f32.gmra.mxu0 %v1465
    %v1605 = vpop.f32.mrf.mxu0
    %v1606 = vadd.f32 0.0, %v1605
    %1607 = vdwg.mxu0
    %1609 = vrot.lane.b32.xlu0 %v1587, 64
    %v1610 = vpop.permute.xlu0 %1609
    %v1611 = vsel %vm373, %v1610, 0
    %1613 = vmatpush.msra.mxu0 0.0
    %1614 = vmatpush.msra.mxu0 0.0
    %1615 = vmatpush.msra.mxu0 0.0
    %1616 = vmatpush.msra.mxu0 0.0
    %1617 = vmatpush.msra.mxu0 0.0
    %1618 = vmatpush.msra.mxu0 0.0
    %1619 = vmatpush.msra.mxu0 0.0
    %1620 = vmatpush.msra.mxu0 0.0
    %1621 = vmatpush.msra.mxu0 0.0
    %1622 = vmatpush.msra.mxu0 0.0
    %1623 = vmatpush.msra.mxu0 0.0
    %1624 = vmatpush.msra.mxu0 0.0
    %1625 = vmatpush.msra.mxu0 %v352
    %1626 = vmatpush.msra.mxu0 %v351
    %1627 = vmatpush.msra.mxu0 %v350
    %1628 = vmatpush.msra.mxu0 %v349
    %1629 = vmatmul.f32.gmra.mxu0 %v1611
    %v1630 = vpop.f32.mrf.mxu0
    %v1631 = vadd.f32 %v1606, %v1630
    %1632 = vdwg.mxu0
    %v1633 = vadd.f32 %v1631, %v367
    %v1634 = vxor.u32 %v1633, 2147483648
    %v1635 = vmul.f32 %v1634, 1.442695
    %v1636 = vpow.pop %v1635
    %v1637 = vadd.f32 %v1636, 1.0
    %v1638 = vrcp.pop %v1637
    %v1639 = vmul.f32 %v1637, %v1638
    %v1640 = vsub.f32 1.0, %v1639
    %v1641 = vmul.f32 %v1638, %v1640
    %v1642 = vadd.f32 %v1638, %v1641
    %vm1643 = vweird.f32 %v1637
    %vm1644 = vweird.f32 %v1638
    %vm1645 = vmor %vm1643, %vm1644
    %v1646 = vsel %vm1645, %v1638, %v1642
    %v1647 = vand.u32 2147483647, %v1637
    %vm1648 = vcmp.eq.f32.partialorder %v1647, 8.507059e+37
    %v1649 = vand.u32 %v1637, 2147483648
    %v1650 = vor.u32 1.1754944e-38, %v1649
    %v1651 = vsel %vm1648, %v1650, %v1646
    %v1652 = vmul.f32 1.0, %v1651
    %v1653 = vtanh.pop %v1633
    %v1654 = vmul.f32 %v1652, %v1433
    %1656 = vrot.lane.b32.xlu0 %v1653, 32
    %v1657 = vpop.permute.xlu0 %1656
    %v1659 = vmul.f32 %v1652, %v1657
    %1661 = vrot.lane.b32.xlu0 %v1659, 32
    %v1662 = vpop.permute.xlu0 %1661
    %v1664 = vadd.f32 %v1654, %v1662
    %v1665 = vtanh.pop %v1664
    %1667 = vrot.lane.b32.xlu0 %v1665, 32
    %v1668 = vpop.permute.xlu0 %1667
    %v1670 = vmul.f32 %v1652, %v1668
    %v1671 = vsel %vm373, %v1527, 0
    %1673 = vmatpush.msra.mxu0 0.0
    %1674 = vmatpush.msra.mxu0 0.0
    %1675 = vmatpush.msra.mxu0 0.0
    %1676 = vmatpush.msra.mxu0 0.0
    %1677 = vmatpush.msra.mxu0 0.0
    %1678 = vmatpush.msra.mxu0 0.0
    %1679 = vmatpush.msra.mxu0 0.0
    %1680 = vmatpush.msra.mxu0 0.0
    %1681 = vmatpush.msra.mxu0 0.0
    %1682 = vmatpush.msra.mxu0 0.0
    %1683 = vmatpush.msra.mxu0 0.0
    %1684 = vmatpush.msra.mxu0 0.0
    %1685 = vmatpush.msra.mxu0 %v364
    %1686 = vmatpush.msra.mxu0 %v363
    %1687 = vmatpush.msra.mxu0 %v362
    %1688 = vmatpush.msra.mxu0 %v361
    %1689 = vmatmul.f32.gmra.mxu0 %v1671
    %v1690 = vpop.f32.mrf.mxu0
    %v1691 = vadd.f32 0.0, %v1690
    %1692 = vdwg.mxu0
    %1694 = vrot.lane.b32.xlu0 %v1670, 64
    %v1695 = vpop.permute.xlu0 %1694
    %v1696 = vsel %vm373, %v1695, 0
    %1698 = vmatpush.msra.mxu0 0.0
    %1699 = vmatpush.msra.mxu0 0.0
    %1700 = vmatpush.msra.mxu0 0.0
    %1701 = vmatpush.msra.mxu0 0.0
    %1702 = vmatpush.msra.mxu0 0.0
    %1703 = vmatpush.msra.mxu0 0.0
    %1704 = vmatpush.msra.mxu0 0.0
    %1705 = vmatpush.msra.mxu0 0.0
    %1706 = vmatpush.msra.mxu0 0.0
    %1707 = vmatpush.msra.mxu0 0.0
    %1708 = vmatpush.msra.mxu0 0.0
    %1709 = vmatpush.msra.mxu0 0.0
    %1710 = vmatpush.msra.mxu0 %v360
    %1711 = vmatpush.msra.mxu0 %v359
    %1712 = vmatpush.msra.mxu0 %v358
    %1713 = vmatpush.msra.mxu0 %v357
    %1714 = vmatmul.f32.gmra.mxu0 %v1696
    %v1715 = vpop.f32.mrf.mxu0
    %v1716 = vadd.f32 %v1691, %v1715
    %1717 = vdwg.mxu0
    %v1718 = vadd.f32 %v1716, %v371
    %v1719 = vxor.u32 %v1718, 2147483648
    %v1720 = vmul.f32 %v1719, 1.442695
    %v1721 = vpow.pop %v1720
    %v1722 = vadd.f32 %v1721, 1.0
    %v1723 = vrcp.pop %v1722
    %v1724 = vmul.f32 %v1722, %v1723
    %v1725 = vsub.f32 1.0, %v1724
    %v1726 = vmul.f32 %v1723, %v1725
    %v1727 = vadd.f32 %v1723, %v1726
    %vm1728 = vweird.f32 %v1722
    %vm1729 = vweird.f32 %v1723
    %vm1730 = vmor %vm1728, %vm1729
    %v1731 = vsel %vm1730, %v1723, %v1727
    %v1732 = vand.u32 2147483647, %v1722
    %vm1733 = vcmp.eq.f32.partialorder %v1732, 8.507059e+37
    %v1734 = vand.u32 %v1722, 2147483648
    %v1735 = vor.u32 1.1754944e-38, %v1734
    %v1736 = vsel %vm1733, %v1735, %v1731
    %v1737 = vmul.f32 1.0, %v1736
    %v1738 = vtanh.pop %v1718
    %v1739 = vmul.f32 %v1737, %v1518
    %1741 = vrot.lane.b32.xlu0 %v1738, 32
    %v1742 = vpop.permute.xlu0 %1741
    %v1744 = vmul.f32 %v1737, %v1742
    %1746 = vrot.lane.b32.xlu0 %v1744, 32
    %v1747 = vpop.permute.xlu0 %1746
    %v1749 = vadd.f32 %v1739, %v1747
    %v1750 = vtanh.pop %v1749
    %1752 = vrot.lane.b32.xlu0 %v1750, 32
    %v1753 = vpop.permute.xlu0 %1752
    %v1755 = vmul.f32 %v1737, %v1753
    %1757 = vrot.lane.b32.xlu0 %v1755, 64
    %v1758 = vpop.permute.xlu0 %1757
    %1760 = vst.msk [vmem:[#allocation2 + $0x28] sm:$0xff] %vm373, %v1758
    %1761 = vmatpush.msra.mxu0 0.0
    %1762 = vmatpush.msra.mxu0 0.0
    %1763 = vmatpush.msra.mxu0 0.0
    %1764 = vmatpush.msra.mxu0 0.0
    %1765 = vmatpush.msra.mxu0 0.0
    %1766 = vmatpush.msra.mxu0 0.0
    %1767 = vmatpush.msra.mxu0 0.0
    %1768 = vmatpush.msra.mxu0 0.0
    %1769 = vmatpush.msra.mxu0 0.0
    %1770 = vmatpush.msra.mxu0 0.0
    %1771 = vmatpush.msra.mxu0 0.0
    %1772 = vmatpush.msra.mxu0 0.0
    %1773 = vmatpush.msra.mxu0 %v348
    %1774 = vmatpush.msra.mxu0 %v347
    %1775 = vmatpush.msra.mxu0 %v346
    %1776 = vmatpush.msra.mxu0 %v345
    %1777 = vmatmul.f32.gmra.mxu0 %v1611
    %v1778 = vpop.f32.mrf.mxu0
    %v1779 = vadd.f32 0.0, %v1778
    %1780 = vdwg.mxu0
    %v1781 = vadd.f32 %v340, %v1779
    %v1782 = vxor.u32 %v1781, 2147483648
    %v1783 = vmul.f32 %v1782, 1.442695
    %v1784 = vpow.pop %v1783
    %v1785 = vadd.f32 %v1784, 1.0
    %v1786 = vrcp.pop %v1785
    %v1787 = vmul.f32 %v1785, %v1786
    %v1788 = vsub.f32 1.0, %v1787
    %v1789 = vmul.f32 %v1786, %v1788
    %v1790 = vadd.f32 %v1786, %v1789
    %vm1791 = vweird.f32 %v1785
    %vm1792 = vweird.f32 %v1786
    %vm1793 = vmor %vm1791, %vm1792
    %v1794 = vsel %vm1793, %v1786, %v1790
    %v1795 = vand.u32 2147483647, %v1785
    %vm1796 = vcmp.eq.f32.partialorder %v1795, 8.507059e+37
    %v1797 = vand.u32 %v1785, 2147483648
    %v1798 = vor.u32 1.1754944e-38, %v1797
    %v1799 = vsel %vm1796, %v1798, %v1794
    %v1800 = vmul.f32 1.0, %v1799
    %v1801 = vtanh.pop %v1781
    %v1802 = vmul.f32 %v1800, %v1581
    %1804 = vrot.lane.b32.xlu0 %v1801, 32
    %v1805 = vpop.permute.xlu0 %1804
    %v1807 = vmul.f32 %v1800, %v1805
    %1809 = vrot.lane.b32.xlu0 %v1807, 32
    %v1810 = vpop.permute.xlu0 %1809
    %v1812 = vadd.f32 %v1802, %v1810
    %v1813 = vtanh.pop %v1812
    %1815 = vrot.lane.b32.xlu0 %v1813, 32
    %v1816 = vpop.permute.xlu0 %1815
    %v1818 = vmul.f32 %v1800, %v1816
    %1819 = vmatpush.msra.mxu0 0.0
    %1820 = vmatpush.msra.mxu0 0.0
    %1821 = vmatpush.msra.mxu0 0.0
    %1822 = vmatpush.msra.mxu0 0.0
    %1823 = vmatpush.msra.mxu0 0.0
    %1824 = vmatpush.msra.mxu0 0.0
    %1825 = vmatpush.msra.mxu0 0.0
    %1826 = vmatpush.msra.mxu0 0.0
    %1827 = vmatpush.msra.mxu0 0.0
    %1828 = vmatpush.msra.mxu0 0.0
    %1829 = vmatpush.msra.mxu0 0.0
    %1830 = vmatpush.msra.mxu0 0.0
    %1831 = vmatpush.msra.mxu0 %v356
    %1832 = vmatpush.msra.mxu0 %v355
    %1833 = vmatpush.msra.mxu0 %v354
    %1834 = vmatpush.msra.mxu0 %v353
    %1835 = vmatmul.f32.gmra.mxu0 %v1696
    %v1836 = vpop.f32.mrf.mxu0
    %v1837 = vadd.f32 0.0, %v1836
    %1838 = vdwg.mxu0
    %1840 = vrot.lane.b32.xlu0 %v1818, 64
    %v1841 = vpop.permute.xlu0 %1840
    %v1842 = vsel %vm373, %v1841, 0
    %1844 = vmatpush.msra.mxu0 0.0
    %1845 = vmatpush.msra.mxu0 0.0
    %1846 = vmatpush.msra.mxu0 0.0
    %1847 = vmatpush.msra.mxu0 0.0
    %1848 = vmatpush.msra.mxu0 0.0
    %1849 = vmatpush.msra.mxu0 0.0
    %1850 = vmatpush.msra.mxu0 0.0
    %1851 = vmatpush.msra.mxu0 0.0
    %1852 = vmatpush.msra.mxu0 0.0
    %1853 = vmatpush.msra.mxu0 0.0
    %1854 = vmatpush.msra.mxu0 0.0
    %1855 = vmatpush.msra.mxu0 0.0
    %1856 = vmatpush.msra.mxu0 %v352
    %1857 = vmatpush.msra.mxu0 %v351
    %1858 = vmatpush.msra.mxu0 %v350
    %1859 = vmatpush.msra.mxu0 %v349
    %1860 = vmatmul.f32.gmra.mxu0 %v1842
    %v1861 = vpop.f32.mrf.mxu0
    %v1862 = vadd.f32 %v1837, %v1861
    %1863 = vdwg.mxu0
    %v1864 = vadd.f32 %v1862, %v367
    %v1865 = vxor.u32 %v1864, 2147483648
    %v1866 = vmul.f32 %v1865, 1.442695
    %v1867 = vpow.pop %v1866
    %v1868 = vadd.f32 %v1867, 1.0
    %v1869 = vrcp.pop %v1868
    %v1870 = vmul.f32 %v1868, %v1869
    %v1871 = vsub.f32 1.0, %v1870
    %v1872 = vmul.f32 %v1869, %v1871
    %v1873 = vadd.f32 %v1869, %v1872
    %vm1874 = vweird.f32 %v1868
    %vm1875 = vweird.f32 %v1869
    %vm1876 = vmor %vm1874, %vm1875
    %v1877 = vsel %vm1876, %v1869, %v1873
    %v1878 = vand.u32 2147483647, %v1868
    %vm1879 = vcmp.eq.f32.partialorder %v1878, 8.507059e+37
    %v1880 = vand.u32 %v1868, 2147483648
    %v1881 = vor.u32 1.1754944e-38, %v1880
    %v1882 = vsel %vm1879, %v1881, %v1877
    %v1883 = vmul.f32 1.0, %v1882
    %v1884 = vtanh.pop %v1864
    %v1885 = vmul.f32 %v1883, %v1664
    %1887 = vrot.lane.b32.xlu0 %v1884, 32
    %v1888 = vpop.permute.xlu0 %1887
    %v1890 = vmul.f32 %v1883, %v1888
    %1892 = vrot.lane.b32.xlu0 %v1890, 32
    %v1893 = vpop.permute.xlu0 %1892
    %v1895 = vadd.f32 %v1885, %v1893
    %v1896 = vtanh.pop %v1895
    %1898 = vrot.lane.b32.xlu0 %v1896, 32
    %v1899 = vpop.permute.xlu0 %1898
    %v1901 = vmul.f32 %v1883, %v1899
    %v1902 = vsel %vm373, %v1758, 0
    %1904 = vmatpush.msra.mxu0 0.0
    %1905 = vmatpush.msra.mxu0 0.0
    %1906 = vmatpush.msra.mxu0 0.0
    %1907 = vmatpush.msra.mxu0 0.0
    %1908 = vmatpush.msra.mxu0 0.0
    %1909 = vmatpush.msra.mxu0 0.0
    %1910 = vmatpush.msra.mxu0 0.0
    %1911 = vmatpush.msra.mxu0 0.0
    %1912 = vmatpush.msra.mxu0 0.0
    %1913 = vmatpush.msra.mxu0 0.0
    %1914 = vmatpush.msra.mxu0 0.0
    %1915 = vmatpush.msra.mxu0 0.0
    %1916 = vmatpush.msra.mxu0 %v364
    %1917 = vmatpush.msra.mxu0 %v363
    %1918 = vmatpush.msra.mxu0 %v362
    %1919 = vmatpush.msra.mxu0 %v361
    %1920 = vmatmul.f32.gmra.mxu0 %v1902
    %v1921 = vpop.f32.mrf.mxu0
    %v1922 = vadd.f32 0.0, %v1921
    %1923 = vdwg.mxu0
    %1925 = vrot.lane.b32.xlu0 %v1901, 64
    %v1926 = vpop.permute.xlu0 %1925
    %v1927 = vsel %vm373, %v1926, 0
    %1929 = vmatpush.msra.mxu0 0.0
    %1930 = vmatpush.msra.mxu0 0.0
    %1931 = vmatpush.msra.mxu0 0.0
    %1932 = vmatpush.msra.mxu0 0.0
    %1933 = vmatpush.msra.mxu0 0.0
    %1934 = vmatpush.msra.mxu0 0.0
    %1935 = vmatpush.msra.mxu0 0.0
    %1936 = vmatpush.msra.mxu0 0.0
    %1937 = vmatpush.msra.mxu0 0.0
    %1938 = vmatpush.msra.mxu0 0.0
    %1939 = vmatpush.msra.mxu0 0.0
    %1940 = vmatpush.msra.mxu0 0.0
    %1941 = vmatpush.msra.mxu0 %v360
    %1942 = vmatpush.msra.mxu0 %v359
    %1943 = vmatpush.msra.mxu0 %v358
    %1944 = vmatpush.msra.mxu0 %v357
    %1945 = vmatmul.f32.gmra.mxu0 %v1927
    %v1946 = vpop.f32.mrf.mxu0
    %v1947 = vadd.f32 %v1922, %v1946
    %1948 = vdwg.mxu0
    %v1949 = vadd.f32 %v1947, %v371
    %v1950 = vxor.u32 %v1949, 2147483648
    %v1951 = vmul.f32 %v1950, 1.442695
    %v1952 = vpow.pop %v1951
    %v1953 = vadd.f32 %v1952, 1.0
    %v1954 = vrcp.pop %v1953
    %v1955 = vmul.f32 %v1953, %v1954
    %v1956 = vsub.f32 1.0, %v1955
    %v1957 = vmul.f32 %v1954, %v1956
    %v1958 = vadd.f32 %v1954, %v1957
    %vm1959 = vweird.f32 %v1953
    %vm1960 = vweird.f32 %v1954
    %vm1961 = vmor %vm1959, %vm1960
    %v1962 = vsel %vm1961, %v1954, %v1958
    %v1963 = vand.u32 2147483647, %v1953
    %vm1964 = vcmp.eq.f32.partialorder %v1963, 8.507059e+37
    %v1965 = vand.u32 %v1953, 2147483648
    %v1966 = vor.u32 1.1754944e-38, %v1965
    %v1967 = vsel %vm1964, %v1966, %v1962
    %v1968 = vmul.f32 1.0, %v1967
    %v1969 = vtanh.pop %v1949
    %v1970 = vmul.f32 %v1968, %v1749
    %1972 = vrot.lane.b32.xlu0 %v1969, 32
    %v1973 = vpop.permute.xlu0 %1972
    %v1975 = vmul.f32 %v1968, %v1973
    %1977 = vrot.lane.b32.xlu0 %v1975, 32
    %v1978 = vpop.permute.xlu0 %1977
    %v1980 = vadd.f32 %v1970, %v1978
    %v1981 = vtanh.pop %v1980
    %1983 = vrot.lane.b32.xlu0 %v1981, 32
    %v1984 = vpop.permute.xlu0 %1983
    %v1986 = vmul.f32 %v1968, %v1984
    %1988 = vrot.lane.b32.xlu0 %v1986, 64
    %v1989 = vpop.permute.xlu0 %1988
    %1991 = vst.msk [vmem:[#allocation2 + $0x30] sm:$0xff] %vm373, %v1989
    %1992 = vmatpush.msra.mxu0 0.0
    %1993 = vmatpush.msra.mxu0 0.0
    %1994 = vmatpush.msra.mxu0 0.0
    %1995 = vmatpush.msra.mxu0 0.0
    %1996 = vmatpush.msra.mxu0 0.0
    %1997 = vmatpush.msra.mxu0 0.0
    %1998 = vmatpush.msra.mxu0 0.0
    %1999 = vmatpush.msra.mxu0 0.0
    %2000 = vmatpush.msra.mxu0 0.0
    %2001 = vmatpush.msra.mxu0 0.0
    %2002 = vmatpush.msra.mxu0 0.0
    %2003 = vmatpush.msra.mxu0 0.0
    %2004 = vmatpush.msra.mxu0 %v348
    %2005 = vmatpush.msra.mxu0 %v347
    %2006 = vmatpush.msra.mxu0 %v346
    %2007 = vmatpush.msra.mxu0 %v345
    %2008 = vmatmul.f32.gmra.mxu0 %v1842
    %v2009 = vpop.f32.mrf.mxu0
    %v2010 = vadd.f32 0.0, %v2009
    %2011 = vdwg.mxu0
    %v2012 = vadd.f32 %v343, %v2010
    %v2013 = vxor.u32 %v2012, 2147483648
    %v2014 = vmul.f32 %v2013, 1.442695
    %v2015 = vpow.pop %v2014
    %v2016 = vadd.f32 %v2015, 1.0
    %v2017 = vrcp.pop %v2016
    %v2018 = vmul.f32 %v2016, %v2017
    %v2019 = vsub.f32 1.0, %v2018
    %v2020 = vmul.f32 %v2017, %v2019
    %v2021 = vadd.f32 %v2017, %v2020
    %vm2022 = vweird.f32 %v2016
    %vm2023 = vweird.f32 %v2017
    %vm2024 = vmor %vm2022, %vm2023
    %v2025 = vsel %vm2024, %v2017, %v2021
    %v2026 = vand.u32 2147483647, %v2016
    %vm2027 = vcmp.eq.f32.partialorder %v2026, 8.507059e+37
    %v2028 = vand.u32 %v2016, 2147483648
    %v2029 = vor.u32 1.1754944e-38, %v2028
    %v2030 = vsel %vm2027, %v2029, %v2025
    %v2031 = vmul.f32 1.0, %v2030
    %v2032 = vtanh.pop %v2012
    %v2033 = vmul.f32 %v2031, %v1812
    %2035 = vrot.lane.b32.xlu0 %v2032, 32
    %v2036 = vpop.permute.xlu0 %2035
    %v2038 = vmul.f32 %v2031, %v2036
    %2040 = vrot.lane.b32.xlu0 %v2038, 32
    %v2041 = vpop.permute.xlu0 %2040
    %v2043 = vadd.f32 %v2033, %v2041
    %v2044 = vtanh.pop %v2043
    %2046 = vrot.lane.b32.xlu0 %v2044, 32
    %v2047 = vpop.permute.xlu0 %2046
    %v2049 = vmul.f32 %v2031, %v2047
    %2050 = vmatpush.msra.mxu0 0.0
    %2051 = vmatpush.msra.mxu0 0.0
    %2052 = vmatpush.msra.mxu0 0.0
    %2053 = vmatpush.msra.mxu0 0.0
    %2054 = vmatpush.msra.mxu0 0.0
    %2055 = vmatpush.msra.mxu0 0.0
    %2056 = vmatpush.msra.mxu0 0.0
    %2057 = vmatpush.msra.mxu0 0.0
    %2058 = vmatpush.msra.mxu0 0.0
    %2059 = vmatpush.msra.mxu0 0.0
    %2060 = vmatpush.msra.mxu0 0.0
    %2061 = vmatpush.msra.mxu0 0.0
    %2062 = vmatpush.msra.mxu0 %v356
    %2063 = vmatpush.msra.mxu0 %v355
    %2064 = vmatpush.msra.mxu0 %v354
    %2065 = vmatpush.msra.mxu0 %v353
    %2066 = vmatmul.f32.gmra.mxu0 %v1927
    %v2067 = vpop.f32.mrf.mxu0
    %v2068 = vadd.f32 0.0, %v2067
    %2069 = vdwg.mxu0
    %2071 = vrot.lane.b32.xlu0 %v2049, 64
    %v2072 = vpop.permute.xlu0 %2071
    %v2073 = vsel %vm373, %v2072, 0
    %2075 = vmatpush.msra.mxu0 0.0
    %2076 = vmatpush.msra.mxu0 0.0
    %2077 = vmatpush.msra.mxu0 0.0
    %2078 = vmatpush.msra.mxu0 0.0
    %2079 = vmatpush.msra.mxu0 0.0
    %2080 = vmatpush.msra.mxu0 0.0
    %2081 = vmatpush.msra.mxu0 0.0
    %2082 = vmatpush.msra.mxu0 0.0
    %2083 = vmatpush.msra.mxu0 0.0
    %2084 = vmatpush.msra.mxu0 0.0
    %2085 = vmatpush.msra.mxu0 0.0
    %2086 = vmatpush.msra.mxu0 0.0
    %2087 = vmatpush.msra.mxu0 %v352
    %2088 = vmatpush.msra.mxu0 %v351
    %2089 = vmatpush.msra.mxu0 %v350
    %2090 = vmatpush.msra.mxu0 %v349
    %2091 = vmatmul.f32.gmra.mxu0 %v2073
    %v2092 = vpop.f32.mrf.mxu0
    %v2093 = vadd.f32 %v2068, %v2092
    %2094 = vdwg.mxu0
    %v2095 = vadd.f32 %v2093, %v367
    %v2096 = vxor.u32 %v2095, 2147483648
    %v2097 = vmul.f32 %v2096, 1.442695
    %v2098 = vpow.pop %v2097
    %v2099 = vadd.f32 %v2098, 1.0
    %v2100 = vrcp.pop %v2099
    %v2101 = vmul.f32 %v2099, %v2100
    %v2102 = vsub.f32 1.0, %v2101
    %v2103 = vmul.f32 %v2100, %v2102
    %v2104 = vadd.f32 %v2100, %v2103
    %vm2105 = vweird.f32 %v2099
    %vm2106 = vweird.f32 %v2100
    %vm2107 = vmor %vm2105, %vm2106
    %v2108 = vsel %vm2107, %v2100, %v2104
    %v2109 = vand.u32 2147483647, %v2099
    %vm2110 = vcmp.eq.f32.partialorder %v2109, 8.507059e+37
    %v2111 = vand.u32 %v2099, 2147483648
    %v2112 = vor.u32 1.1754944e-38, %v2111
    %v2113 = vsel %vm2110, %v2112, %v2108
    %v2114 = vmul.f32 1.0, %v2113
    %v2115 = vtanh.pop %v2095
    %v2116 = vmul.f32 %v2114, %v1895
    %2118 = vrot.lane.b32.xlu0 %v2115, 32
    %v2119 = vpop.permute.xlu0 %2118
    %v2121 = vmul.f32 %v2114, %v2119
    %2123 = vrot.lane.b32.xlu0 %v2121, 32
    %v2124 = vpop.permute.xlu0 %2123
    %v2126 = vadd.f32 %v2116, %v2124
    %v2127 = vtanh.pop %v2126
    %2129 = vrot.lane.b32.xlu0 %v2127, 32
    %v2130 = vpop.permute.xlu0 %2129
    %v2132 = vmul.f32 %v2114, %v2130
    %v2133 = vsel %vm373, %v1989, 0
    %2135 = vmatpush.msra.mxu0 0.0
    %2136 = vmatpush.msra.mxu0 0.0
    %2137 = vmatpush.msra.mxu0 0.0
    %2138 = vmatpush.msra.mxu0 0.0
    %2139 = vmatpush.msra.mxu0 0.0
    %2140 = vmatpush.msra.mxu0 0.0
    %2141 = vmatpush.msra.mxu0 0.0
    %2142 = vmatpush.msra.mxu0 0.0
    %2143 = vmatpush.msra.mxu0 0.0
    %2144 = vmatpush.msra.mxu0 0.0
    %2145 = vmatpush.msra.mxu0 0.0
    %2146 = vmatpush.msra.mxu0 0.0
    %2147 = vmatpush.msra.mxu0 %v364
    %2148 = vmatpush.msra.mxu0 %v363
    %2149 = vmatpush.msra.mxu0 %v362
    %2150 = vmatpush.msra.mxu0 %v361
    %2151 = vmatmul.f32.gmra.mxu0 %v2133
    %v2152 = vpop.f32.mrf.mxu0
    %v2153 = vadd.f32 0.0, %v2152
    %2154 = vdwg.mxu0
    %2156 = vrot.lane.b32.xlu0 %v2132, 64
    %v2157 = vpop.permute.xlu0 %2156
    %v2158 = vsel %vm373, %v2157, 0
    %2160 = vmatpush.msra.mxu0 0.0
    %2161 = vmatpush.msra.mxu0 0.0
    %2162 = vmatpush.msra.mxu0 0.0
    %2163 = vmatpush.msra.mxu0 0.0
    %2164 = vmatpush.msra.mxu0 0.0
    %2165 = vmatpush.msra.mxu0 0.0
    %2166 = vmatpush.msra.mxu0 0.0
    %2167 = vmatpush.msra.mxu0 0.0
    %2168 = vmatpush.msra.mxu0 0.0
    %2169 = vmatpush.msra.mxu0 0.0
    %2170 = vmatpush.msra.mxu0 0.0
    %2171 = vmatpush.msra.mxu0 0.0
    %2172 = vmatpush.msra.mxu0 %v360
    %2173 = vmatpush.msra.mxu0 %v359
    %2174 = vmatpush.msra.mxu0 %v358
    %2175 = vmatpush.msra.mxu0 %v357
    %2176 = vmatmul.f32.gmra.mxu0 %v2158
    %v2177 = vpop.f32.mrf.mxu0
    %v2178 = vadd.f32 %v2153, %v2177
    %2179 = vdwg.mxu0
    %v2180 = vadd.f32 %v2178, %v371
    %v2181 = vxor.u32 %v2180, 2147483648
    %v2182 = vmul.f32 %v2181, 1.442695
    %v2183 = vpow.pop %v2182
    %v2184 = vadd.f32 %v2183, 1.0
    %v2185 = vrcp.pop %v2184
    %v2186 = vmul.f32 %v2184, %v2185
    %v2187 = vsub.f32 1.0, %v2186
    %v2188 = vmul.f32 %v2185, %v2187
    %v2189 = vadd.f32 %v2185, %v2188
    %vm2190 = vweird.f32 %v2184
    %vm2191 = vweird.f32 %v2185
    %vm2192 = vmor %vm2190, %vm2191
    %v2193 = vsel %vm2192, %v2185, %v2189
    %v2194 = vand.u32 2147483647, %v2184
    %vm2195 = vcmp.eq.f32.partialorder %v2194, 8.507059e+37
    %v2196 = vand.u32 %v2184, 2147483648
    %v2197 = vor.u32 1.1754944e-38, %v2196
    %v2198 = vsel %vm2195, %v2197, %v2193
    %v2199 = vmul.f32 1.0, %v2198
    %v2200 = vtanh.pop %v2180
    %v2201 = vmul.f32 %v2199, %v1980
    %2203 = vrot.lane.b32.xlu0 %v2200, 32
    %v2204 = vpop.permute.xlu0 %2203
    %v2206 = vmul.f32 %v2199, %v2204
    %2208 = vrot.lane.b32.xlu0 %v2206, 32
    %v2209 = vpop.permute.xlu0 %2208
    %v2211 = vadd.f32 %v2201, %v2209
    %v2212 = vtanh.pop %v2211
    %2214 = vrot.lane.b32.xlu0 %v2212, 32
    %v2215 = vpop.permute.xlu0 %2214
    %v2217 = vmul.f32 %v2199, %v2215
    %2219 = vrot.lane.b32.xlu0 %v2217, 64
    %v2220 = vpop.permute.xlu0 %2219
    %2222 = vst.msk [vmem:[#allocation2 + $0x38] sm:$0xff] %vm373, %v2220
    %v2223 = vld [vmem:[#allocation2] sm:$0xff]
    %v2224 = vld [vmem:[#allocation2 + $0x8] sm:$0xff]
    %v2225 = vld [vmem:[#allocation2 + $0x10] sm:$0xff]
    %v2226 = vld [vmem:[#allocation2 + $0x18] sm:$0xff]
    %v2227 = vld [vmem:[#allocation2 + $0x20] sm:$0xff]
    %v2228 = vld [vmem:[#allocation2 + $0x28] sm:$0xff]
    %v2229 = vld [vmem:[#allocation2 + $0x30] sm:$0xff]
    %v2230 = vld [vmem:[#allocation2 + $0x38] sm:$0xff]
    %v2231 = vld [vmem:[%s10] sm:$0xff]
    %v2232 = vld [vmem:[%s10 + $0x8] sm:$0xff]
    %v2233 = vld [vmem:[%s10 + $0x10] sm:$0xff]
    %v2234 = vld [vmem:[%s10 + $0x18] sm:$0xff]
    %v2235 = vld [vmem:[%s11] sm:$0x1]
    %v2237 = vperm.slane %v2235, 0
    %v2240 = vsel %vm373, %v2223, 0
    %v2243 = vsel %vm373, %v2224, 0
    %v2246 = vsel %vm373, %v2225, 0
    %v2249 = vsel %vm373, %v2226, 0
    %v2252 = vsel %vm373, %v2227, 0
    %v2255 = vsel %vm373, %v2228, 0
    %v2258 = vsel %vm373, %v2229, 0
    %v2261 = vsel %vm373, %v2230, 0
    %2263 = vmatpush.msra.mxu0 0.0
    %2264 = vmatpush.msra.mxu0 0.0
    %2265 = vmatpush.msra.mxu0 0.0
    %2266 = vmatpush.msra.mxu0 0.0
    %2267 = vmatpush.msra.mxu0 0.0
    %2268 = vmatpush.msra.mxu0 0.0
    %2269 = vmatpush.msra.mxu0 0.0
    %2270 = vmatpush.msra.mxu0 0.0
    %2271 = vmatpush.msra.mxu0 0.0
    %2272 = vmatpush.msra.mxu0 0.0
    %2273 = vmatpush.msra.mxu0 0.0
    %2274 = vmatpush.msra.mxu0 0.0
    %2275 = vmatpush.msra.mxu0 %v2234
    %2276 = vmatpush.msra.mxu0 %v2233
    %2277 = vmatpush.msra.mxu0 %v2232
    %2278 = vmatpush.msra.mxu0 %v2231
    %2279 = vmatmul.f32.gmra.mxu0 %v2240
    %v2280 = vpop.f32.mrf.mxu0
    %v2281 = vadd.f32 %v2237, %v2280
    %2282 = vmatmul.f32.gmra.mxu0 %v2243
    %v2283 = vpop.f32.mrf.mxu0
    %v2284 = vadd.f32 %v2237, %v2283
    %2285 = vmatmul.f32.gmra.mxu0 %v2246
    %v2286 = vpop.f32.mrf.mxu0
    %v2287 = vadd.f32 %v2237, %v2286
    %2288 = vmatmul.f32.gmra.mxu0 %v2249
    %v2289 = vpop.f32.mrf.mxu0
    %v2290 = vadd.f32 %v2237, %v2289
    %2291 = vmatmul.f32.gmra.mxu0 %v2252
    %v2292 = vpop.f32.mrf.mxu0
    %v2293 = vadd.f32 %v2237, %v2292
    %2294 = vmatmul.f32.gmra.mxu0 %v2255
    %v2295 = vpop.f32.mrf.mxu0
    %v2296 = vadd.f32 %v2237, %v2295
    %2297 = vmatmul.f32.gmra.mxu0 %v2258
    %v2298 = vpop.f32.mrf.mxu0
    %v2299 = vadd.f32 %v2237, %v2298
    %2300 = vmatmul.f32.gmra.mxu0 %v2261
    %v2301 = vpop.f32.mrf.mxu0
    %v2302 = vadd.f32 %v2237, %v2301
    %2303 = vdwg.mxu0
    %v2304 = vmax.f32 %v2281, 0.0
    %v2305 = vmax.f32 %v2284, 0.0
    %v2306 = vmax.f32 %v2287, 0.0
    %v2307 = vmax.f32 %v2290, 0.0
    %v2308 = vmax.f32 %v2293, 0.0
    %v2309 = vmax.f32 %v2296, 0.0
    %v2310 = vmax.f32 %v2299, 0.0
    %v2311 = vmax.f32 %v2302, 0.0
    %v2312 = vld [vmem:[%s12] sm:$0xff]
    %v2313 = vld [vmem:[%s12 + $0x8] sm:$0xff]
    %v2314 = vld [vmem:[%s13] sm:$0x1]
    %v2316 = vperm.slane %v2314, 0
    %vm2318 = vcmask 130048
    %v2320 = vsel %vm2318, %v2304, 0
    %v2323 = vsel %vm2318, %v2305, 0
    %v2326 = vsel %vm2318, %v2306, 0
    %v2329 = vsel %vm2318, %v2307, 0
    %v2332 = vsel %vm2318, %v2308, 0
    %v2335 = vsel %vm2318, %v2309, 0
    %v2338 = vsel %vm2318, %v2310, 0
    %v2341 = vsel %vm2318, %v2311, 0
    %2343 = vmatpush.msra.mxu0 0.0
    %2344 = vmatpush.msra.mxu0 0.0
    %2345 = vmatpush.msra.mxu0 0.0
    %2346 = vmatpush.msra.mxu0 0.0
    %2347 = vmatpush.msra.mxu0 0.0
    %2348 = vmatpush.msra.mxu0 0.0
    %2349 = vmatpush.msra.mxu0 0.0
    %2350 = vmatpush.msra.mxu0 0.0
    %2351 = vmatpush.msra.mxu0 0.0
    %2352 = vmatpush.msra.mxu0 0.0
    %2353 = vmatpush.msra.mxu0 0.0
    %2354 = vmatpush.msra.mxu0 0.0
    %2355 = vmatpush.msra.mxu0 0.0
    %2356 = vmatpush.msra.mxu0 0.0
    %2357 = vmatpush.msra.mxu0 %v2313
    %2358 = vmatpush.msra.mxu0 %v2312
    %2359 = vmatmul.f32.gmra.mxu0 %v2320
    %v2360 = vpop.f32.mrf.mxu0
    %v2361 = vadd.f32 %v2316, %v2360
    %2362 = vmatmul.f32.gmra.mxu0 %v2323
    %v2363 = vpop.f32.mrf.mxu0
    %v2364 = vadd.f32 %v2316, %v2363
    %2365 = vmatmul.f32.gmra.mxu0 %v2326
    %v2366 = vpop.f32.mrf.mxu0
    %v2367 = vadd.f32 %v2316, %v2366
    %2368 = vmatmul.f32.gmra.mxu0 %v2329
    %v2369 = vpop.f32.mrf.mxu0
    %v2370 = vadd.f32 %v2316, %v2369
    %2371 = vmatmul.f32.gmra.mxu0 %v2332
    %v2372 = vpop.f32.mrf.mxu0
    %v2373 = vadd.f32 %v2316, %v2372
    %2374 = vmatmul.f32.gmra.mxu0 %v2335
    %v2375 = vpop.f32.mrf.mxu0
    %v2376 = vadd.f32 %v2316, %v2375
    %2377 = vmatmul.f32.gmra.mxu0 %v2338
    %v2378 = vpop.f32.mrf.mxu0
    %v2379 = vadd.f32 %v2316, %v2378
    %2380 = vmatmul.f32.gmra.mxu0 %v2341
    %v2381 = vpop.f32.mrf.mxu0
    %v2382 = vadd.f32 %v2316, %v2381
    %2383 = vdwg.mxu0
    %vm2384 = vcmask 15360
    %2385 = vst.msk [vmem:[%s14] sm:$0xff] %vm2384, %v2361
    %2386 = vst.msk [vmem:[%s14 + $0x8] sm:$0xff] %vm2384, %v2364
    %2387 = vst.msk [vmem:[%s14 + $0x10] sm:$0xff] %vm2384, %v2367
    %2388 = vst.msk [vmem:[%s14 + $0x18] sm:$0xff] %vm2384, %v2370
    %2389 = vst.msk [vmem:[%s14 + $0x20] sm:$0xff] %vm2384, %v2373
    %2390 = vst.msk [vmem:[%s14 + $0x28] sm:$0xff] %vm2384, %v2376
    %2391 = vst.msk [vmem:[%s14 + $0x30] sm:$0xff] %vm2384, %v2379
    %2392 = vst.msk [vmem:[%s14 + $0x38] sm:$0xff] %vm2384, %v2382
    // Predicated region
    $region66: #{tpu_custom_call.1} parent=1 // pred_check
      _
    $region67: #{tpu_custom_call.1} parent=1 // pred_check_branch
      %2394 = sbr.rel (0) target = $region69
    $region68: #{tpu_custom_call.1} parent=1 // pred_region
      _
    $region69: #{tpu_custom_call.1} parent=1 // pred_fallthru
      _
    // Predicated region
    $region70: #{tpu_custom_call.1} parent=1 // pred_check
      _
    $region71: #{tpu_custom_call.1} parent=1 // pred_check_branch
      %2396 = sbr.rel (0) target = $region73
    $region72: #{tpu_custom_call.1} parent=1 // pred_region
      _
    $region73: #{tpu_custom_call.1} parent=1 // pred_fallthru
      _
    %2397 = vsyncpa [#allocation4], 1
    %2398 = vsyncpa [#allocation6], 1

</llo_original>
